<compile_context>
chip_gen: v7x
topology: tpu7x:2x2x1
jax: 0.10.0
libtpu: 0.0.40
codegen_flags: <defaults>
</compile_context>

<pallas_src>
import functools

import jax
import jax.numpy as jnp
from jax import lax
from jax.experimental import pallas as pl
from jax.experimental.pallas import tpu as pltpu

_EPS = 1e-5  # PyTorch BatchNorm2d default eps


def _resblock_kernel(p1_ref, w1_ref, b1_ref, w2_ref, b2_ref, wsc_ref, bsc_ref,
                     out_ref, y1s_ref, *, W, TM, PAD):
    """Fused ResidualBlock_Small forward for one image (one grid step).

    p1_ref  : (1, H*W, 9*Cin)      bf16  conv1 im2col patches (built in the wrapper)
    w1_ref  : (9*Cin, Cout)        bf16  conv1 weight, BN1 scale folded in
    w2_ref  : (9*Cout, Cout)       bf16  conv2 weight, BN2 scale folded in
    wsc_ref : (9*Cin, Cout)        bf16  1x1 shortcut weight (BN folded), zero except the
                                         centre-tap rows, so  p1 @ wsc == x @ w_shortcut
    b*_ref  : (1, Cout)            f32   folded BN biases
    out_ref : (1, H*W, Cout)       f32   flattened NHWC output (no lane padding)
    y1s_ref : (2*PAD + H*W, Cout)  f32   VMEM scratch: conv1 activation, flat over pixels, with
                                         PAD zero rows above/below supplying the 3x3 row halo.
    """
    HW, Cout = out_ref.shape[1], out_ref.shape[2]
    nstrips = HW // TM

    # Zero the halo rows every grid step (cheap; keeps the kernel correct when the batch axis is
    # sharded across TensorCores and a core's first step has program_id != 0).
    y1s_ref[pl.ds(0, PAD), :] = jnp.zeros((PAD, Cout), jnp.float32)
    y1s_ref[pl.ds(PAD + HW, PAD), :] = jnp.zeros((PAD, Cout), jnp.float32)

    # Column masks for the dx = -1 / +1 taps of conv2: flat-index shifts wrap across image rows,
    # and those wrapped positions must read 0.  Identical for every strip (TM % W == 0), so they
    # are built once here, not re-broadcast inside the loops.
    col = lax.broadcasted_iota(jnp.int32, (TM, 1), 0) % W
    not_left = col > 0           # tap reads column c-1: invalid at c == 0
    not_right = col < W - 1      # tap reads column c+1: invalid at c == W-1

    w1, b1 = w1_ref[...], b1_ref[...]
    w2, b2 = w2_ref[...], b2_ref[...]
    wsc, bsc = wsc_ref[...], bsc_ref[...]

    # ---- pass 1: conv1 + BN1 + ReLU.  One (TM, 9*Cin) x (9*Cin, Cout) MXU matmul per strip;
    #      the channel-compact f32 result is staged in the padded flat y1 scratch. ----
    def conv1_strip(s, carry):
        m0 = pl.multiple_of(s * TM, TM)
        lhs = p1_ref[0, pl.ds(m0, TM), :]                                   # (TM, 9*Cin) bf16
        y1 = jnp.dot(lhs, w1, preferred_element_type=jnp.float32) + b1
        y1s_ref[pl.ds(PAD + m0, TM), :] = jnp.maximum(y1, 0.0)
        return carry

    lax.fori_loop(0, nstrips, conv1_strip, 0, unroll=True)

    # ---- pass 2: conv2 + BN2 + ReLU (single K = 9*Cout matmul via in-kernel im2col),
    #      1x1 shortcut + BN, residual add, final ReLU. ----
    def out_strip(s, carry):
        m0 = pl.multiple_of(s * TM, TM)
        # One aligned load of the y1 window (strip + halo); the 9 shifted taps are then static
        # slices of this small (TM + 2*PAD, Cout) value (register shifts, no 128-lane slabs).
        hal = y1s_ref[pl.ds(m0, TM + 2 * PAD), :]
        taps = []
        for k in range(9):
            dy, dx = divmod(k, 3)
            off = (dy - 1) * W + (dx - 1)
            win = hal[PAD + off:PAD + off + TM, :]
            if dx == 0:
                win = jnp.where(not_left, win, 0.0)
            elif dx == 2:
                win = jnp.where(not_right, win, 0.0)
            taps.append(win)
        patches = jnp.concatenate(taps, axis=1).astype(w2.dtype)            # (TM, 9*Cout) bf16
        y2 = jnp.maximum(
            jnp.dot(patches, w2, preferred_element_type=jnp.float32) + b2, 0.0)
        # Shortcut reuses the already-resident conv1 patch rows as its LHS.
        sc = jnp.dot(p1_ref[0, pl.ds(m0, TM), :], wsc,
                     preferred_element_type=jnp.float32) + bsc
        out_ref[0, pl.ds(m0, TM), :] = jnp.maximum(y2 + sc, 0.0)
        return carry

    lax.fori_loop(0, nstrips, out_strip, 0, unroll=True)


def _full(a):
    """Whole-array (2-D) block, reused (DMA'd once) across all batch grid steps."""
    return pl.BlockSpec(a.shape, lambda n: (0, 0))


def residual_block_small(x_nchw, params, *, stride=1):
    """Forward pass of ResidualBlock_Small (inference-mode BN). NCHW in / NCHW out."""
    if stride != 1:
        # TODO(synk): strided first conv / strided 1x1 shortcut not implemented in the kernel.
        raise NotImplementedError("Pallas kernel implements stride=1 only")

    x = jnp.transpose(x_nchw, (0, 2, 3, 1)).astype(jnp.float32)             # NCHW -> NHWC
    N, H, W, Cin = x.shape
    Cout = params["w1"].shape[0]
    HW = H * W
    K1, K2 = 9 * Cin, 9 * Cout

    TM = 64 if (HW % 64 == 0 and 64 % W == 0) else HW                       # flat row-strip size
    PAD = ((W + 1 + 7) // 8) * 8                                            # >= W+1, 8-aligned

    # conv1 im2col patches built by XLA (Cin is tiny): (N, H*W, 9*Cin), bf16 MXU operands.
    xp = jnp.pad(x, ((0, 0), (1, 1), (1, 1), (0, 0)))
    p1 = jnp.concatenate(
        [xp[:, dy:dy + H, dx:dx + W, :] for dy in range(3) for dx in range(3)],
        axis=-1).reshape(N, HW, K1).astype(jnp.bfloat16)

    # Fold inference-mode BatchNorm (running stats) into weight scale + bias.
    def fold(w_ko, g, b, m, v):                      # w_ko: (K, Cout), output channels last
        s = g / jnp.sqrt(v + _EPS)
        return (w_ko * s).astype(jnp.bfloat16), (b - m * s).reshape(1, Cout)

    w1f, b1 = fold(jnp.transpose(params["w1"], (2, 3, 1, 0)).reshape(K1, Cout),
                   params["g1"], params["b1"], params["m1"], params["v1"])
    w2f, b2 = fold(jnp.transpose(params["w2"], (2, 3, 1, 0)).reshape(K2, Cout),
                   params["g2"], params["b2"], params["m2"], params["v2"])
    wsc_io = params["wsc"][:, :, 0, 0].T                                     # (Cin, Cout)
    wsc_full = jnp.zeros((K1, Cout), jnp.float32).at[4 * Cin:5 * Cin].set(wsc_io)
    wscf, bsc = fold(wsc_full, params["gsc"], params["bsc"], params["msc"], params["vsc"])

    kernel = functools.partial(_resblock_kernel, W=W, TM=TM, PAD=PAD)
    grid_spec = pltpu.PrefetchScalarGridSpec(
        num_scalar_prefetch=0,
        grid=(N,),
        in_specs=[
            pl.BlockSpec((1, HW, K1), lambda n: (n, 0, 0)),                  # per-image patches
            _full(w1f), _full(b1), _full(w2f), _full(b2), _full(wscf), _full(bsc),
        ],
        out_specs=pl.BlockSpec((1, HW, Cout), lambda n: (n, 0, 0)),
        scratch_shapes=[pltpu.VMEM((2 * PAD + HW, Cout), jnp.float32)],
    )

    def run(batch_sem):
        return pl.pallas_call(
            kernel,
            out_shape=jax.ShapeDtypeStruct((N, HW, Cout), jnp.float32),
            grid_spec=grid_spec,
            compiler_params=pltpu.CompilerParams(dimension_semantics=(batch_sem,)),
        )(p1, w1f, b1, w2f, b2, wscf, bsc)

    try:
        # v7x: only CORE_PARALLEL actually splits the batch across the two TensorCores (plain
        # "parallel" barely changes codegen); harmless on single-core v5e/v6e.
        out = jax.block_until_ready(run(pltpu.CORE_PARALLEL))
    except Exception:
        out = jax.block_until_ready(run(pltpu.PARALLEL))

    return jnp.transpose(out.reshape(N, H, W, Cout), (0, 3, 1, 2))           # NHWC -> NCHW


# ---------------- deterministic parameter init (module __init__ shapes) ----------------
def init_params(key, cin, cout):
    keys = iter(jax.random.split(key, 15))
    p = {}
    p["w1"] = 0.1 * jax.random.normal(next(keys), (cout, cin, 3, 3), jnp.float32)
    p["w2"] = 0.1 * jax.random.normal(next(keys), (cout, cout, 3, 3), jnp.float32)
    p["wsc"] = 0.1 * jax.random.normal(next(keys), (cout, cin, 1, 1), jnp.float32)
    for tag in ("1", "2", "sc"):
        p["g" + tag] = jax.random.uniform(next(keys), (cout,), jnp.float32, 0.5, 1.5)  # gamma
        p["b" + tag] = 0.1 * jax.random.normal(next(keys), (cout,), jnp.float32)       # beta
        p["m" + tag] = 0.1 * jax.random.normal(next(keys), (cout,), jnp.float32)       # run mean
        p["v" + tag] = jax.random.uniform(next(keys), (cout,), jnp.float32, 0.5, 1.5)  # run var
    return p


# ---------------- pure-JAX reference (NCHW, same inference-mode BN semantics) ----------------
def reference_resblock(x, p):
    dn = ("NCHW", "OIHW", "NCHW")

    def conv(a, w, pad):
        return lax.conv_general_dilated(a, w, (1, 1), [(pad, pad), (pad, pad)],
                                        dimension_numbers=dn)

    def bn(a, g, b, m, v):
        sh = (1, -1, 1, 1)
        return ((a - m.reshape(sh)) / jnp.sqrt(v.reshape(sh) + _EPS)
                * g.reshape(sh) + b.reshape(sh))

    h = jax.nn.relu(bn(conv(x, p["w1"], 1), p["g1"], p["b1"], p["m1"], p["v1"]))
    h = jax.nn.relu(bn(conv(h, p["w2"], 1), p["g2"], p["b2"], p["m2"], p["v2"]))
    sc = bn(conv(x, p["wsc"], 0), p["gsc"], p["bsc"], p["msc"], p["vsc"])
    return jax.nn.relu(h + sc)


if __name__ == "__main__":
    N, Cin, Cout, H, W = 2, 4, 8, 16, 16
    key = jax.random.PRNGKey(0)
    kx, kp = jax.random.split(key)
    x = jax.random.normal(kx, (N, Cin, H, W), jnp.float32)
    params = init_params(kp, Cin, Cout)

    out = jax.block_until_ready(residual_block_small(x, params))

    ref = reference_resblock(x, params)
    assert out.shape == ref.shape == (N, Cout, H, W)
    # bf16 MXU operands (f32 accumulation) vs the f32 reference -> worst-case deviation ~1e-2.
    if not bool(jnp.allclose(out, ref, atol=3e-2, rtol=3e-2)):
        raise AssertionError(
            f"kernel mismatch vs reference, max abs err = {float(jnp.max(jnp.abs(out - ref)))}")
    print("KERNEL_OK")
</pallas_src>

<mosaic_0001>
module attributes {stable_mosaic.version = 11 : i64} {
  func.func @_resblock_kernel(%arg0: i32, %arg1: memref<1x256x36xbf16, #tpu.memory_space<vmem>>, %arg2: memref<36x8xbf16, #tpu.memory_space<vmem>>, %arg3: memref<1x8xf32, #tpu.memory_space<vmem>>, %arg4: memref<72x8xbf16, #tpu.memory_space<vmem>>, %arg5: memref<1x8xf32, #tpu.memory_space<vmem>>, %arg6: memref<36x8xbf16, #tpu.memory_space<vmem>>, %arg7: memref<1x8xf32, #tpu.memory_space<vmem>>, %arg8: memref<1x256x8xf32, #tpu.memory_space<vmem>>, %arg9: memref<304x8xf32, #tpu.memory_space<vmem>>) attributes {dimension_semantics = [#tpu.dimension_semantics<core_parallel>], iteration_bounds = array<i64: 2>, scalar_prefetch = 0 : i64, scratch_operands = 1 : i64, tpu.core_type = #tpu.core_type<tc>, window_params = [{transform_indices = @transform_0, window_bounds = array<i64: 1, 256, 36>}, {pipeline_mode = #tpu.pipeline_mode<synchronous>, transform_indices = @transform_1, window_bounds = array<i64: 36, 8>}, {pipeline_mode = #tpu.pipeline_mode<synchronous>, transform_indices = @transform_2, window_bounds = array<i64: 1, 8>}, {pipeline_mode = #tpu.pipeline_mode<synchronous>, transform_indices = @transform_3, window_bounds = array<i64: 72, 8>}, {pipeline_mode = #tpu.pipeline_mode<synchronous>, transform_indices = @transform_4, window_bounds = array<i64: 1, 8>}, {pipeline_mode = #tpu.pipeline_mode<synchronous>, transform_indices = @transform_5, window_bounds = array<i64: 36, 8>}, {pipeline_mode = #tpu.pipeline_mode<synchronous>, transform_indices = @transform_6, window_bounds = array<i64: 1, 8>}, {transform_indices = @transform_7, window_bounds = array<i64: 1, 256, 8>}]} {
    %cst = arith.constant 0.000000e+00 : f32
    %0 = vector.broadcast %cst : f32 to vector<24x8xf32>
    %c0 = arith.constant 0 : index
    %c0_0 = arith.constant 0 : index
    %1 = vector.load %arg9[%c0, %c0_0] : memref<304x8xf32, #tpu.memory_space<vmem>>, vector<24x8xf32>
    tpu.vector_store %arg9[%c0, %c0_0], %0 {strides = array<i32>} : memref<304x8xf32, #tpu.memory_space<vmem>>, vector<24x8xf32>,
    %cst_1 = arith.constant 0.000000e+00 : f32
    %2 = vector.broadcast %cst_1 : f32 to vector<24x8xf32>
    %c280 = arith.constant 280 : index
    %c0_2 = arith.constant 0 : index
    %3 = vector.load %arg9[%c280, %c0_2] : memref<304x8xf32, #tpu.memory_space<vmem>>, vector<24x8xf32>
    tpu.vector_store %arg9[%c280, %c0_2], %2 {strides = array<i32>} : memref<304x8xf32, #tpu.memory_space<vmem>>, vector<24x8xf32>,
    %4 = tpu.iota {dimensions = array<i32: 0>} : vector<64x1xi32>
    %c16_i32 = arith.constant 16 : i32
    %c0_i32 = arith.constant 0 : i32
    %5 = arith.cmpi eq, %c16_i32, %c0_i32 : i32
    %c1_i32 = arith.constant 1 : i32
    %6 = arith.select %5, %c1_i32, %c16_i32 : i32
    %7 = vector.broadcast %6 : i32 to vector<64x1xi32>
    %8 = arith.remsi %4, %7 : vector<64x1xi32>
    %c0_i32_3 = arith.constant 0 : i32
    %9 = vector.broadcast %c0_i32_3 : i32 to vector<64x1xi32>
    %10 = arith.cmpi ne, %8, %9 : vector<64x1xi32>
    %c0_i32_4 = arith.constant 0 : i32
    %11 = vector.broadcast %c0_i32_4 : i32 to vector<64x1xi32>
    %12 = arith.cmpi slt, %8, %11 : vector<64x1xi32>
    %c0_i32_5 = arith.constant 0 : i32
    %13 = arith.cmpi slt, %6, %c0_i32_5 : i32
    %14 = vector.broadcast %13 : i1 to vector<64x1xi1>
    %15 = vector.broadcast %14 : vector<64x1xi1> to vector<64x1xi1>
    %16 = arith.xori %12, %15 : vector<64x1xi1>
    %17 = arith.andi %16, %10 : vector<64x1xi1>
    %18 = vector.broadcast %6 : i32 to vector<64x1xi32>
    %19 = arith.addi %8, %18 : vector<64x1xi32>
    %20 = arith.select %17, %19, %8 : vector<64x1xi1>, vector<64x1xi32>
    %c0_i32_6 = arith.constant 0 : i32
    %21 = vector.broadcast %c0_i32_6 : i32 to vector<64x1xi32>
    %22 = arith.cmpi sgt, %20, %21 : vector<64x1xi32>
    %c15_i32 = arith.constant 15 : i32
    %23 = vector.broadcast %c15_i32 : i32 to vector<64x1xi32>
    %24 = arith.cmpi slt, %20, %23 : vector<64x1xi32>
    %c0_7 = arith.constant 0 : index
    %c0_8 = arith.constant 0 : index
    %25 = vector.load %arg2[%c0_7, %c0_8] : memref<36x8xbf16, #tpu.memory_space<vmem>>, vector<36x8xbf16>
    %c0_9 = arith.constant 0 : index
    %c0_10 = arith.constant 0 : index
    %26 = vector.load %arg3[%c0_9, %c0_10] : memref<1x8xf32, #tpu.memory_space<vmem>>, vector<1x8xf32>
    %c0_11 = arith.constant 0 : index
    %c0_12 = arith.constant 0 : index
    %27 = vector.load %arg4[%c0_11, %c0_12] : memref<72x8xbf16, #tpu.memory_space<vmem>>, vector<72x8xbf16>
    %c0_13 = arith.constant 0 : index
    %c0_14 = arith.constant 0 : index
    %28 = vector.load %arg5[%c0_13, %c0_14] : memref<1x8xf32, #tpu.memory_space<vmem>>, vector<1x8xf32>
    %c0_15 = arith.constant 0 : index
    %c0_16 = arith.constant 0 : index
    %29 = vector.load %arg6[%c0_15, %c0_16] : memref<36x8xbf16, #tpu.memory_space<vmem>>, vector<36x8xbf16>
    %c0_17 = arith.constant 0 : index
    %c0_18 = arith.constant 0 : index
    %30 = vector.load %arg7[%c0_17, %c0_18] : memref<1x8xf32, #tpu.memory_space<vmem>>, vector<1x8xf32>
    %c0_i32_19 = arith.constant 0 : i32
    %c64_i32 = arith.constant 64 : i32
    %31 = arith.muli %c0_i32_19, %c64_i32 : i32
    %32 = tpu.assume_multiple %31, 64 : i32
    %c0_20 = arith.constant 0 : index
    %33 = arith.index_cast %32 : i32 to index
    %c0_21 = arith.constant 0 : index
    %34 = vector.load %arg1[%c0_20, %33, %c0_21] : memref<1x256x36xbf16, #tpu.memory_space<vmem>>, vector<1x64x36xbf16>
    %35 = vector.shape_cast %34 : vector<1x64x36xbf16> to vector<64x36xbf16>
    %cst_22 = arith.constant dense<0.000000e+00> : vector<64x8xf32>
    %36 = tpu.matmul %35, %25, %cst_22 {dimension_numbers = #tpu.dot_dimension_numbers<[1], [0], [0], [1], [0, 0, 1, 1], [], []>} : vector<64x36xbf16>, vector<36x8xbf16>, vector<64x8xf32> -> vector<64x8xf32>
    %37 = vector.broadcast %26 : vector<1x8xf32> to vector<64x8xf32>
    %38 = arith.addf %36, %37 : vector<64x8xf32>
    %cst_23 = arith.constant 0.000000e+00 : f32
    %39 = vector.broadcast %cst_23 : f32 to vector<64x8xf32>
    %40 = arith.maximumf %38, %39 : vector<64x8xf32>
    %c24_i32 = arith.constant 24 : i32
    %41 = arith.addi %c24_i32, %32 : i32
    %42 = arith.index_cast %41 : i32 to index
    %c0_24 = arith.constant 0 : index
    %43 = vector.load %arg9[%42, %c0_24] : memref<304x8xf32, #tpu.memory_space<vmem>>, vector<64x8xf32>
    tpu.vector_store %arg9[%42, %c0_24], %40 {strides = array<i32>} : memref<304x8xf32, #tpu.memory_space<vmem>>, vector<64x8xf32>,
    %c1_i32_25 = arith.constant 1 : i32
    %c64_i32_26 = arith.constant 64 : i32
    %44 = arith.muli %c1_i32_25, %c64_i32_26 : i32
    %45 = tpu.assume_multiple %44, 64 : i32
    %c0_27 = arith.constant 0 : index
    %46 = arith.index_cast %45 : i32 to index
    %c0_28 = arith.constant 0 : index
    %47 = vector.load %arg1[%c0_27, %46, %c0_28] : memref<1x256x36xbf16, #tpu.memory_space<vmem>>, vector<1x64x36xbf16>
    %48 = vector.shape_cast %47 : vector<1x64x36xbf16> to vector<64x36xbf16>
    %cst_29 = arith.constant dense<0.000000e+00> : vector<64x8xf32>
    %49 = tpu.matmul %48, %25, %cst_29 {dimension_numbers = #tpu.dot_dimension_numbers<[1], [0], [0], [1], [0, 0, 1, 1], [], []>} : vector<64x36xbf16>, vector<36x8xbf16>, vector<64x8xf32> -> vector<64x8xf32>
    %50 = vector.broadcast %26 : vector<1x8xf32> to vector<64x8xf32>
    %51 = arith.addf %49, %50 : vector<64x8xf32>
    %cst_30 = arith.constant 0.000000e+00 : f32
    %52 = vector.broadcast %cst_30 : f32 to vector<64x8xf32>
    %53 = arith.maximumf %51, %52 : vector<64x8xf32>
    %c24_i32_31 = arith.constant 24 : i32
    %54 = arith.addi %c24_i32_31, %45 : i32
    %55 = arith.index_cast %54 : i32 to index
    %c0_32 = arith.constant 0 : index
    %56 = vector.load %arg9[%55, %c0_32] : memref<304x8xf32, #tpu.memory_space<vmem>>, vector<64x8xf32>
    tpu.vector_store %arg9[%55, %c0_32], %53 {strides = array<i32>} : memref<304x8xf32, #tpu.memory_space<vmem>>, vector<64x8xf32>,
    %c2_i32 = arith.constant 2 : i32
    %c64_i32_33 = arith.constant 64 : i32
    %57 = arith.muli %c2_i32, %c64_i32_33 : i32
    %58 = tpu.assume_multiple %57, 64 : i32
    %c0_34 = arith.constant 0 : index
    %59 = arith.index_cast %58 : i32 to index
    %c0_35 = arith.constant 0 : index
    %60 = vector.load %arg1[%c0_34, %59, %c0_35] : memref<1x256x36xbf16, #tpu.memory_space<vmem>>, vector<1x64x36xbf16>
    %61 = vector.shape_cast %60 : vector<1x64x36xbf16> to vector<64x36xbf16>
    %cst_36 = arith.constant dense<0.000000e+00> : vector<64x8xf32>
    %62 = tpu.matmul %61, %25, %cst_36 {dimension_numbers = #tpu.dot_dimension_numbers<[1], [0], [0], [1], [0, 0, 1, 1], [], []>} : vector<64x36xbf16>, vector<36x8xbf16>, vector<64x8xf32> -> vector<64x8xf32>
    %63 = vector.broadcast %26 : vector<1x8xf32> to vector<64x8xf32>
    %64 = arith.addf %62, %63 : vector<64x8xf32>
    %cst_37 = arith.constant 0.000000e+00 : f32
    %65 = vector.broadcast %cst_37 : f32 to vector<64x8xf32>
    %66 = arith.maximumf %64, %65 : vector<64x8xf32>
    %c24_i32_38 = arith.constant 24 : i32
    %67 = arith.addi %c24_i32_38, %58 : i32
    %68 = arith.index_cast %67 : i32 to index
    %c0_39 = arith.constant 0 : index
    %69 = vector.load %arg9[%68, %c0_39] : memref<304x8xf32, #tpu.memory_space<vmem>>, vector<64x8xf32>
    tpu.vector_store %arg9[%68, %c0_39], %66 {strides = array<i32>} : memref<304x8xf32, #tpu.memory_space<vmem>>, vector<64x8xf32>,
    %c3_i32 = arith.constant 3 : i32
    %c64_i32_40 = arith.constant 64 : i32
    %70 = arith.muli %c3_i32, %c64_i32_40 : i32
    %71 = tpu.assume_multiple %70, 64 : i32
    %c0_41 = arith.constant 0 : index
    %72 = arith.index_cast %71 : i32 to index
    %c0_42 = arith.constant 0 : index
    %73 = vector.load %arg1[%c0_41, %72, %c0_42] : memref<1x256x36xbf16, #tpu.memory_space<vmem>>, vector<1x64x36xbf16>
    %74 = vector.shape_cast %73 : vector<1x64x36xbf16> to vector<64x36xbf16>
    %cst_43 = arith.constant dense<0.000000e+00> : vector<64x8xf32>
    %75 = tpu.matmul %74, %25, %cst_43 {dimension_numbers = #tpu.dot_dimension_numbers<[1], [0], [0], [1], [0, 0, 1, 1], [], []>} : vector<64x36xbf16>, vector<36x8xbf16>, vector<64x8xf32> -> vector<64x8xf32>
    %76 = vector.broadcast %26 : vector<1x8xf32> to vector<64x8xf32>
    %77 = arith.addf %75, %76 : vector<64x8xf32>
    %cst_44 = arith.constant 0.000000e+00 : f32
    %78 = vector.broadcast %cst_44 : f32 to vector<64x8xf32>
    %79 = arith.maximumf %77, %78 : vector<64x8xf32>
    %c24_i32_45 = arith.constant 24 : i32
    %80 = arith.addi %c24_i32_45, %71 : i32
    %81 = arith.index_cast %80 : i32 to index
    %c0_46 = arith.constant 0 : index
    %82 = vector.load %arg9[%81, %c0_46] : memref<304x8xf32, #tpu.memory_space<vmem>>, vector<64x8xf32>
    tpu.vector_store %arg9[%81, %c0_46], %79 {strides = array<i32>} : memref<304x8xf32, #tpu.memory_space<vmem>>, vector<64x8xf32>,
    %c4_i32 = arith.constant 4 : i32
    %c0_i32_47 = arith.constant 0 : i32
    %c64_i32_48 = arith.constant 64 : i32
    %83 = arith.muli %c0_i32_47, %c64_i32_48 : i32
    %84 = tpu.assume_multiple %83, 64 : i32
    %85 = arith.index_cast %84 : i32 to index
    %c0_49 = arith.constant 0 : index
    %86 = vector.load %arg9[%85, %c0_49] : memref<304x8xf32, #tpu.memory_space<vmem>>, vector<112x8xf32>
    %87 = vector.extract_strided_slice %86 {offsets = [7, 0], sizes = [64, 8], strides = [1, 1]} : vector<112x8xf32> to vector<64x8xf32>
    %cst_50 = arith.constant 0.000000e+00 : f32
    %88 = vector.shape_cast %22 : vector<64x1xi1> to vector<64x1xi1>
    %89 = vector.broadcast %88 : vector<64x1xi1> to vector<64x8xi1>
    %90 = vector.broadcast %cst_50 : f32 to vector<64x8xf32>
    %91 = arith.select %89, %87, %90 : vector<64x8xi1>, vector<64x8xf32>
    %92 = vector.extract_strided_slice %86 {offsets = [8, 0], sizes = [64, 8], strides = [1, 1]} : vector<112x8xf32> to vector<64x8xf32>
    %93 = vector.extract_strided_slice %86 {offsets = [9, 0], sizes = [64, 8], strides = [1, 1]} : vector<112x8xf32> to vector<64x8xf32>
    %cst_51 = arith.constant 0.000000e+00 : f32
    %94 = vector.shape_cast %24 : vector<64x1xi1> to vector<64x1xi1>
    %95 = vector.broadcast %94 : vector<64x1xi1> to vector<64x8xi1>
    %96 = vector.broadcast %cst_51 : f32 to vector<64x8xf32>
    %97 = arith.select %95, %93, %96 : vector<64x8xi1>, vector<64x8xf32>
    %98 = vector.extract_strided_slice %86 {offsets = [23, 0], sizes = [64, 8], strides = [1, 1]} : vector<112x8xf32> to vector<64x8xf32>
    %cst_52 = arith.constant 0.000000e+00 : f32
    %99 = vector.shape_cast %22 : vector<64x1xi1> to vector<64x1xi1>
    %100 = vector.broadcast %99 : vector<64x1xi1> to vector<64x8xi1>
    %101 = vector.broadcast %cst_52 : f32 to vector<64x8xf32>
    %102 = arith.select %100, %98, %101 : vector<64x8xi1>, vector<64x8xf32>
    %103 = vector.extract_strided_slice %86 {offsets = [24, 0], sizes = [64, 8], strides = [1, 1]} : vector<112x8xf32> to vector<64x8xf32>
    %104 = vector.extract_strided_slice %86 {offsets = [25, 0], sizes = [64, 8], strides = [1, 1]} : vector<112x8xf32> to vector<64x8xf32>
    %cst_53 = arith.constant 0.000000e+00 : f32
    %105 = vector.shape_cast %24 : vector<64x1xi1> to vector<64x1xi1>
    %106 = vector.broadcast %105 : vector<64x1xi1> to vector<64x8xi1>
    %107 = vector.broadcast %cst_53 : f32 to vector<64x8xf32>
    %108 = arith.select %106, %104, %107 : vector<64x8xi1>, vector<64x8xf32>
    %109 = vector.extract_strided_slice %86 {offsets = [39, 0], sizes = [64, 8], strides = [1, 1]} : vector<112x8xf32> to vector<64x8xf32>
    %cst_54 = arith.constant 0.000000e+00 : f32
    %110 = vector.shape_cast %22 : vector<64x1xi1> to vector<64x1xi1>
    %111 = vector.broadcast %110 : vector<64x1xi1> to vector<64x8xi1>
    %112 = vector.broadcast %cst_54 : f32 to vector<64x8xf32>
    %113 = arith.select %111, %109, %112 : vector<64x8xi1>, vector<64x8xf32>
    %114 = vector.extract_strided_slice %86 {offsets = [40, 0], sizes = [64, 8], strides = [1, 1]} : vector<112x8xf32> to vector<64x8xf32>
    %115 = vector.extract_strided_slice %86 {offsets = [41, 0], sizes = [64, 8], strides = [1, 1]} : vector<112x8xf32> to vector<64x8xf32>
    %cst_55 = arith.constant 0.000000e+00 : f32
    %116 = vector.shape_cast %24 : vector<64x1xi1> to vector<64x1xi1>
    %117 = vector.broadcast %116 : vector<64x1xi1> to vector<64x8xi1>
    %118 = vector.broadcast %cst_55 : f32 to vector<64x8xf32>
    %119 = arith.select %117, %115, %118 : vector<64x8xi1>, vector<64x8xf32>
    %120 = tpu.concatenate %91, %92, %97, %102, %103, %108, %113, %114, %119 in 1 : vector<64x8xf32>, vector<64x8xf32>, vector<64x8xf32>, vector<64x8xf32>, vector<64x8xf32>, vector<64x8xf32>, vector<64x8xf32>, vector<64x8xf32>, vector<64x8xf32> -> vector<64x72xf32>
    %121 = arith.truncf %120 : vector<64x72xf32> to vector<64x72xbf16>
    %cst_56 = arith.constant dense<0.000000e+00> : vector<64x8xf32>
    %122 = tpu.matmul %121, %27, %cst_56 {dimension_numbers = #tpu.dot_dimension_numbers<[1], [0], [0], [1], [0, 0, 1, 1], [], []>} : vector<64x72xbf16>, vector<72x8xbf16>, vector<64x8xf32> -> vector<64x8xf32>
    %123 = vector.broadcast %28 : vector<1x8xf32> to vector<64x8xf32>
    %124 = arith.addf %122, %123 : vector<64x8xf32>
    %cst_57 = arith.constant 0.000000e+00 : f32
    %125 = vector.broadcast %cst_57 : f32 to vector<64x8xf32>
    %126 = arith.maximumf %124, %125 : vector<64x8xf32>
    %c0_58 = arith.constant 0 : index
    %127 = arith.index_cast %84 : i32 to index
    %c0_59 = arith.constant 0 : index
    %128 = vector.load %arg1[%c0_58, %127, %c0_59] : memref<1x256x36xbf16, #tpu.memory_space<vmem>>, vector<1x64x36xbf16>
    %129 = vector.shape_cast %128 : vector<1x64x36xbf16> to vector<64x36xbf16>
    %cst_60 = arith.constant dense<0.000000e+00> : vector<64x8xf32>
    %130 = tpu.matmul %129, %29, %cst_60 {dimension_numbers = #tpu.dot_dimension_numbers<[1], [0], [0], [1], [0, 0, 1, 1], [], []>} : vector<64x36xbf16>, vector<36x8xbf16>, vector<64x8xf32> -> vector<64x8xf32>
    %131 = vector.broadcast %30 : vector<1x8xf32> to vector<64x8xf32>
    %132 = arith.addf %130, %131 : vector<64x8xf32>
    %133 = arith.addf %126, %132 : vector<64x8xf32>
    %cst_61 = arith.constant 0.000000e+00 : f32
    %134 = vector.broadcast %cst_61 : f32 to vector<64x8xf32>
    %135 = arith.maximumf %133, %134 : vector<64x8xf32>
    %c0_62 = arith.constant 0 : index
    %136 = arith.index_cast %84 : i32 to index
    %c0_63 = arith.constant 0 : index
    %137 = vector.load %arg8[%c0_62, %136, %c0_63] : memref<1x256x8xf32, #tpu.memory_space<vmem>>, vector<1x64x8xf32>
    %138 = vector.shape_cast %137 : vector<1x64x8xf32> to vector<64x8xf32>
    %139 = vector.shape_cast %135 : vector<64x8xf32> to vector<1x64x8xf32>
    tpu.vector_store %arg8[%c0_62, %136, %c0_63], %139 {strides = array<i32>} : memref<1x256x8xf32, #tpu.memory_space<vmem>>, vector<1x64x8xf32>,
    %c1_i32_64 = arith.constant 1 : i32
    %c64_i32_65 = arith.constant 64 : i32
    %140 = arith.muli %c1_i32_64, %c64_i32_65 : i32
    %141 = tpu.assume_multiple %140, 64 : i32
    %142 = arith.index_cast %141 : i32 to index
    %c0_66 = arith.constant 0 : index
    %143 = vector.load %arg9[%142, %c0_66] : memref<304x8xf32, #tpu.memory_space<vmem>>, vector<112x8xf32>
    %144 = vector.extract_strided_slice %143 {offsets = [7, 0], sizes = [64, 8], strides = [1, 1]} : vector<112x8xf32> to vector<64x8xf32>
    %cst_67 = arith.constant 0.000000e+00 : f32
    %145 = vector.shape_cast %22 : vector<64x1xi1> to vector<64x1xi1>
    %146 = vector.broadcast %145 : vector<64x1xi1> to vector<64x8xi1>
    %147 = vector.broadcast %cst_67 : f32 to vector<64x8xf32>
    %148 = arith.select %146, %144, %147 : vector<64x8xi1>, vector<64x8xf32>
    %149 = vector.extract_strided_slice %143 {offsets = [8, 0], sizes = [64, 8], strides = [1, 1]} : vector<112x8xf32> to vector<64x8xf32>
    %150 = vector.extract_strided_slice %143 {offsets = [9, 0], sizes = [64, 8], strides = [1, 1]} : vector<112x8xf32> to vector<64x8xf32>
    %cst_68 = arith.constant 0.000000e+00 : f32
    %151 = vector.shape_cast %24 : vector<64x1xi1> to vector<64x1xi1>
    %152 = vector.broadcast %151 : vector<64x1xi1> to vector<64x8xi1>
    %153 = vector.broadcast %cst_68 : f32 to vector<64x8xf32>
    %154 = arith.select %152, %150, %153 : vector<64x8xi1>, vector<64x8xf32>
    %155 = vector.extract_strided_slice %143 {offsets = [23, 0], sizes = [64, 8], strides = [1, 1]} : vector<112x8xf32> to vector<64x8xf32>
    %cst_69 = arith.constant 0.000000e+00 : f32
    %156 = vector.shape_cast %22 : vector<64x1xi1> to vector<64x1xi1>
    %157 = vector.broadcast %156 : vector<64x1xi1> to vector<64x8xi1>
    %158 = vector.broadcast %cst_69 : f32 to vector<64x8xf32>
    %159 = arith.select %157, %155, %158 : vector<64x8xi1>, vector<64x8xf32>
    %160 = vector.extract_strided_slice %143 {offsets = [24, 0], sizes = [64, 8], strides = [1, 1]} : vector<112x8xf32> to vector<64x8xf32>
    %161 = vector.extract_strided_slice %143 {offsets = [25, 0], sizes = [64, 8], strides = [1, 1]} : vector<112x8xf32> to vector<64x8xf32>
    %cst_70 = arith.constant 0.000000e+00 : f32
    %162 = vector.shape_cast %24 : vector<64x1xi1> to vector<64x1xi1>
    %163 = vector.broadcast %162 : vector<64x1xi1> to vector<64x8xi1>
    %164 = vector.broadcast %cst_70 : f32 to vector<64x8xf32>
    %165 = arith.select %163, %161, %164 : vector<64x8xi1>, vector<64x8xf32>
    %166 = vector.extract_strided_slice %143 {offsets = [39, 0], sizes = [64, 8], strides = [1, 1]} : vector<112x8xf32> to vector<64x8xf32>
    %cst_71 = arith.constant 0.000000e+00 : f32
    %167 = vector.shape_cast %22 : vector<64x1xi1> to vector<64x1xi1>
    %168 = vector.broadcast %167 : vector<64x1xi1> to vector<64x8xi1>
    %169 = vector.broadcast %cst_71 : f32 to vector<64x8xf32>
    %170 = arith.select %168, %166, %169 : vector<64x8xi1>, vector<64x8xf32>
    %171 = vector.extract_strided_slice %143 {offsets = [40, 0], sizes = [64, 8], strides = [1, 1]} : vector<112x8xf32> to vector<64x8xf32>
    %172 = vector.extract_strided_slice %143 {offsets = [41, 0], sizes = [64, 8], strides = [1, 1]} : vector<112x8xf32> to vector<64x8xf32>
    %cst_72 = arith.constant 0.000000e+00 : f32
    %173 = vector.shape_cast %24 : vector<64x1xi1> to vector<64x1xi1>
    %174 = vector.broadcast %173 : vector<64x1xi1> to vector<64x8xi1>
    %175 = vector.broadcast %cst_72 : f32 to vector<64x8xf32>
    %176 = arith.select %174, %172, %175 : vector<64x8xi1>, vector<64x8xf32>
    %177 = tpu.concatenate %148, %149, %154, %159, %160, %165, %170, %171, %176 in 1 : vector<64x8xf32>, vector<64x8xf32>, vector<64x8xf32>, vector<64x8xf32>, vector<64x8xf32>, vector<64x8xf32>, vector<64x8xf32>, vector<64x8xf32>, vector<64x8xf32> -> vector<64x72xf32>
    %178 = arith.truncf %177 : vector<64x72xf32> to vector<64x72xbf16>
    %cst_73 = arith.constant dense<0.000000e+00> : vector<64x8xf32>
    %179 = tpu.matmul %178, %27, %cst_73 {dimension_numbers = #tpu.dot_dimension_numbers<[1], [0], [0], [1], [0, 0, 1, 1], [], []>} : vector<64x72xbf16>, vector<72x8xbf16>, vector<64x8xf32> -> vector<64x8xf32>
    %180 = vector.broadcast %28 : vector<1x8xf32> to vector<64x8xf32>
    %181 = arith.addf %179, %180 : vector<64x8xf32>
    %cst_74 = arith.constant 0.000000e+00 : f32
    %182 = vector.broadcast %cst_74 : f32 to vector<64x8xf32>
    %183 = arith.maximumf %181, %182 : vector<64x8xf32>
    %c0_75 = arith.constant 0 : index
    %184 = arith.index_cast %141 : i32 to index
    %c0_76 = arith.constant 0 : index
    %185 = vector.load %arg1[%c0_75, %184, %c0_76] : memref<1x256x36xbf16, #tpu.memory_space<vmem>>, vector<1x64x36xbf16>
    %186 = vector.shape_cast %185 : vector<1x64x36xbf16> to vector<64x36xbf16>
    %cst_77 = arith.constant dense<0.000000e+00> : vector<64x8xf32>
    %187 = tpu.matmul %186, %29, %cst_77 {dimension_numbers = #tpu.dot_dimension_numbers<[1], [0], [0], [1], [0, 0, 1, 1], [], []>} : vector<64x36xbf16>, vector<36x8xbf16>, vector<64x8xf32> -> vector<64x8xf32>
    %188 = vector.broadcast %30 : vector<1x8xf32> to vector<64x8xf32>
    %189 = arith.addf %187, %188 : vector<64x8xf32>
    %190 = arith.addf %183, %189 : vector<64x8xf32>
    %cst_78 = arith.constant 0.000000e+00 : f32
    %191 = vector.broadcast %cst_78 : f32 to vector<64x8xf32>
    %192 = arith.maximumf %190, %191 : vector<64x8xf32>
    %c0_79 = arith.constant 0 : index
    %193 = arith.index_cast %141 : i32 to index
    %c0_80 = arith.constant 0 : index
    %194 = vector.load %arg8[%c0_79, %193, %c0_80] : memref<1x256x8xf32, #tpu.memory_space<vmem>>, vector<1x64x8xf32>
    %195 = vector.shape_cast %194 : vector<1x64x8xf32> to vector<64x8xf32>
    %196 = vector.shape_cast %192 : vector<64x8xf32> to vector<1x64x8xf32>
    tpu.vector_store %arg8[%c0_79, %193, %c0_80], %196 {strides = array<i32>} : memref<1x256x8xf32, #tpu.memory_space<vmem>>, vector<1x64x8xf32>,
    %c2_i32_81 = arith.constant 2 : i32
    %c64_i32_82 = arith.constant 64 : i32
    %197 = arith.muli %c2_i32_81, %c64_i32_82 : i32
    %198 = tpu.assume_multiple %197, 64 : i32
    %199 = arith.index_cast %198 : i32 to index
    %c0_83 = arith.constant 0 : index
    %200 = vector.load %arg9[%199, %c0_83] : memref<304x8xf32, #tpu.memory_space<vmem>>, vector<112x8xf32>
    %201 = vector.extract_strided_slice %200 {offsets = [7, 0], sizes = [64, 8], strides = [1, 1]} : vector<112x8xf32> to vector<64x8xf32>
    %cst_84 = arith.constant 0.000000e+00 : f32
    %202 = vector.shape_cast %22 : vector<64x1xi1> to vector<64x1xi1>
    %203 = vector.broadcast %202 : vector<64x1xi1> to vector<64x8xi1>
    %204 = vector.broadcast %cst_84 : f32 to vector<64x8xf32>
    %205 = arith.select %203, %201, %204 : vector<64x8xi1>, vector<64x8xf32>
    %206 = vector.extract_strided_slice %200 {offsets = [8, 0], sizes = [64, 8], strides = [1, 1]} : vector<112x8xf32> to vector<64x8xf32>
    %207 = vector.extract_strided_slice %200 {offsets = [9, 0], sizes = [64, 8], strides = [1, 1]} : vector<112x8xf32> to vector<64x8xf32>
    %cst_85 = arith.constant 0.000000e+00 : f32
    %208 = vector.shape_cast %24 : vector<64x1xi1> to vector<64x1xi1>
    %209 = vector.broadcast %208 : vector<64x1xi1> to vector<64x8xi1>
    %210 = vector.broadcast %cst_85 : f32 to vector<64x8xf32>
    %211 = arith.select %209, %207, %210 : vector<64x8xi1>, vector<64x8xf32>
    %212 = vector.extract_strided_slice %200 {offsets = [23, 0], sizes = [64, 8], strides = [1, 1]} : vector<112x8xf32> to vector<64x8xf32>
    %cst_86 = arith.constant 0.000000e+00 : f32
    %213 = vector.shape_cast %22 : vector<64x1xi1> to vector<64x1xi1>
    %214 = vector.broadcast %213 : vector<64x1xi1> to vector<64x8xi1>
    %215 = vector.broadcast %cst_86 : f32 to vector<64x8xf32>
    %216 = arith.select %214, %212, %215 : vector<64x8xi1>, vector<64x8xf32>
    %217 = vector.extract_strided_slice %200 {offsets = [24, 0], sizes = [64, 8], strides = [1, 1]} : vector<112x8xf32> to vector<64x8xf32>
    %218 = vector.extract_strided_slice %200 {offsets = [25, 0], sizes = [64, 8], strides = [1, 1]} : vector<112x8xf32> to vector<64x8xf32>
    %cst_87 = arith.constant 0.000000e+00 : f32
    %219 = vector.shape_cast %24 : vector<64x1xi1> to vector<64x1xi1>
    %220 = vector.broadcast %219 : vector<64x1xi1> to vector<64x8xi1>
    %221 = vector.broadcast %cst_87 : f32 to vector<64x8xf32>
    %222 = arith.select %220, %218, %221 : vector<64x8xi1>, vector<64x8xf32>
    %223 = vector.extract_strided_slice %200 {offsets = [39, 0], sizes = [64, 8], strides = [1, 1]} : vector<112x8xf32> to vector<64x8xf32>
    %cst_88 = arith.constant 0.000000e+00 : f32
    %224 = vector.shape_cast %22 : vector<64x1xi1> to vector<64x1xi1>
    %225 = vector.broadcast %224 : vector<64x1xi1> to vector<64x8xi1>
    %226 = vector.broadcast %cst_88 : f32 to vector<64x8xf32>
    %227 = arith.select %225, %223, %226 : vector<64x8xi1>, vector<64x8xf32>
    %228 = vector.extract_strided_slice %200 {offsets = [40, 0], sizes = [64, 8], strides = [1, 1]} : vector<112x8xf32> to vector<64x8xf32>
    %229 = vector.extract_strided_slice %200 {offsets = [41, 0], sizes = [64, 8], strides = [1, 1]} : vector<112x8xf32> to vector<64x8xf32>
    %cst_89 = arith.constant 0.000000e+00 : f32
    %230 = vector.shape_cast %24 : vector<64x1xi1> to vector<64x1xi1>
    %231 = vector.broadcast %230 : vector<64x1xi1> to vector<64x8xi1>
    %232 = vector.broadcast %cst_89 : f32 to vector<64x8xf32>
    %233 = arith.select %231, %229, %232 : vector<64x8xi1>, vector<64x8xf32>
    %234 = tpu.concatenate %205, %206, %211, %216, %217, %222, %227, %228, %233 in 1 : vector<64x8xf32>, vector<64x8xf32>, vector<64x8xf32>, vector<64x8xf32>, vector<64x8xf32>, vector<64x8xf32>, vector<64x8xf32>, vector<64x8xf32>, vector<64x8xf32> -> vector<64x72xf32>
    %235 = arith.truncf %234 : vector<64x72xf32> to vector<64x72xbf16>
    %cst_90 = arith.constant dense<0.000000e+00> : vector<64x8xf32>
    %236 = tpu.matmul %235, %27, %cst_90 {dimension_numbers = #tpu.dot_dimension_numbers<[1], [0], [0], [1], [0, 0, 1, 1], [], []>} : vector<64x72xbf16>, vector<72x8xbf16>, vector<64x8xf32> -> vector<64x8xf32>
    %237 = vector.broadcast %28 : vector<1x8xf32> to vector<64x8xf32>
    %238 = arith.addf %236, %237 : vector<64x8xf32>
    %cst_91 = arith.constant 0.000000e+00 : f32
    %239 = vector.broadcast %cst_91 : f32 to vector<64x8xf32>
    %240 = arith.maximumf %238, %239 : vector<64x8xf32>
    %c0_92 = arith.constant 0 : index
    %241 = arith.index_cast %198 : i32 to index
    %c0_93 = arith.constant 0 : index
    %242 = vector.load %arg1[%c0_92, %241, %c0_93] : memref<1x256x36xbf16, #tpu.memory_space<vmem>>, vector<1x64x36xbf16>
    %243 = vector.shape_cast %242 : vector<1x64x36xbf16> to vector<64x36xbf16>
    %cst_94 = arith.constant dense<0.000000e+00> : vector<64x8xf32>
    %244 = tpu.matmul %243, %29, %cst_94 {dimension_numbers = #tpu.dot_dimension_numbers<[1], [0], [0], [1], [0, 0, 1, 1], [], []>} : vector<64x36xbf16>, vector<36x8xbf16>, vector<64x8xf32> -> vector<64x8xf32>
    %245 = vector.broadcast %30 : vector<1x8xf32> to vector<64x8xf32>
    %246 = arith.addf %244, %245 : vector<64x8xf32>
    %247 = arith.addf %240, %246 : vector<64x8xf32>
    %cst_95 = arith.constant 0.000000e+00 : f32
    %248 = vector.broadcast %cst_95 : f32 to vector<64x8xf32>
    %249 = arith.maximumf %247, %248 : vector<64x8xf32>
    %c0_96 = arith.constant 0 : index
    %250 = arith.index_cast %198 : i32 to index
    %c0_97 = arith.constant 0 : index
    %251 = vector.load %arg8[%c0_96, %250, %c0_97] : memref<1x256x8xf32, #tpu.memory_space<vmem>>, vector<1x64x8xf32>
    %252 = vector.shape_cast %251 : vector<1x64x8xf32> to vector<64x8xf32>
    %253 = vector.shape_cast %249 : vector<64x8xf32> to vector<1x64x8xf32>
    tpu.vector_store %arg8[%c0_96, %250, %c0_97], %253 {strides = array<i32>} : memref<1x256x8xf32, #tpu.memory_space<vmem>>, vector<1x64x8xf32>,
    %c3_i32_98 = arith.constant 3 : i32
    %c64_i32_99 = arith.constant 64 : i32
    %254 = arith.muli %c3_i32_98, %c64_i32_99 : i32
    %255 = tpu.assume_multiple %254, 64 : i32
    %256 = arith.index_cast %255 : i32 to index
    %c0_100 = arith.constant 0 : index
    %257 = vector.load %arg9[%256, %c0_100] : memref<304x8xf32, #tpu.memory_space<vmem>>, vector<112x8xf32>
    %258 = vector.extract_strided_slice %257 {offsets = [7, 0], sizes = [64, 8], strides = [1, 1]} : vector<112x8xf32> to vector<64x8xf32>
    %cst_101 = arith.constant 0.000000e+00 : f32
    %259 = vector.shape_cast %22 : vector<64x1xi1> to vector<64x1xi1>
    %260 = vector.broadcast %259 : vector<64x1xi1> to vector<64x8xi1>
    %261 = vector.broadcast %cst_101 : f32 to vector<64x8xf32>
    %262 = arith.select %260, %258, %261 : vector<64x8xi1>, vector<64x8xf32>
    %263 = vector.extract_strided_slice %257 {offsets = [8, 0], sizes = [64, 8], strides = [1, 1]} : vector<112x8xf32> to vector<64x8xf32>
    %264 = vector.extract_strided_slice %257 {offsets = [9, 0], sizes = [64, 8], strides = [1, 1]} : vector<112x8xf32> to vector<64x8xf32>
    %cst_102 = arith.constant 0.000000e+00 : f32
    %265 = vector.shape_cast %24 : vector<64x1xi1> to vector<64x1xi1>
    %266 = vector.broadcast %265 : vector<64x1xi1> to vector<64x8xi1>
    %267 = vector.broadcast %cst_102 : f32 to vector<64x8xf32>
    %268 = arith.select %266, %264, %267 : vector<64x8xi1>, vector<64x8xf32>
    %269 = vector.extract_strided_slice %257 {offsets = [23, 0], sizes = [64, 8], strides = [1, 1]} : vector<112x8xf32> to vector<64x8xf32>
    %cst_103 = arith.constant 0.000000e+00 : f32
    %270 = vector.shape_cast %22 : vector<64x1xi1> to vector<64x1xi1>
    %271 = vector.broadcast %270 : vector<64x1xi1> to vector<64x8xi1>
    %272 = vector.broadcast %cst_103 : f32 to vector<64x8xf32>
    %273 = arith.select %271, %269, %272 : vector<64x8xi1>, vector<64x8xf32>
    %274 = vector.extract_strided_slice %257 {offsets = [24, 0], sizes = [64, 8], strides = [1, 1]} : vector<112x8xf32> to vector<64x8xf32>
    %275 = vector.extract_strided_slice %257 {offsets = [25, 0], sizes = [64, 8], strides = [1, 1]} : vector<112x8xf32> to vector<64x8xf32>
    %cst_104 = arith.constant 0.000000e+00 : f32
    %276 = vector.shape_cast %24 : vector<64x1xi1> to vector<64x1xi1>
    %277 = vector.broadcast %276 : vector<64x1xi1> to vector<64x8xi1>
    %278 = vector.broadcast %cst_104 : f32 to vector<64x8xf32>
    %279 = arith.select %277, %275, %278 : vector<64x8xi1>, vector<64x8xf32>
    %280 = vector.extract_strided_slice %257 {offsets = [39, 0], sizes = [64, 8], strides = [1, 1]} : vector<112x8xf32> to vector<64x8xf32>
    %cst_105 = arith.constant 0.000000e+00 : f32
    %281 = vector.shape_cast %22 : vector<64x1xi1> to vector<64x1xi1>
    %282 = vector.broadcast %281 : vector<64x1xi1> to vector<64x8xi1>
    %283 = vector.broadcast %cst_105 : f32 to vector<64x8xf32>
    %284 = arith.select %282, %280, %283 : vector<64x8xi1>, vector<64x8xf32>
    %285 = vector.extract_strided_slice %257 {offsets = [40, 0], sizes = [64, 8], strides = [1, 1]} : vector<112x8xf32> to vector<64x8xf32>
    %286 = vector.extract_strided_slice %257 {offsets = [41, 0], sizes = [64, 8], strides = [1, 1]} : vector<112x8xf32> to vector<64x8xf32>
    %cst_106 = arith.constant 0.000000e+00 : f32
    %287 = vector.shape_cast %24 : vector<64x1xi1> to vector<64x1xi1>
    %288 = vector.broadcast %287 : vector<64x1xi1> to vector<64x8xi1>
    %289 = vector.broadcast %cst_106 : f32 to vector<64x8xf32>
    %290 = arith.select %288, %286, %289 : vector<64x8xi1>, vector<64x8xf32>
    %291 = tpu.concatenate %262, %263, %268, %273, %274, %279, %284, %285, %290 in 1 : vector<64x8xf32>, vector<64x8xf32>, vector<64x8xf32>, vector<64x8xf32>, vector<64x8xf32>, vector<64x8xf32>, vector<64x8xf32>, vector<64x8xf32>, vector<64x8xf32> -> vector<64x72xf32>
    %292 = arith.truncf %291 : vector<64x72xf32> to vector<64x72xbf16>
    %cst_107 = arith.constant dense<0.000000e+00> : vector<64x8xf32>
    %293 = tpu.matmul %292, %27, %cst_107 {dimension_numbers = #tpu.dot_dimension_numbers<[1], [0], [0], [1], [0, 0, 1, 1], [], []>} : vector<64x72xbf16>, vector<72x8xbf16>, vector<64x8xf32> -> vector<64x8xf32>
    %294 = vector.broadcast %28 : vector<1x8xf32> to vector<64x8xf32>
    %295 = arith.addf %293, %294 : vector<64x8xf32>
    %cst_108 = arith.constant 0.000000e+00 : f32
    %296 = vector.broadcast %cst_108 : f32 to vector<64x8xf32>
    %297 = arith.maximumf %295, %296 : vector<64x8xf32>
    %c0_109 = arith.constant 0 : index
    %298 = arith.index_cast %255 : i32 to index
    %c0_110 = arith.constant 0 : index
    %299 = vector.load %arg1[%c0_109, %298, %c0_110] : memref<1x256x36xbf16, #tpu.memory_space<vmem>>, vector<1x64x36xbf16>
    %300 = vector.shape_cast %299 : vector<1x64x36xbf16> to vector<64x36xbf16>
    %cst_111 = arith.constant dense<0.000000e+00> : vector<64x8xf32>
    %301 = tpu.matmul %300, %29, %cst_111 {dimension_numbers = #tpu.dot_dimension_numbers<[1], [0], [0], [1], [0, 0, 1, 1], [], []>} : vector<64x36xbf16>, vector<36x8xbf16>, vector<64x8xf32> -> vector<64x8xf32>
    %302 = vector.broadcast %30 : vector<1x8xf32> to vector<64x8xf32>
    %303 = arith.addf %301, %302 : vector<64x8xf32>
    %304 = arith.addf %297, %303 : vector<64x8xf32>
    %cst_112 = arith.constant 0.000000e+00 : f32
    %305 = vector.broadcast %cst_112 : f32 to vector<64x8xf32>
    %306 = arith.maximumf %304, %305 : vector<64x8xf32>
    %c0_113 = arith.constant 0 : index
    %307 = arith.index_cast %255 : i32 to index
    %c0_114 = arith.constant 0 : index
    %308 = vector.load %arg8[%c0_113, %307, %c0_114] : memref<1x256x8xf32, #tpu.memory_space<vmem>>, vector<1x64x8xf32>
    %309 = vector.shape_cast %308 : vector<1x64x8xf32> to vector<64x8xf32>
    %310 = vector.shape_cast %306 : vector<64x8xf32> to vector<1x64x8xf32>
    tpu.vector_store %arg8[%c0_113, %307, %c0_114], %310 {strides = array<i32>} : memref<1x256x8xf32, #tpu.memory_space<vmem>>, vector<1x64x8xf32>,
    %c4_i32_115 = arith.constant 4 : i32
    return
  }
  func.func @transform_0(%arg0: i32) -> (i32, i32, i32) {
    %c0_i32 = arith.constant 0 : i32
    %c0_i32_0 = arith.constant 0 : i32
    %c0_i32_1 = arith.constant 0 : i32
    return %arg0, %c0_i32, %c0_i32_0 : i32, i32, i32
  }
  func.func @transform_1(%arg0: i32) -> (i32, i32) {
    %c0_i32 = arith.constant 0 : i32
    %c0_i32_0 = arith.constant 0 : i32
    %c0_i32_1 = arith.constant 0 : i32
    return %c0_i32, %c0_i32_0 : i32, i32
  }
  func.func @transform_2(%arg0: i32) -> (i32, i32) {
    %c0_i32 = arith.constant 0 : i32
    %c0_i32_0 = arith.constant 0 : i32
    %c0_i32_1 = arith.constant 0 : i32
    return %c0_i32, %c0_i32_0 : i32, i32
  }
  func.func @transform_3(%arg0: i32) -> (i32, i32) {
    %c0_i32 = arith.constant 0 : i32
    %c0_i32_0 = arith.constant 0 : i32
    %c0_i32_1 = arith.constant 0 : i32
    return %c0_i32, %c0_i32_0 : i32, i32
  }
  func.func @transform_4(%arg0: i32) -> (i32, i32) {
    %c0_i32 = arith.constant 0 : i32
    %c0_i32_0 = arith.constant 0 : i32
    %c0_i32_1 = arith.constant 0 : i32
    return %c0_i32, %c0_i32_0 : i32, i32
  }
  func.func @transform_5(%arg0: i32) -> (i32, i32) {
    %c0_i32 = arith.constant 0 : i32
    %c0_i32_0 = arith.constant 0 : i32
    %c0_i32_1 = arith.constant 0 : i32
    return %c0_i32, %c0_i32_0 : i32, i32
  }
  func.func @transform_6(%arg0: i32) -> (i32, i32) {
    %c0_i32 = arith.constant 0 : i32
    %c0_i32_0 = arith.constant 0 : i32
    %c0_i32_1 = arith.constant 0 : i32
    return %c0_i32, %c0_i32_0 : i32, i32
  }
  func.func @transform_7(%arg0: i32) -> (i32, i32, i32) {
    %c0_i32 = arith.constant 0 : i32
    %c0_i32_0 = arith.constant 0 : i32
    %c0_i32_1 = arith.constant 0 : i32
    return %arg0, %c0_i32, %c0_i32_0 : i32, i32, i32
  }
}

module attributes {stable_mosaic.version = 11 : i64} {
  func.func @_resblock_kernel(%arg0: i32, %arg1: memref<1x256x36xbf16, #tpu.memory_space<vmem>>, %arg2: memref<36x8xbf16, #tpu.memory_space<vmem>>, %arg3: memref<1x8xf32, #tpu.memory_space<vmem>>, %arg4: memref<72x8xbf16, #tpu.memory_space<vmem>>, %arg5: memref<1x8xf32, #tpu.memory_space<vmem>>, %arg6: memref<36x8xbf16, #tpu.memory_space<vmem>>, %arg7: memref<1x8xf32, #tpu.memory_space<vmem>>, %arg8: memref<1x256x8xf32, #tpu.memory_space<vmem>>, %arg9: memref<304x8xf32, #tpu.memory_space<vmem>>) attributes {dimension_semantics = [#tpu.dimension_semantics<parallel>], iteration_bounds = array<i64: 2>, scalar_prefetch = 0 : i64, scratch_operands = 1 : i64, tpu.core_type = #tpu.core_type<tc>, window_params = [{transform_indices = @transform_0, window_bounds = array<i64: 1, 256, 36>}, {pipeline_mode = #tpu.pipeline_mode<synchronous>, transform_indices = @transform_1, window_bounds = array<i64: 36, 8>}, {pipeline_mode = #tpu.pipeline_mode<synchronous>, transform_indices = @transform_2, window_bounds = array<i64: 1, 8>}, {pipeline_mode = #tpu.pipeline_mode<synchronous>, transform_indices = @transform_3, window_bounds = array<i64: 72, 8>}, {pipeline_mode = #tpu.pipeline_mode<synchronous>, transform_indices = @transform_4, window_bounds = array<i64: 1, 8>}, {pipeline_mode = #tpu.pipeline_mode<synchronous>, transform_indices = @transform_5, window_bounds = array<i64: 36, 8>}, {pipeline_mode = #tpu.pipeline_mode<synchronous>, transform_indices = @transform_6, window_bounds = array<i64: 1, 8>}, {transform_indices = @transform_7, window_bounds = array<i64: 1, 256, 8>}]} {
    %cst = arith.constant 0.000000e+00 : f32
    %0 = vector.broadcast %cst : f32 to vector<24x8xf32>
    %c0 = arith.constant 0 : index
    %c0_0 = arith.constant 0 : index
    %1 = vector.load %arg9[%c0, %c0_0] : memref<304x8xf32, #tpu.memory_space<vmem>>, vector<24x8xf32>
    tpu.vector_store %arg9[%c0, %c0_0], %0 {strides = array<i32>} : memref<304x8xf32, #tpu.memory_space<vmem>>, vector<24x8xf32>,
    %cst_1 = arith.constant 0.000000e+00 : f32
    %2 = vector.broadcast %cst_1 : f32 to vector<24x8xf32>
    %c280 = arith.constant 280 : index
    %c0_2 = arith.constant 0 : index
    %3 = vector.load %arg9[%c280, %c0_2] : memref<304x8xf32, #tpu.memory_space<vmem>>, vector<24x8xf32>
    tpu.vector_store %arg9[%c280, %c0_2], %2 {strides = array<i32>} : memref<304x8xf32, #tpu.memory_space<vmem>>, vector<24x8xf32>,
    %4 = tpu.iota {dimensions = array<i32: 0>} : vector<64x1xi32>
    %c16_i32 = arith.constant 16 : i32
    %c0_i32 = arith.constant 0 : i32
    %5 = arith.cmpi eq, %c16_i32, %c0_i32 : i32
    %c1_i32 = arith.constant 1 : i32
    %6 = arith.select %5, %c1_i32, %c16_i32 : i32
    %7 = vector.broadcast %6 : i32 to vector<64x1xi32>
    %8 = arith.remsi %4, %7 : vector<64x1xi32>
    %c0_i32_3 = arith.constant 0 : i32
    %9 = vector.broadcast %c0_i32_3 : i32 to vector<64x1xi32>
    %10 = arith.cmpi ne, %8, %9 : vector<64x1xi32>
    %c0_i32_4 = arith.constant 0 : i32
    %11 = vector.broadcast %c0_i32_4 : i32 to vector<64x1xi32>
    %12 = arith.cmpi slt, %8, %11 : vector<64x1xi32>
    %c0_i32_5 = arith.constant 0 : i32
    %13 = arith.cmpi slt, %6, %c0_i32_5 : i32
    %14 = vector.broadcast %13 : i1 to vector<64x1xi1>
    %15 = vector.broadcast %14 : vector<64x1xi1> to vector<64x1xi1>
    %16 = arith.xori %12, %15 : vector<64x1xi1>
    %17 = arith.andi %16, %10 : vector<64x1xi1>
    %18 = vector.broadcast %6 : i32 to vector<64x1xi32>
    %19 = arith.addi %8, %18 : vector<64x1xi32>
    %20 = arith.select %17, %19, %8 : vector<64x1xi1>, vector<64x1xi32>
    %c0_i32_6 = arith.constant 0 : i32
    %21 = vector.broadcast %c0_i32_6 : i32 to vector<64x1xi32>
    %22 = arith.cmpi sgt, %20, %21 : vector<64x1xi32>
    %c15_i32 = arith.constant 15 : i32
    %23 = vector.broadcast %c15_i32 : i32 to vector<64x1xi32>
    %24 = arith.cmpi slt, %20, %23 : vector<64x1xi32>
    %c0_7 = arith.constant 0 : index
    %c0_8 = arith.constant 0 : index
    %25 = vector.load %arg2[%c0_7, %c0_8] : memref<36x8xbf16, #tpu.memory_space<vmem>>, vector<36x8xbf16>
    %c0_9 = arith.constant 0 : index
    %c0_10 = arith.constant 0 : index
    %26 = vector.load %arg3[%c0_9, %c0_10] : memref<1x8xf32, #tpu.memory_space<vmem>>, vector<1x8xf32>
    %c0_11 = arith.constant 0 : index
    %c0_12 = arith.constant 0 : index
    %27 = vector.load %arg4[%c0_11, %c0_12] : memref<72x8xbf16, #tpu.memory_space<vmem>>, vector<72x8xbf16>
    %c0_13 = arith.constant 0 : index
    %c0_14 = arith.constant 0 : index
    %28 = vector.load %arg5[%c0_13, %c0_14] : memref<1x8xf32, #tpu.memory_space<vmem>>, vector<1x8xf32>
    %c0_15 = arith.constant 0 : index
    %c0_16 = arith.constant 0 : index
    %29 = vector.load %arg6[%c0_15, %c0_16] : memref<36x8xbf16, #tpu.memory_space<vmem>>, vector<36x8xbf16>
    %c0_17 = arith.constant 0 : index
    %c0_18 = arith.constant 0 : index
    %30 = vector.load %arg7[%c0_17, %c0_18] : memref<1x8xf32, #tpu.memory_space<vmem>>, vector<1x8xf32>
    %c0_i32_19 = arith.constant 0 : i32
    %c64_i32 = arith.constant 64 : i32
    %31 = arith.muli %c0_i32_19, %c64_i32 : i32
    %32 = tpu.assume_multiple %31, 64 : i32
    %c0_20 = arith.constant 0 : index
    %33 = arith.index_cast %32 : i32 to index
    %c0_21 = arith.constant 0 : index
    %34 = vector.load %arg1[%c0_20, %33, %c0_21] : memref<1x256x36xbf16, #tpu.memory_space<vmem>>, vector<1x64x36xbf16>
    %35 = vector.shape_cast %34 : vector<1x64x36xbf16> to vector<64x36xbf16>
    %cst_22 = arith.constant dense<0.000000e+00> : vector<64x8xf32>
    %36 = tpu.matmul %35, %25, %cst_22 {dimension_numbers = #tpu.dot_dimension_numbers<[1], [0], [0], [1], [0, 0, 1, 1], [], []>} : vector<64x36xbf16>, vector<36x8xbf16>, vector<64x8xf32> -> vector<64x8xf32>
    %37 = vector.broadcast %26 : vector<1x8xf32> to vector<64x8xf32>
    %38 = arith.addf %36, %37 : vector<64x8xf32>
    %cst_23 = arith.constant 0.000000e+00 : f32
    %39 = vector.broadcast %cst_23 : f32 to vector<64x8xf32>
    %40 = arith.maximumf %38, %39 : vector<64x8xf32>
    %c24_i32 = arith.constant 24 : i32
    %41 = arith.addi %c24_i32, %32 : i32
    %42 = arith.index_cast %41 : i32 to index
    %c0_24 = arith.constant 0 : index
    %43 = vector.load %arg9[%42, %c0_24] : memref<304x8xf32, #tpu.memory_space<vmem>>, vector<64x8xf32>
    tpu.vector_store %arg9[%42, %c0_24], %40 {strides = array<i32>} : memref<304x8xf32, #tpu.memory_space<vmem>>, vector<64x8xf32>,
    %c1_i32_25 = arith.constant 1 : i32
    %c64_i32_26 = arith.constant 64 : i32
    %44 = arith.muli %c1_i32_25, %c64_i32_26 : i32
    %45 = tpu.assume_multiple %44, 64 : i32
    %c0_27 = arith.constant 0 : index
    %46 = arith.index_cast %45 : i32 to index
    %c0_28 = arith.constant 0 : index
    %47 = vector.load %arg1[%c0_27, %46, %c0_28] : memref<1x256x36xbf16, #tpu.memory_space<vmem>>, vector<1x64x36xbf16>
    %48 = vector.shape_cast %47 : vector<1x64x36xbf16> to vector<64x36xbf16>
    %cst_29 = arith.constant dense<0.000000e+00> : vector<64x8xf32>
    %49 = tpu.matmul %48, %25, %cst_29 {dimension_numbers = #tpu.dot_dimension_numbers<[1], [0], [0], [1], [0, 0, 1, 1], [], []>} : vector<64x36xbf16>, vector<36x8xbf16>, vector<64x8xf32> -> vector<64x8xf32>
    %50 = vector.broadcast %26 : vector<1x8xf32> to vector<64x8xf32>
    %51 = arith.addf %49, %50 : vector<64x8xf32>
    %cst_30 = arith.constant 0.000000e+00 : f32
    %52 = vector.broadcast %cst_30 : f32 to vector<64x8xf32>
    %53 = arith.maximumf %51, %52 : vector<64x8xf32>
    %c24_i32_31 = arith.constant 24 : i32
    %54 = arith.addi %c24_i32_31, %45 : i32
    %55 = arith.index_cast %54 : i32 to index
    %c0_32 = arith.constant 0 : index
    %56 = vector.load %arg9[%55, %c0_32] : memref<304x8xf32, #tpu.memory_space<vmem>>, vector<64x8xf32>
    tpu.vector_store %arg9[%55, %c0_32], %53 {strides = array<i32>} : memref<304x8xf32, #tpu.memory_space<vmem>>, vector<64x8xf32>,
    %c2_i32 = arith.constant 2 : i32
    %c64_i32_33 = arith.constant 64 : i32
    %57 = arith.muli %c2_i32, %c64_i32_33 : i32
    %58 = tpu.assume_multiple %57, 64 : i32
    %c0_34 = arith.constant 0 : index
    %59 = arith.index_cast %58 : i32 to index
    %c0_35 = arith.constant 0 : index
    %60 = vector.load %arg1[%c0_34, %59, %c0_35] : memref<1x256x36xbf16, #tpu.memory_space<vmem>>, vector<1x64x36xbf16>
    %61 = vector.shape_cast %60 : vector<1x64x36xbf16> to vector<64x36xbf16>
    %cst_36 = arith.constant dense<0.000000e+00> : vector<64x8xf32>
    %62 = tpu.matmul %61, %25, %cst_36 {dimension_numbers = #tpu.dot_dimension_numbers<[1], [0], [0], [1], [0, 0, 1, 1], [], []>} : vector<64x36xbf16>, vector<36x8xbf16>, vector<64x8xf32> -> vector<64x8xf32>
    %63 = vector.broadcast %26 : vector<1x8xf32> to vector<64x8xf32>
    %64 = arith.addf %62, %63 : vector<64x8xf32>
    %cst_37 = arith.constant 0.000000e+00 : f32
    %65 = vector.broadcast %cst_37 : f32 to vector<64x8xf32>
    %66 = arith.maximumf %64, %65 : vector<64x8xf32>
    %c24_i32_38 = arith.constant 24 : i32
    %67 = arith.addi %c24_i32_38, %58 : i32
    %68 = arith.index_cast %67 : i32 to index
    %c0_39 = arith.constant 0 : index
    %69 = vector.load %arg9[%68, %c0_39] : memref<304x8xf32, #tpu.memory_space<vmem>>, vector<64x8xf32>
    tpu.vector_store %arg9[%68, %c0_39], %66 {strides = array<i32>} : memref<304x8xf32, #tpu.memory_space<vmem>>, vector<64x8xf32>,
    %c3_i32 = arith.constant 3 : i32
    %c64_i32_40 = arith.constant 64 : i32
    %70 = arith.muli %c3_i32, %c64_i32_40 : i32
    %71 = tpu.assume_multiple %70, 64 : i32
    %c0_41 = arith.constant 0 : index
    %72 = arith.index_cast %71 : i32 to index
    %c0_42 = arith.constant 0 : index
    %73 = vector.load %arg1[%c0_41, %72, %c0_42] : memref<1x256x36xbf16, #tpu.memory_space<vmem>>, vector<1x64x36xbf16>
    %74 = vector.shape_cast %73 : vector<1x64x36xbf16> to vector<64x36xbf16>
    %cst_43 = arith.constant dense<0.000000e+00> : vector<64x8xf32>
    %75 = tpu.matmul %74, %25, %cst_43 {dimension_numbers = #tpu.dot_dimension_numbers<[1], [0], [0], [1], [0, 0, 1, 1], [], []>} : vector<64x36xbf16>, vector<36x8xbf16>, vector<64x8xf32> -> vector<64x8xf32>
    %76 = vector.broadcast %26 : vector<1x8xf32> to vector<64x8xf32>
    %77 = arith.addf %75, %76 : vector<64x8xf32>
    %cst_44 = arith.constant 0.000000e+00 : f32
    %78 = vector.broadcast %cst_44 : f32 to vector<64x8xf32>
    %79 = arith.maximumf %77, %78 : vector<64x8xf32>
    %c24_i32_45 = arith.constant 24 : i32
    %80 = arith.addi %c24_i32_45, %71 : i32
    %81 = arith.index_cast %80 : i32 to index
    %c0_46 = arith.constant 0 : index
    %82 = vector.load %arg9[%81, %c0_46] : memref<304x8xf32, #tpu.memory_space<vmem>>, vector<64x8xf32>
    tpu.vector_store %arg9[%81, %c0_46], %79 {strides = array<i32>} : memref<304x8xf32, #tpu.memory_space<vmem>>, vector<64x8xf32>,
    %c4_i32 = arith.constant 4 : i32
    %c0_i32_47 = arith.constant 0 : i32
    %c64_i32_48 = arith.constant 64 : i32
    %83 = arith.muli %c0_i32_47, %c64_i32_48 : i32
    %84 = tpu.assume_multiple %83, 64 : i32
    %85 = arith.index_cast %84 : i32 to index
    %c0_49 = arith.constant 0 : index
    %86 = vector.load %arg9[%85, %c0_49] : memref<304x8xf32, #tpu.memory_space<vmem>>, vector<112x8xf32>
    %87 = vector.extract_strided_slice %86 {offsets = [7, 0], sizes = [64, 8], strides = [1, 1]} : vector<112x8xf32> to vector<64x8xf32>
    %cst_50 = arith.constant 0.000000e+00 : f32
    %88 = vector.shape_cast %22 : vector<64x1xi1> to vector<64x1xi1>
    %89 = vector.broadcast %88 : vector<64x1xi1> to vector<64x8xi1>
    %90 = vector.broadcast %cst_50 : f32 to vector<64x8xf32>
    %91 = arith.select %89, %87, %90 : vector<64x8xi1>, vector<64x8xf32>
    %92 = vector.extract_strided_slice %86 {offsets = [8, 0], sizes = [64, 8], strides = [1, 1]} : vector<112x8xf32> to vector<64x8xf32>
    %93 = vector.extract_strided_slice %86 {offsets = [9, 0], sizes = [64, 8], strides = [1, 1]} : vector<112x8xf32> to vector<64x8xf32>
    %cst_51 = arith.constant 0.000000e+00 : f32
    %94 = vector.shape_cast %24 : vector<64x1xi1> to vector<64x1xi1>
    %95 = vector.broadcast %94 : vector<64x1xi1> to vector<64x8xi1>
    %96 = vector.broadcast %cst_51 : f32 to vector<64x8xf32>
    %97 = arith.select %95, %93, %96 : vector<64x8xi1>, vector<64x8xf32>
    %98 = vector.extract_strided_slice %86 {offsets = [23, 0], sizes = [64, 8], strides = [1, 1]} : vector<112x8xf32> to vector<64x8xf32>
    %cst_52 = arith.constant 0.000000e+00 : f32
    %99 = vector.shape_cast %22 : vector<64x1xi1> to vector<64x1xi1>
    %100 = vector.broadcast %99 : vector<64x1xi1> to vector<64x8xi1>
    %101 = vector.broadcast %cst_52 : f32 to vector<64x8xf32>
    %102 = arith.select %100, %98, %101 : vector<64x8xi1>, vector<64x8xf32>
    %103 = vector.extract_strided_slice %86 {offsets = [24, 0], sizes = [64, 8], strides = [1, 1]} : vector<112x8xf32> to vector<64x8xf32>
    %104 = vector.extract_strided_slice %86 {offsets = [25, 0], sizes = [64, 8], strides = [1, 1]} : vector<112x8xf32> to vector<64x8xf32>
    %cst_53 = arith.constant 0.000000e+00 : f32
    %105 = vector.shape_cast %24 : vector<64x1xi1> to vector<64x1xi1>
    %106 = vector.broadcast %105 : vector<64x1xi1> to vector<64x8xi1>
    %107 = vector.broadcast %cst_53 : f32 to vector<64x8xf32>
    %108 = arith.select %106, %104, %107 : vector<64x8xi1>, vector<64x8xf32>
    %109 = vector.extract_strided_slice %86 {offsets = [39, 0], sizes = [64, 8], strides = [1, 1]} : vector<112x8xf32> to vector<64x8xf32>
    %cst_54 = arith.constant 0.000000e+00 : f32
    %110 = vector.shape_cast %22 : vector<64x1xi1> to vector<64x1xi1>
    %111 = vector.broadcast %110 : vector<64x1xi1> to vector<64x8xi1>
    %112 = vector.broadcast %cst_54 : f32 to vector<64x8xf32>
    %113 = arith.select %111, %109, %112 : vector<64x8xi1>, vector<64x8xf32>
    %114 = vector.extract_strided_slice %86 {offsets = [40, 0], sizes = [64, 8], strides = [1, 1]} : vector<112x8xf32> to vector<64x8xf32>
    %115 = vector.extract_strided_slice %86 {offsets = [41, 0], sizes = [64, 8], strides = [1, 1]} : vector<112x8xf32> to vector<64x8xf32>
    %cst_55 = arith.constant 0.000000e+00 : f32
    %116 = vector.shape_cast %24 : vector<64x1xi1> to vector<64x1xi1>
    %117 = vector.broadcast %116 : vector<64x1xi1> to vector<64x8xi1>
    %118 = vector.broadcast %cst_55 : f32 to vector<64x8xf32>
    %119 = arith.select %117, %115, %118 : vector<64x8xi1>, vector<64x8xf32>
    %120 = tpu.concatenate %91, %92, %97, %102, %103, %108, %113, %114, %119 in 1 : vector<64x8xf32>, vector<64x8xf32>, vector<64x8xf32>, vector<64x8xf32>, vector<64x8xf32>, vector<64x8xf32>, vector<64x8xf32>, vector<64x8xf32>, vector<64x8xf32> -> vector<64x72xf32>
    %121 = arith.truncf %120 : vector<64x72xf32> to vector<64x72xbf16>
    %cst_56 = arith.constant dense<0.000000e+00> : vector<64x8xf32>
    %122 = tpu.matmul %121, %27, %cst_56 {dimension_numbers = #tpu.dot_dimension_numbers<[1], [0], [0], [1], [0, 0, 1, 1], [], []>} : vector<64x72xbf16>, vector<72x8xbf16>, vector<64x8xf32> -> vector<64x8xf32>
    %123 = vector.broadcast %28 : vector<1x8xf32> to vector<64x8xf32>
    %124 = arith.addf %122, %123 : vector<64x8xf32>
    %cst_57 = arith.constant 0.000000e+00 : f32
    %125 = vector.broadcast %cst_57 : f32 to vector<64x8xf32>
    %126 = arith.maximumf %124, %125 : vector<64x8xf32>
    %c0_58 = arith.constant 0 : index
    %127 = arith.index_cast %84 : i32 to index
    %c0_59 = arith.constant 0 : index
    %128 = vector.load %arg1[%c0_58, %127, %c0_59] : memref<1x256x36xbf16, #tpu.memory_space<vmem>>, vector<1x64x36xbf16>
    %129 = vector.shape_cast %128 : vector<1x64x36xbf16> to vector<64x36xbf16>
    %cst_60 = arith.constant dense<0.000000e+00> : vector<64x8xf32>
    %130 = tpu.matmul %129, %29, %cst_60 {dimension_numbers = #tpu.dot_dimension_numbers<[1], [0], [0], [1], [0, 0, 1, 1], [], []>} : vector<64x36xbf16>, vector<36x8xbf16>, vector<64x8xf32> -> vector<64x8xf32>
    %131 = vector.broadcast %30 : vector<1x8xf32> to vector<64x8xf32>
    %132 = arith.addf %130, %131 : vector<64x8xf32>
    %133 = arith.addf %126, %132 : vector<64x8xf32>
    %cst_61 = arith.constant 0.000000e+00 : f32
    %134 = vector.broadcast %cst_61 : f32 to vector<64x8xf32>
    %135 = arith.maximumf %133, %134 : vector<64x8xf32>
    %c0_62 = arith.constant 0 : index
    %136 = arith.index_cast %84 : i32 to index
    %c0_63 = arith.constant 0 : index
    %137 = vector.load %arg8[%c0_62, %136, %c0_63] : memref<1x256x8xf32, #tpu.memory_space<vmem>>, vector<1x64x8xf32>
    %138 = vector.shape_cast %137 : vector<1x64x8xf32> to vector<64x8xf32>
    %139 = vector.shape_cast %135 : vector<64x8xf32> to vector<1x64x8xf32>
    tpu.vector_store %arg8[%c0_62, %136, %c0_63], %139 {strides = array<i32>} : memref<1x256x8xf32, #tpu.memory_space<vmem>>, vector<1x64x8xf32>,
    %c1_i32_64 = arith.constant 1 : i32
    %c64_i32_65 = arith.constant 64 : i32
    %140 = arith.muli %c1_i32_64, %c64_i32_65 : i32
    %141 = tpu.assume_multiple %140, 64 : i32
    %142 = arith.index_cast %141 : i32 to index
    %c0_66 = arith.constant 0 : index
    %143 = vector.load %arg9[%142, %c0_66] : memref<304x8xf32, #tpu.memory_space<vmem>>, vector<112x8xf32>
    %144 = vector.extract_strided_slice %143 {offsets = [7, 0], sizes = [64, 8], strides = [1, 1]} : vector<112x8xf32> to vector<64x8xf32>
    %cst_67 = arith.constant 0.000000e+00 : f32
    %145 = vector.shape_cast %22 : vector<64x1xi1> to vector<64x1xi1>
    %146 = vector.broadcast %145 : vector<64x1xi1> to vector<64x8xi1>
    %147 = vector.broadcast %cst_67 : f32 to vector<64x8xf32>
    %148 = arith.select %146, %144, %147 : vector<64x8xi1>, vector<64x8xf32>
    %149 = vector.extract_strided_slice %143 {offsets = [8, 0], sizes = [64, 8], strides = [1, 1]} : vector<112x8xf32> to vector<64x8xf32>
    %150 = vector.extract_strided_slice %143 {offsets = [9, 0], sizes = [64, 8], strides = [1, 1]} : vector<112x8xf32> to vector<64x8xf32>
    %cst_68 = arith.constant 0.000000e+00 : f32
    %151 = vector.shape_cast %24 : vector<64x1xi1> to vector<64x1xi1>
    %152 = vector.broadcast %151 : vector<64x1xi1> to vector<64x8xi1>
    %153 = vector.broadcast %cst_68 : f32 to vector<64x8xf32>
    %154 = arith.select %152, %150, %153 : vector<64x8xi1>, vector<64x8xf32>
    %155 = vector.extract_strided_slice %143 {offsets = [23, 0], sizes = [64, 8], strides = [1, 1]} : vector<112x8xf32> to vector<64x8xf32>
    %cst_69 = arith.constant 0.000000e+00 : f32
    %156 = vector.shape_cast %22 : vector<64x1xi1> to vector<64x1xi1>
    %157 = vector.broadcast %156 : vector<64x1xi1> to vector<64x8xi1>
    %158 = vector.broadcast %cst_69 : f32 to vector<64x8xf32>
    %159 = arith.select %157, %155, %158 : vector<64x8xi1>, vector<64x8xf32>
    %160 = vector.extract_strided_slice %143 {offsets = [24, 0], sizes = [64, 8], strides = [1, 1]} : vector<112x8xf32> to vector<64x8xf32>
    %161 = vector.extract_strided_slice %143 {offsets = [25, 0], sizes = [64, 8], strides = [1, 1]} : vector<112x8xf32> to vector<64x8xf32>
    %cst_70 = arith.constant 0.000000e+00 : f32
    %162 = vector.shape_cast %24 : vector<64x1xi1> to vector<64x1xi1>
    %163 = vector.broadcast %162 : vector<64x1xi1> to vector<64x8xi1>
    %164 = vector.broadcast %cst_70 : f32 to vector<64x8xf32>
    %165 = arith.select %163, %161, %164 : vector<64x8xi1>, vector<64x8xf32>
    %166 = vector.extract_strided_slice %143 {offsets = [39, 0], sizes = [64, 8], strides = [1, 1]} : vector<112x8xf32> to vector<64x8xf32>
    %cst_71 = arith.constant 0.000000e+00 : f32
    %167 = vector.shape_cast %22 : vector<64x1xi1> to vector<64x1xi1>
    %168 = vector.broadcast %167 : vector<64x1xi1> to vector<64x8xi1>
    %169 = vector.broadcast %cst_71 : f32 to vector<64x8xf32>
    %170 = arith.select %168, %166, %169 : vector<64x8xi1>, vector<64x8xf32>
    %171 = vector.extract_strided_slice %143 {offsets = [40, 0], sizes = [64, 8], strides = [1, 1]} : vector<112x8xf32> to vector<64x8xf32>
    %172 = vector.extract_strided_slice %143 {offsets = [41, 0], sizes = [64, 8], strides = [1, 1]} : vector<112x8xf32> to vector<64x8xf32>
    %cst_72 = arith.constant 0.000000e+00 : f32
    %173 = vector.shape_cast %24 : vector<64x1xi1> to vector<64x1xi1>
    %174 = vector.broadcast %173 : vector<64x1xi1> to vector<64x8xi1>
    %175 = vector.broadcast %cst_72 : f32 to vector<64x8xf32>
    %176 = arith.select %174, %172, %175 : vector<64x8xi1>, vector<64x8xf32>
    %177 = tpu.concatenate %148, %149, %154, %159, %160, %165, %170, %171, %176 in 1 : vector<64x8xf32>, vector<64x8xf32>, vector<64x8xf32>, vector<64x8xf32>, vector<64x8xf32>, vector<64x8xf32>, vector<64x8xf32>, vector<64x8xf32>, vector<64x8xf32> -> vector<64x72xf32>
    %178 = arith.truncf %177 : vector<64x72xf32> to vector<64x72xbf16>
    %cst_73 = arith.constant dense<0.000000e+00> : vector<64x8xf32>
    %179 = tpu.matmul %178, %27, %cst_73 {dimension_numbers = #tpu.dot_dimension_numbers<[1], [0], [0], [1], [0, 0, 1, 1], [], []>} : vector<64x72xbf16>, vector<72x8xbf16>, vector<64x8xf32> -> vector<64x8xf32>
    %180 = vector.broadcast %28 : vector<1x8xf32> to vector<64x8xf32>
    %181 = arith.addf %179, %180 : vector<64x8xf32>
    %cst_74 = arith.constant 0.000000e+00 : f32
    %182 = vector.broadcast %cst_74 : f32 to vector<64x8xf32>
    %183 = arith.maximumf %181, %182 : vector<64x8xf32>
    %c0_75 = arith.constant 0 : index
    %184 = arith.index_cast %141 : i32 to index
    %c0_76 = arith.constant 0 : index
    %185 = vector.load %arg1[%c0_75, %184, %c0_76] : memref<1x256x36xbf16, #tpu.memory_space<vmem>>, vector<1x64x36xbf16>
    %186 = vector.shape_cast %185 : vector<1x64x36xbf16> to vector<64x36xbf16>
    %cst_77 = arith.constant dense<0.000000e+00> : vector<64x8xf32>
    %187 = tpu.matmul %186, %29, %cst_77 {dimension_numbers = #tpu.dot_dimension_numbers<[1], [0], [0], [1], [0, 0, 1, 1], [], []>} : vector<64x36xbf16>, vector<36x8xbf16>, vector<64x8xf32> -> vector<64x8xf32>
    %188 = vector.broadcast %30 : vector<1x8xf32> to vector<64x8xf32>
    %189 = arith.addf %187, %188 : vector<64x8xf32>
    %190 = arith.addf %183, %189 : vector<64x8xf32>
    %cst_78 = arith.constant 0.000000e+00 : f32
    %191 = vector.broadcast %cst_78 : f32 to vector<64x8xf32>
    %192 = arith.maximumf %190, %191 : vector<64x8xf32>
    %c0_79 = arith.constant 0 : index
    %193 = arith.index_cast %141 : i32 to index
    %c0_80 = arith.constant 0 : index
    %194 = vector.load %arg8[%c0_79, %193, %c0_80] : memref<1x256x8xf32, #tpu.memory_space<vmem>>, vector<1x64x8xf32>
    %195 = vector.shape_cast %194 : vector<1x64x8xf32> to vector<64x8xf32>
    %196 = vector.shape_cast %192 : vector<64x8xf32> to vector<1x64x8xf32>
    tpu.vector_store %arg8[%c0_79, %193, %c0_80], %196 {strides = array<i32>} : memref<1x256x8xf32, #tpu.memory_space<vmem>>, vector<1x64x8xf32>,
    %c2_i32_81 = arith.constant 2 : i32
    %c64_i32_82 = arith.constant 64 : i32
    %197 = arith.muli %c2_i32_81, %c64_i32_82 : i32
    %198 = tpu.assume_multiple %197, 64 : i32
    %199 = arith.index_cast %198 : i32 to index
    %c0_83 = arith.constant 0 : index
    %200 = vector.load %arg9[%199, %c0_83] : memref<304x8xf32, #tpu.memory_space<vmem>>, vector<112x8xf32>
    %201 = vector.extract_strided_slice %200 {offsets = [7, 0], sizes = [64, 8], strides = [1, 1]} : vector<112x8xf32> to vector<64x8xf32>
    %cst_84 = arith.constant 0.000000e+00 : f32
    %202 = vector.shape_cast %22 : vector<64x1xi1> to vector<64x1xi1>
    %203 = vector.broadcast %202 : vector<64x1xi1> to vector<64x8xi1>
    %204 = vector.broadcast %cst_84 : f32 to vector<64x8xf32>
    %205 = arith.select %203, %201, %204 : vector<64x8xi1>, vector<64x8xf32>
    %206 = vector.extract_strided_slice %200 {offsets = [8, 0], sizes = [64, 8], strides = [1, 1]} : vector<112x8xf32> to vector<64x8xf32>
    %207 = vector.extract_strided_slice %200 {offsets = [9, 0], sizes = [64, 8], strides = [1, 1]} : vector<112x8xf32> to vector<64x8xf32>
    %cst_85 = arith.constant 0.000000e+00 : f32
    %208 = vector.shape_cast %24 : vector<64x1xi1> to vector<64x1xi1>
    %209 = vector.broadcast %208 : vector<64x1xi1> to vector<64x8xi1>
    %210 = vector.broadcast %cst_85 : f32 to vector<64x8xf32>
    %211 = arith.select %209, %207, %210 : vector<64x8xi1>, vector<64x8xf32>
    %212 = vector.extract_strided_slice %200 {offsets = [23, 0], sizes = [64, 8], strides = [1, 1]} : vector<112x8xf32> to vector<64x8xf32>
    %cst_86 = arith.constant 0.000000e+00 : f32
    %213 = vector.shape_cast %22 : vector<64x1xi1> to vector<64x1xi1>
    %214 = vector.broadcast %213 : vector<64x1xi1> to vector<64x8xi1>
    %215 = vector.broadcast %cst_86 : f32 to vector<64x8xf32>
    %216 = arith.select %214, %212, %215 : vector<64x8xi1>, vector<64x8xf32>
    %217 = vector.extract_strided_slice %200 {offsets = [24, 0], sizes = [64, 8], strides = [1, 1]} : vector<112x8xf32> to vector<64x8xf32>
    %218 = vector.extract_strided_slice %200 {offsets = [25, 0], sizes = [64, 8], strides = [1, 1]} : vector<112x8xf32> to vector<64x8xf32>
    %cst_87 = arith.constant 0.000000e+00 : f32
    %219 = vector.shape_cast %24 : vector<64x1xi1> to vector<64x1xi1>
    %220 = vector.broadcast %219 : vector<64x1xi1> to vector<64x8xi1>
    %221 = vector.broadcast %cst_87 : f32 to vector<64x8xf32>
    %222 = arith.select %220, %218, %221 : vector<64x8xi1>, vector<64x8xf32>
    %223 = vector.extract_strided_slice %200 {offsets = [39, 0], sizes = [64, 8], strides = [1, 1]} : vector<112x8xf32> to vector<64x8xf32>
    %cst_88 = arith.constant 0.000000e+00 : f32
    %224 = vector.shape_cast %22 : vector<64x1xi1> to vector<64x1xi1>
    %225 = vector.broadcast %224 : vector<64x1xi1> to vector<64x8xi1>
    %226 = vector.broadcast %cst_88 : f32 to vector<64x8xf32>
    %227 = arith.select %225, %223, %226 : vector<64x8xi1>, vector<64x8xf32>
    %228 = vector.extract_strided_slice %200 {offsets = [40, 0], sizes = [64, 8], strides = [1, 1]} : vector<112x8xf32> to vector<64x8xf32>
    %229 = vector.extract_strided_slice %200 {offsets = [41, 0], sizes = [64, 8], strides = [1, 1]} : vector<112x8xf32> to vector<64x8xf32>
    %cst_89 = arith.constant 0.000000e+00 : f32
    %230 = vector.shape_cast %24 : vector<64x1xi1> to vector<64x1xi1>
    %231 = vector.broadcast %230 : vector<64x1xi1> to vector<64x8xi1>
    %232 = vector.broadcast %cst_89 : f32 to vector<64x8xf32>
    %233 = arith.select %231, %229, %232 : vector<64x8xi1>, vector<64x8xf32>
    %234 = tpu.concatenate %205, %206, %211, %216, %217, %222, %227, %228, %233 in 1 : vector<64x8xf32>, vector<64x8xf32>, vector<64x8xf32>, vector<64x8xf32>, vector<64x8xf32>, vector<64x8xf32>, vector<64x8xf32>, vector<64x8xf32>, vector<64x8xf32> -> vector<64x72xf32>
    %235 = arith.truncf %234 : vector<64x72xf32> to vector<64x72xbf16>
    %cst_90 = arith.constant dense<0.000000e+00> : vector<64x8xf32>
    %236 = tpu.matmul %235, %27, %cst_90 {dimension_numbers = #tpu.dot_dimension_numbers<[1], [0], [0], [1], [0, 0, 1, 1], [], []>} : vector<64x72xbf16>, vector<72x8xbf16>, vector<64x8xf32> -> vector<64x8xf32>
    %237 = vector.broadcast %28 : vector<1x8xf32> to vector<64x8xf32>
    %238 = arith.addf %236, %237 : vector<64x8xf32>
    %cst_91 = arith.constant 0.000000e+00 : f32
    %239 = vector.broadcast %cst_91 : f32 to vector<64x8xf32>
    %240 = arith.maximumf %238, %239 : vector<64x8xf32>
    %c0_92 = arith.constant 0 : index
    %241 = arith.index_cast %198 : i32 to index
    %c0_93 = arith.constant 0 : index
    %242 = vector.load %arg1[%c0_92, %241, %c0_93] : memref<1x256x36xbf16, #tpu.memory_space<vmem>>, vector<1x64x36xbf16>
    %243 = vector.shape_cast %242 : vector<1x64x36xbf16> to vector<64x36xbf16>
    %cst_94 = arith.constant dense<0.000000e+00> : vector<64x8xf32>
    %244 = tpu.matmul %243, %29, %cst_94 {dimension_numbers = #tpu.dot_dimension_numbers<[1], [0], [0], [1], [0, 0, 1, 1], [], []>} : vector<64x36xbf16>, vector<36x8xbf16>, vector<64x8xf32> -> vector<64x8xf32>
    %245 = vector.broadcast %30 : vector<1x8xf32> to vector<64x8xf32>
    %246 = arith.addf %244, %245 : vector<64x8xf32>
    %247 = arith.addf %240, %246 : vector<64x8xf32>
    %cst_95 = arith.constant 0.000000e+00 : f32
    %248 = vector.broadcast %cst_95 : f32 to vector<64x8xf32>
    %249 = arith.maximumf %247, %248 : vector<64x8xf32>
    %c0_96 = arith.constant 0 : index
    %250 = arith.index_cast %198 : i32 to index
    %c0_97 = arith.constant 0 : index
    %251 = vector.load %arg8[%c0_96, %250, %c0_97] : memref<1x256x8xf32, #tpu.memory_space<vmem>>, vector<1x64x8xf32>
    %252 = vector.shape_cast %251 : vector<1x64x8xf32> to vector<64x8xf32>
    %253 = vector.shape_cast %249 : vector<64x8xf32> to vector<1x64x8xf32>
    tpu.vector_store %arg8[%c0_96, %250, %c0_97], %253 {strides = array<i32>} : memref<1x256x8xf32, #tpu.memory_space<vmem>>, vector<1x64x8xf32>,
    %c3_i32_98 = arith.constant 3 : i32
    %c64_i32_99 = arith.constant 64 : i32
    %254 = arith.muli %c3_i32_98, %c64_i32_99 : i32
    %255 = tpu.assume_multiple %254, 64 : i32
    %256 = arith.index_cast %255 : i32 to index
    %c0_100 = arith.constant 0 : index
    %257 = vector.load %arg9[%256, %c0_100] : memref<304x8xf32, #tpu.memory_space<vmem>>, vector<112x8xf32>
    %258 = vector.extract_strided_slice %257 {offsets = [7, 0], sizes = [64, 8], strides = [1, 1]} : vector<112x8xf32> to vector<64x8xf32>
    %cst_101 = arith.constant 0.000000e+00 : f32
    %259 = vector.shape_cast %22 : vector<64x1xi1> to vector<64x1xi1>
    %260 = vector.broadcast %259 : vector<64x1xi1> to vector<64x8xi1>
    %261 = vector.broadcast %cst_101 : f32 to vector<64x8xf32>
    %262 = arith.select %260, %258, %261 : vector<64x8xi1>, vector<64x8xf32>
    %263 = vector.extract_strided_slice %257 {offsets = [8, 0], sizes = [64, 8], strides = [1, 1]} : vector<112x8xf32> to vector<64x8xf32>
    %264 = vector.extract_strided_slice %257 {offsets = [9, 0], sizes = [64, 8], strides = [1, 1]} : vector<112x8xf32> to vector<64x8xf32>
    %cst_102 = arith.constant 0.000000e+00 : f32
    %265 = vector.shape_cast %24 : vector<64x1xi1> to vector<64x1xi1>
    %266 = vector.broadcast %265 : vector<64x1xi1> to vector<64x8xi1>
    %267 = vector.broadcast %cst_102 : f32 to vector<64x8xf32>
    %268 = arith.select %266, %264, %267 : vector<64x8xi1>, vector<64x8xf32>
    %269 = vector.extract_strided_slice %257 {offsets = [23, 0], sizes = [64, 8], strides = [1, 1]} : vector<112x8xf32> to vector<64x8xf32>
    %cst_103 = arith.constant 0.000000e+00 : f32
    %270 = vector.shape_cast %22 : vector<64x1xi1> to vector<64x1xi1>
    %271 = vector.broadcast %270 : vector<64x1xi1> to vector<64x8xi1>
    %272 = vector.broadcast %cst_103 : f32 to vector<64x8xf32>
    %273 = arith.select %271, %269, %272 : vector<64x8xi1>, vector<64x8xf32>
    %274 = vector.extract_strided_slice %257 {offsets = [24, 0], sizes = [64, 8], strides = [1, 1]} : vector<112x8xf32> to vector<64x8xf32>
    %275 = vector.extract_strided_slice %257 {offsets = [25, 0], sizes = [64, 8], strides = [1, 1]} : vector<112x8xf32> to vector<64x8xf32>
    %cst_104 = arith.constant 0.000000e+00 : f32
    %276 = vector.shape_cast %24 : vector<64x1xi1> to vector<64x1xi1>
    %277 = vector.broadcast %276 : vector<64x1xi1> to vector<64x8xi1>
    %278 = vector.broadcast %cst_104 : f32 to vector<64x8xf32>
    %279 = arith.select %277, %275, %278 : vector<64x8xi1>, vector<64x8xf32>
    %280 = vector.extract_strided_slice %257 {offsets = [39, 0], sizes = [64, 8], strides = [1, 1]} : vector<112x8xf32> to vector<64x8xf32>
    %cst_105 = arith.constant 0.000000e+00 : f32
    %281 = vector.shape_cast %22 : vector<64x1xi1> to vector<64x1xi1>
    %282 = vector.broadcast %281 : vector<64x1xi1> to vector<64x8xi1>
    %283 = vector.broadcast %cst_105 : f32 to vector<64x8xf32>
    %284 = arith.select %282, %280, %283 : vector<64x8xi1>, vector<64x8xf32>
    %285 = vector.extract_strided_slice %257 {offsets = [40, 0], sizes = [64, 8], strides = [1, 1]} : vector<112x8xf32> to vector<64x8xf32>
    %286 = vector.extract_strided_slice %257 {offsets = [41, 0], sizes = [64, 8], strides = [1, 1]} : vector<112x8xf32> to vector<64x8xf32>
    %cst_106 = arith.constant 0.000000e+00 : f32
    %287 = vector.shape_cast %24 : vector<64x1xi1> to vector<64x1xi1>
    %288 = vector.broadcast %287 : vector<64x1xi1> to vector<64x8xi1>
    %289 = vector.broadcast %cst_106 : f32 to vector<64x8xf32>
    %290 = arith.select %288, %286, %289 : vector<64x8xi1>, vector<64x8xf32>
    %291 = tpu.concatenate %262, %263, %268, %273, %274, %279, %284, %285, %290 in 1 : vector<64x8xf32>, vector<64x8xf32>, vector<64x8xf32>, vector<64x8xf32>, vector<64x8xf32>, vector<64x8xf32>, vector<64x8xf32>, vector<64x8xf32>, vector<64x8xf32> -> vector<64x72xf32>
    %292 = arith.truncf %291 : vector<64x72xf32> to vector<64x72xbf16>
    %cst_107 = arith.constant dense<0.000000e+00> : vector<64x8xf32>
    %293 = tpu.matmul %292, %27, %cst_107 {dimension_numbers = #tpu.dot_dimension_numbers<[1], [0], [0], [1], [0, 0, 1, 1], [], []>} : vector<64x72xbf16>, vector<72x8xbf16>, vector<64x8xf32> -> vector<64x8xf32>
    %294 = vector.broadcast %28 : vector<1x8xf32> to vector<64x8xf32>
    %295 = arith.addf %293, %294 : vector<64x8xf32>
    %cst_108 = arith.constant 0.000000e+00 : f32
    %296 = vector.broadcast %cst_108 : f32 to vector<64x8xf32>
    %297 = arith.maximumf %295, %296 : vector<64x8xf32>
    %c0_109 = arith.constant 0 : index
    %298 = arith.index_cast %255 : i32 to index
    %c0_110 = arith.constant 0 : index
    %299 = vector.load %arg1[%c0_109, %298, %c0_110] : memref<1x256x36xbf16, #tpu.memory_space<vmem>>, vector<1x64x36xbf16>
    %300 = vector.shape_cast %299 : vector<1x64x36xbf16> to vector<64x36xbf16>
    %cst_111 = arith.constant dense<0.000000e+00> : vector<64x8xf32>
    %301 = tpu.matmul %300, %29, %cst_111 {dimension_numbers = #tpu.dot_dimension_numbers<[1], [0], [0], [1], [0, 0, 1, 1], [], []>} : vector<64x36xbf16>, vector<36x8xbf16>, vector<64x8xf32> -> vector<64x8xf32>
    %302 = vector.broadcast %30 : vector<1x8xf32> to vector<64x8xf32>
    %303 = arith.addf %301, %302 : vector<64x8xf32>
    %304 = arith.addf %297, %303 : vector<64x8xf32>
    %cst_112 = arith.constant 0.000000e+00 : f32
    %305 = vector.broadcast %cst_112 : f32 to vector<64x8xf32>
    %306 = arith.maximumf %304, %305 : vector<64x8xf32>
    %c0_113 = arith.constant 0 : index
    %307 = arith.index_cast %255 : i32 to index
    %c0_114 = arith.constant 0 : index
    %308 = vector.load %arg8[%c0_113, %307, %c0_114] : memref<1x256x8xf32, #tpu.memory_space<vmem>>, vector<1x64x8xf32>
    %309 = vector.shape_cast %308 : vector<1x64x8xf32> to vector<64x8xf32>
    %310 = vector.shape_cast %306 : vector<64x8xf32> to vector<1x64x8xf32>
    tpu.vector_store %arg8[%c0_113, %307, %c0_114], %310 {strides = array<i32>} : memref<1x256x8xf32, #tpu.memory_space<vmem>>, vector<1x64x8xf32>,
    %c4_i32_115 = arith.constant 4 : i32
    return
  }
  func.func @transform_0(%arg0: i32) -> (i32, i32, i32) {
    %c0_i32 = arith.constant 0 : i32
    %c0_i32_0 = arith.constant 0 : i32
    %c0_i32_1 = arith.constant 0 : i32
    return %arg0, %c0_i32, %c0_i32_0 : i32, i32, i32
  }
  func.func @transform_1(%arg0: i32) -> (i32, i32) {
    %c0_i32 = arith.constant 0 : i32
    %c0_i32_0 = arith.constant 0 : i32
    %c0_i32_1 = arith.constant 0 : i32
    return %c0_i32, %c0_i32_0 : i32, i32
  }
  func.func @transform_2(%arg0: i32) -> (i32, i32) {
    %c0_i32 = arith.constant 0 : i32
    %c0_i32_0 = arith.constant 0 : i32
    %c0_i32_1 = arith.constant 0 : i32
    return %c0_i32, %c0_i32_0 : i32, i32
  }
  func.func @transform_3(%arg0: i32) -> (i32, i32) {
    %c0_i32 = arith.constant 0 : i32
    %c0_i32_0 = arith.constant 0 : i32
    %c0_i32_1 = arith.constant 0 : i32
    return %c0_i32, %c0_i32_0 : i32, i32
  }
  func.func @transform_4(%arg0: i32) -> (i32, i32) {
    %c0_i32 = arith.constant 0 : i32
    %c0_i32_0 = arith.constant 0 : i32
    %c0_i32_1 = arith.constant 0 : i32
    return %c0_i32, %c0_i32_0 : i32, i32
  }
  func.func @transform_5(%arg0: i32) -> (i32, i32) {
    %c0_i32 = arith.constant 0 : i32
    %c0_i32_0 = arith.constant 0 : i32
    %c0_i32_1 = arith.constant 0 : i32
    return %c0_i32, %c0_i32_0 : i32, i32
  }
  func.func @transform_6(%arg0: i32) -> (i32, i32) {
    %c0_i32 = arith.constant 0 : i32
    %c0_i32_0 = arith.constant 0 : i32
    %c0_i32_1 = arith.constant 0 : i32
    return %c0_i32, %c0_i32_0 : i32, i32
  }
  func.func @transform_7(%arg0: i32) -> (i32, i32, i32) {
    %c0_i32 = arith.constant 0 : i32
    %c0_i32_0 = arith.constant 0 : i32
    %c0_i32_1 = arith.constant 0 : i32
    return %arg0, %c0_i32, %c0_i32_0 : i32, i32, i32
  }
}

</mosaic_0001>

<llo_original>
// kernel: tpu_custom_call.1
$region0: #{tpu_custom_call.1}
  #allocation0 [shape = 'u32[]', space=smem, size = 0x4, offset = 0x4, fixed_abs, tag = 'smem constant byte address 0x4 - core index']
  #allocation1 [shape = 'u32[144,128]{1,0:T(1,128)}', space=vmem, size = 0x12000, scoped, tag = 'internal scratch']
  #allocation2 [shape = 'f32[304,8]{1,0:T(8,128)}', space=vmem, size = 0x26000, scoped, tag = 'scratch operand']
  %s0 = inlined_call_operand.vmem [shape: bf16[2,256,36], index: 0, kind: input, shape index: {}]
  %s1 = inlined_call_operand.vmem [shape: bf16[36,8], index: 1, kind: input, shape index: {}]
  %s2 = inlined_call_operand.vmem [shape: f32[1,8], index: 2, kind: input, shape index: {}]
  %s3 = inlined_call_operand.vmem [shape: bf16[72,8], index: 3, kind: input, shape index: {}]
  %s4 = inlined_call_operand.vmem [shape: f32[1,8], index: 4, kind: input, shape index: {}]
  %s5 = inlined_call_operand.vmem [shape: bf16[36,8], index: 5, kind: input, shape index: {}]
  %s6 = inlined_call_operand.vmem [shape: f32[1,8], index: 6, kind: input, shape index: {}]
  %s7 = inlined_call_operand.vmem [shape: f32[2,256,8], index: 7, kind: output, shape index: {}]
  %s8 = sld [smem:[#allocation0]]
  $region61: #{tpu_custom_call.1} parent=0
    _
  %s10 = ssub.s32 1, %s8
  %s11 = scalar_select 0, %s10, %s8
  loop: start=0, step=1, limit=4
  $region2: #{tpu_custom_call.1} parent=0 // loop_pre_header
    _
  $region3: #{tpu_custom_call.1} parent=0 // loop_header
    %s13 = sphi 0, %s17
    %p14 = scmp.ge.s32.totalorder %s13, 4
    %s23 = sphi 0, %s25
    %s26 = sphi 0, %s23
    %s27 = sphi 0, %s26
    %s43 = sphi 0, %s27
    %s47 = sphi 0, %s47
    %s49 = sphi 0, %s47
    %s50 = sphi 0, %s49
    %s64 = sphi 0, %s50
    %s68 = sphi 0, %s68
    %s70 = sphi 0, %s68
    %s71 = sphi 0, %s70
    %s85 = sphi 0, %s71
    %s89 = sphi 0, %s89
    %s91 = sphi 0, %s89
    %s92 = sphi 0, %s91
    %s106 = sphi 0, %s92
    %s110 = sphi 0, %s110
    %s112 = sphi 0, %s110
    %s113 = sphi 0, %s112
    %s127 = sphi 0, %s113
    %s131 = sphi 0, %s131
    %s133 = sphi 0, %s131
    %s134 = sphi 0, %s133
    %s148 = sphi 0, %s134
    %s152 = sphi 0, %s152
    %s154 = sphi 0, %s152
    %s155 = sphi 0, %s154
    %s169 = sphi 0, %s155
    %s175 = sphi 0, %s177
    %s178 = sphi 0, %s175
    %s179 = sphi 0, %s178
    %s195 = sphi 0, %s179
  $region4: #{tpu_custom_call.1} parent=0 // loop_header_branch
    %16 = sbr.rel (%p14) target = $region8
  $region5: #{tpu_custom_call.1} parent=0 // loop_body
    %s18 = ssub.s32 %s13, 1
    %s19 = ssub.s32 %s13, 2
    %s20 = sadd.s32 %s13, 1
    %s21 = ssub.s32 %s13, %s20
    %p22 = scmp.eq.s32.totalorder %s21, 0
    %s24 = sadd.s32 %s23, 1
    %s25 = scalar_select %p22, %s23, %s24
    %p28 = pneg %p22
    %p29 = scmp.eq.s32.totalorder %s13, 1
    %p30 = por %p28, %p29
    %p31 = scmp.ne.s32.totalorder %s23, %s26
    %p32 = scmp.eq.s32.totalorder %s13, 0
    %p33 = por %p31, %p32
    %p34 = scmp.ne.s32.totalorder %s23, %s26
    %p35 = scmp.eq.s32.totalorder %s18, 1
    %p36 = por %p34, %p35
    %p37 = scmp.ne.s32.totalorder %s26, %s27
    %p38 = scmp.eq.s32.totalorder %s18, 0
    %p39 = por %p37, %p38
    %p40 = scmp.ne.s32.totalorder %s26, %s27
    %p41 = scmp.eq.s32.totalorder %s19, 1
    %p42 = por %p40, %p41
    %p44 = scmp.ne.s32.totalorder %s27, %s43
    %p45 = scmp.eq.s32.totalorder %s19, 0
    %p46 = por %p44, %p45
    %s48 = sadd.s32 %s47, 1
    %p51 = scmp.eq.s32.totalorder %s13, 1
    %p52 = scmp.ne.s32.totalorder %s47, %s49
    %p53 = scmp.eq.s32.totalorder %s13, 0
    %p54 = por %p52, %p53
    %p55 = scmp.ne.s32.totalorder %s47, %s49
    %p56 = scmp.eq.s32.totalorder %s18, 1
    %p57 = por %p55, %p56
    %p58 = scmp.ne.s32.totalorder %s49, %s50
    %p59 = scmp.eq.s32.totalorder %s18, 0
    %p60 = por %p58, %p59
    %p61 = scmp.ne.s32.totalorder %s49, %s50
    %p62 = scmp.eq.s32.totalorder %s19, 1
    %p63 = por %p61, %p62
    %p65 = scmp.ne.s32.totalorder %s50, %s64
    %p66 = scmp.eq.s32.totalorder %s19, 0
    %p67 = por %p65, %p66
    %s69 = sadd.s32 %s68, 1
    %p72 = scmp.eq.s32.totalorder %s13, 1
    %p73 = scmp.ne.s32.totalorder %s68, %s70
    %p74 = scmp.eq.s32.totalorder %s13, 0
    %p75 = por %p73, %p74
    %p76 = scmp.ne.s32.totalorder %s68, %s70
    %p77 = scmp.eq.s32.totalorder %s18, 1
    %p78 = por %p76, %p77
    %p79 = scmp.ne.s32.totalorder %s70, %s71
    %p80 = scmp.eq.s32.totalorder %s18, 0
    %p81 = por %p79, %p80
    %p82 = scmp.ne.s32.totalorder %s70, %s71
    %p83 = scmp.eq.s32.totalorder %s19, 1
    %p84 = por %p82, %p83
    %p86 = scmp.ne.s32.totalorder %s71, %s85
    %p87 = scmp.eq.s32.totalorder %s19, 0
    %p88 = por %p86, %p87
    %s90 = sadd.s32 %s89, 1
    %p93 = scmp.eq.s32.totalorder %s13, 1
    %p94 = scmp.ne.s32.totalorder %s89, %s91
    %p95 = scmp.eq.s32.totalorder %s13, 0
    %p96 = por %p94, %p95
    %p97 = scmp.ne.s32.totalorder %s89, %s91
    %p98 = scmp.eq.s32.totalorder %s18, 1
    %p99 = por %p97, %p98
    %p100 = scmp.ne.s32.totalorder %s91, %s92
    %p101 = scmp.eq.s32.totalorder %s18, 0
    %p102 = por %p100, %p101
    %p103 = scmp.ne.s32.totalorder %s91, %s92
    %p104 = scmp.eq.s32.totalorder %s19, 1
    %p105 = por %p103, %p104
    %p107 = scmp.ne.s32.totalorder %s92, %s106
    %p108 = scmp.eq.s32.totalorder %s19, 0
    %p109 = por %p107, %p108
    %s111 = sadd.s32 %s110, 1
    %p114 = scmp.eq.s32.totalorder %s13, 1
    %p115 = scmp.ne.s32.totalorder %s110, %s112
    %p116 = scmp.eq.s32.totalorder %s13, 0
    %p117 = por %p115, %p116
    %p118 = scmp.ne.s32.totalorder %s110, %s112
    %p119 = scmp.eq.s32.totalorder %s18, 1
    %p120 = por %p118, %p119
    %p121 = scmp.ne.s32.totalorder %s112, %s113
    %p122 = scmp.eq.s32.totalorder %s18, 0
    %p123 = por %p121, %p122
    %p124 = scmp.ne.s32.totalorder %s112, %s113
    %p125 = scmp.eq.s32.totalorder %s19, 1
    %p126 = por %p124, %p125
    %p128 = scmp.ne.s32.totalorder %s113, %s127
    %p129 = scmp.eq.s32.totalorder %s19, 0
    %p130 = por %p128, %p129
    %s132 = sadd.s32 %s131, 1
    %p135 = scmp.eq.s32.totalorder %s13, 1
    %p136 = scmp.ne.s32.totalorder %s131, %s133
    %p137 = scmp.eq.s32.totalorder %s13, 0
    %p138 = por %p136, %p137
    %p139 = scmp.ne.s32.totalorder %s131, %s133
    %p140 = scmp.eq.s32.totalorder %s18, 1
    %p141 = por %p139, %p140
    %p142 = scmp.ne.s32.totalorder %s133, %s134
    %p143 = scmp.eq.s32.totalorder %s18, 0
    %p144 = por %p142, %p143
    %p145 = scmp.ne.s32.totalorder %s133, %s134
    %p146 = scmp.eq.s32.totalorder %s19, 1
    %p147 = por %p145, %p146
    %p149 = scmp.ne.s32.totalorder %s134, %s148
    %p150 = scmp.eq.s32.totalorder %s19, 0
    %p151 = por %p149, %p150
    %s153 = sadd.s32 %s152, 1
    %p156 = scmp.eq.s32.totalorder %s13, 1
    %p157 = scmp.ne.s32.totalorder %s152, %s154
    %p158 = scmp.eq.s32.totalorder %s13, 0
    %p159 = por %p157, %p158
    %p160 = scmp.ne.s32.totalorder %s152, %s154
    %p161 = scmp.eq.s32.totalorder %s18, 1
    %p162 = por %p160, %p161
    %p163 = scmp.ne.s32.totalorder %s154, %s155
    %p164 = scmp.eq.s32.totalorder %s18, 0
    %p165 = por %p163, %p164
    %p166 = scmp.ne.s32.totalorder %s154, %s155
    %p167 = scmp.eq.s32.totalorder %s19, 1
    %p168 = por %p166, %p167
    %p170 = scmp.ne.s32.totalorder %s155, %s169
    %p171 = scmp.eq.s32.totalorder %s19, 0
    %p172 = por %p170, %p171
    %s173 = ssub.s32 %s13, %s20
    %p174 = scmp.eq.s32.totalorder %s173, 0
    %s176 = sadd.s32 %s175, 1
    %s177 = scalar_select %p174, %s175, %s176
    %p180 = pneg %p174
    %p181 = scmp.eq.s32.totalorder %s13, 1
    %p182 = por %p180, %p181
    %p183 = scmp.ne.s32.totalorder %s175, %s178
    %p184 = scmp.eq.s32.totalorder %s13, 0
    %p185 = por %p183, %p184
    %p186 = scmp.ne.s32.totalorder %s175, %s178
    %p187 = scmp.eq.s32.totalorder %s18, 1
    %p188 = por %p186, %p187
    %p189 = scmp.ne.s32.totalorder %s178, %s179
    %p190 = scmp.eq.s32.totalorder %s18, 0
    %p191 = por %p189, %p190
    %p192 = scmp.ne.s32.totalorder %s178, %s179
    %p193 = scmp.eq.s32.totalorder %s19, 1
    %p194 = por %p192, %p193
    %p196 = scmp.ne.s32.totalorder %s179, %s195
    %p197 = scmp.eq.s32.totalorder %s19, 0
    %p198 = por %p196, %p197
    %p199 = scmp.le.s32.totalorder 1, %s13
    %p200 = scmp.lt.s32.totalorder %s13, 3
    %p201 = pnand %p199, %p200
    %p202 = pneg %p201
    // Predicated region
    $region9: #{tpu_custom_call.1} parent=5 // pred_check
      _
    $region10: #{tpu_custom_call.1} parent=5 // pred_check_branch
      %204 = sbr.rel (%p201) target = $region12
    $region11: #{tpu_custom_call.1} parent=5 // pred_region
      %s205 = ssub.s32 %s13, 1
      // Predicated region
      $region13: #{tpu_custom_call.1} parent=11 // pred_check
        %p206 = pneg %p60
      $region14: #{tpu_custom_call.1} parent=11 // pred_check_branch
        %208 = sbr.rel (%p206) target = $region16
      $region15: #{tpu_custom_call.1} parent=11 // pred_region
        _
      $region16: #{tpu_custom_call.1} parent=11 // pred_fallthru
        _
      // Predicated region
      $region17: #{tpu_custom_call.1} parent=11 // pred_check
        %p209 = pneg %p81
      $region18: #{tpu_custom_call.1} parent=11 // pred_check_branch
        %211 = sbr.rel (%p209) target = $region20
      $region19: #{tpu_custom_call.1} parent=11 // pred_region
        _
      $region20: #{tpu_custom_call.1} parent=11 // pred_fallthru
        _
      // Predicated region
      $region21: #{tpu_custom_call.1} parent=11 // pred_check
        %p212 = pneg %p102
      $region22: #{tpu_custom_call.1} parent=11 // pred_check_branch
        %214 = sbr.rel (%p212) target = $region24
      $region23: #{tpu_custom_call.1} parent=11 // pred_region
        _
      $region24: #{tpu_custom_call.1} parent=11 // pred_fallthru
        _
      // Predicated region
      $region25: #{tpu_custom_call.1} parent=11 // pred_check
        %p215 = pneg %p123
      $region26: #{tpu_custom_call.1} parent=11 // pred_check_branch
        %217 = sbr.rel (%p215) target = $region28
      $region27: #{tpu_custom_call.1} parent=11 // pred_region
        _
      $region28: #{tpu_custom_call.1} parent=11 // pred_fallthru
        _
      // Predicated region
      $region29: #{tpu_custom_call.1} parent=11 // pred_check
        %p218 = pneg %p144
      $region30: #{tpu_custom_call.1} parent=11 // pred_check_branch
        %220 = sbr.rel (%p218) target = $region32
      $region31: #{tpu_custom_call.1} parent=11 // pred_region
        _
      $region32: #{tpu_custom_call.1} parent=11 // pred_fallthru
        _
      // Predicated region
      $region33: #{tpu_custom_call.1} parent=11 // pred_check
        %p221 = pneg %p165
      $region34: #{tpu_custom_call.1} parent=11 // pred_check_branch
        %223 = sbr.rel (%p221) target = $region36
      $region35: #{tpu_custom_call.1} parent=11 // pred_region
        _
      $region36: #{tpu_custom_call.1} parent=11 // pred_fallthru
        _
    $region12: #{tpu_custom_call.1} parent=5 // pred_fallthru
      _
    %p224 = scmp.lt.s32.totalorder %s13, 2
    // Predicated region
    $region37: #{tpu_custom_call.1} parent=5 // pred_check
      %p225 = pneg %p224
    $region38: #{tpu_custom_call.1} parent=5 // pred_check_branch
      %227 = sbr.rel (%p225) target = $region40
    $region39: #{tpu_custom_call.1} parent=5 // pred_region
      // Predicated region
      $region41: #{tpu_custom_call.1} parent=39 // pred_check
        %p228 = pneg %p33
      $region42: #{tpu_custom_call.1} parent=39 // pred_check_branch
        %230 = sbr.rel (%p228) target = $region44
      $region43: #{tpu_custom_call.1} parent=39 // pred_region
        %p231 = scmp.lt.s32.totalorder %s13, 1
        %s232 = scalar_select %p231, %s13, 1
        %s233 = smul.addr %s232, 32
        %s234 = smul.addr %s233, 4
        %s235 = scalar_lea.vmem %s0, %s234
      $region44: #{tpu_custom_call.1} parent=39 // pred_fallthru
        _
    $region40: #{tpu_custom_call.1} parent=5 // pred_fallthru
      _
    %p236 = scmp.le.s32.totalorder 1, %s13
    %p237 = scmp.lt.s32.totalorder %s13, 3
    %p238 = pnand %p236, %p237
    %p239 = pneg %p238
    // Predicated region
    $region45: #{tpu_custom_call.1} parent=5 // pred_check
      _
    $region46: #{tpu_custom_call.1} parent=5 // pred_check_branch
      %241 = sbr.rel (%p238) target = $region48
    $region47: #{tpu_custom_call.1} parent=5 // pred_region
      %s242 = ssub.s32 %s13, 1
      %p243 = scmp.lt.s32.totalorder %s18, 1
      %s244 = scalar_select %p243, %s18, 1
      %s245 = smul.addr %s244, 32
      %s246 = smul.addr %s245, 4
      %s247 = scalar_lea.vmem %s0, %s246
      %p248 = pneg %p39
      %p249 = pneg %p36
      %p250 = pneg %p60
      %p251 = pneg %p57
      %p252 = pneg %p81
      %p253 = pneg %p78
      %p254 = pneg %p102
      %p255 = pneg %p99
      %p256 = pneg %p123
      %p257 = pneg %p120
      %p258 = pneg %p144
      %p259 = pneg %p141
      %p260 = pneg %p165
      %p261 = pneg %p162
      %p262 = pneg %p191
      %p263 = pneg %p188
      %p264 = scmp.lt.s32.totalorder %s18, 1
      %s265 = scalar_select %p264, %s18, 1
      %s266 = smul.addr %s265, 32
      %s267 = smul.addr %s266, 8
      %s268 = scalar_lea.vmem %s7, %s267
      %p269 = scmp.lt.s32.totalorder %s18, 1
      %s270 = scalar_select %p269, %s18, 1
      %s271 = smul.addr %s270, 32
      %s272 = smul.addr %s271, 4
      %s273 = scalar_lea.vmem %s0, %s272
      %p274 = scmp.lt.s32.totalorder %s18, 1
      %s275 = scalar_select %p274, %s18, 1
      %s276 = smul.addr %s275, 32
      %s277 = smul.addr %s276, 8
      %s278 = scalar_lea.vmem %s7, %s277
      %vm280 = vcmask 64512
      %281 = vst.msk [vmem:[#allocation2] sm:$0xff] %vm280, 0.0
      %282 = vst.msk [vmem:[#allocation2 + $0x8] sm:$0xff] %vm280, 0.0
      %283 = vst.msk [vmem:[#allocation2 + $0x10] sm:$0xff] %vm280, 0.0
      %284 = vst.msk [vmem:[#allocation2 + $0x118] sm:$0xff] %vm280, 0.0
      %285 = vst.msk [vmem:[#allocation2 + $0x120] sm:$0xff] %vm280, 0.0
      %286 = vst.msk [vmem:[#allocation2 + $0x128] sm:$0xff] %vm280, 0.0
      %v287 = vlaneseq
      %v288 = vshrl.u32 %v287, 7
      %v289 = vadd.s32 %v288, 8
      %v290 = vadd.s32 %v288, 16
      %v291 = vadd.s32 %v288, 24
      %v292 = vadd.s32 %v288, 32
      %v293 = vadd.s32 %v288, 40
      %v294 = vadd.s32 %v288, 48
      %v295 = vadd.s32 %v288, 56
      %vm296 = vcmp.lt.s32.totalorder %v288, 0
      %v297 = vsub.s32 0, %v288
      %v298 = vsel %vm296, %v297, %v288
      %v299 = vshrl.u32 %v298, 4
      %v300 = vand.u32 %v298, 15
      %v301 = vsub.s32 0, %v300
      %v302 = vsel %vm296, %v301, %v300
      %vm303 = vcmp.lt.s32.totalorder %v289, 0
      %v304 = vsub.s32 0, %v289
      %v305 = vsel %vm303, %v304, %v289
      %v306 = vshrl.u32 %v305, 4
      %v307 = vand.u32 %v305, 15
      %v308 = vsub.s32 0, %v307
      %v309 = vsel %vm303, %v308, %v307
      %vm310 = vcmp.lt.s32.totalorder %v290, 0
      %v311 = vsub.s32 0, %v290
      %v312 = vsel %vm310, %v311, %v290
      %v313 = vshrl.u32 %v312, 4
      %v314 = vand.u32 %v312, 15
      %v315 = vsub.s32 0, %v314
      %v316 = vsel %vm310, %v315, %v314
      %vm317 = vcmp.lt.s32.totalorder %v291, 0
      %v318 = vsub.s32 0, %v291
      %v319 = vsel %vm317, %v318, %v291
      %v320 = vshrl.u32 %v319, 4
      %v321 = vand.u32 %v319, 15
      %v322 = vsub.s32 0, %v321
      %v323 = vsel %vm317, %v322, %v321
      %vm324 = vcmp.lt.s32.totalorder %v292, 0
      %v325 = vsub.s32 0, %v292
      %v326 = vsel %vm324, %v325, %v292
      %v327 = vshrl.u32 %v326, 4
      %v328 = vand.u32 %v326, 15
      %v329 = vsub.s32 0, %v328
      %v330 = vsel %vm324, %v329, %v328
      %vm331 = vcmp.lt.s32.totalorder %v293, 0
      %v332 = vsub.s32 0, %v293
      %v333 = vsel %vm331, %v332, %v293
      %v334 = vshrl.u32 %v333, 4
      %v335 = vand.u32 %v333, 15
      %v336 = vsub.s32 0, %v335
      %v337 = vsel %vm331, %v336, %v335
      %vm338 = vcmp.lt.s32.totalorder %v294, 0
      %v339 = vsub.s32 0, %v294
      %v340 = vsel %vm338, %v339, %v294
      %v341 = vshrl.u32 %v340, 4
      %v342 = vand.u32 %v340, 15
      %v343 = vsub.s32 0, %v342
      %v344 = vsel %vm338, %v343, %v342
      %vm345 = vcmp.lt.s32.totalorder %v295, 0
      %v346 = vsub.s32 0, %v295
      %v347 = vsel %vm345, %v346, %v295
      %v348 = vshrl.u32 %v347, 4
      %v349 = vand.u32 %v347, 15
      %v350 = vsub.s32 0, %v349
      %v351 = vsel %vm345, %v350, %v349
      %vm352 = vcmp.ne.s32.totalorder %v302, 0
      %vm353 = vcmp.ne.s32.totalorder %v309, 0
      %vm354 = vcmp.ne.s32.totalorder %v316, 0
      %vm355 = vcmp.ne.s32.totalorder %v323, 0
      %vm356 = vcmp.ne.s32.totalorder %v330, 0
      %vm357 = vcmp.ne.s32.totalorder %v337, 0
      %vm358 = vcmp.ne.s32.totalorder %v344, 0
      %vm359 = vcmp.ne.s32.totalorder %v351, 0
      %vm360 = vcmp.lt.s32.totalorder %v302, 0
      %vm361 = vcmp.lt.s32.totalorder %v309, 0
      %vm362 = vcmp.lt.s32.totalorder %v316, 0
      %vm363 = vcmp.lt.s32.totalorder %v323, 0
      %vm364 = vcmp.lt.s32.totalorder %v330, 0
      %vm365 = vcmp.lt.s32.totalorder %v337, 0
      %vm366 = vcmp.lt.s32.totalorder %v344, 0
      %vm367 = vcmp.lt.s32.totalorder %v351, 0
      %vm368 = vmand %vm360, %vm352
      %vm369 = vmand %vm361, %vm353
      %vm370 = vmand %vm362, %vm354
      %vm371 = vmand %vm363, %vm355
      %vm372 = vmand %vm364, %vm356
      %vm373 = vmand %vm365, %vm357
      %vm374 = vmand %vm366, %vm358
      %vm375 = vmand %vm367, %vm359
      %v376 = vadd.s32 %v302, 16
      %v377 = vadd.s32 %v309, 16
      %v378 = vadd.s32 %v316, 16
      %v379 = vadd.s32 %v323, 16
      %v380 = vadd.s32 %v330, 16
      %v381 = vadd.s32 %v337, 16
      %v382 = vadd.s32 %v344, 16
      %v383 = vadd.s32 %v351, 16
      %v384 = vsel %vm368, %v376, %v302
      %v385 = vsel %vm369, %v377, %v309
      %v386 = vsel %vm370, %v378, %v316
      %v387 = vsel %vm371, %v379, %v323
      %v388 = vsel %vm372, %v380, %v330
      %v389 = vsel %vm373, %v381, %v337
      %v390 = vsel %vm374, %v382, %v344
      %v391 = vsel %vm375, %v383, %v351
      %vm392 = vcmp.gt.s32.totalorder %v384, 0
      %vm393 = vcmp.gt.s32.totalorder %v385, 0
      %vm394 = vcmp.gt.s32.totalorder %v386, 0
      %vm395 = vcmp.gt.s32.totalorder %v387, 0
      %vm396 = vcmp.gt.s32.totalorder %v388, 0
      %vm397 = vcmp.gt.s32.totalorder %v389, 0
      %vm398 = vcmp.gt.s32.totalorder %v390, 0
      %vm399 = vcmp.gt.s32.totalorder %v391, 0
      %vm400 = vcmp.lt.s32.totalorder %v384, 15
      %vm401 = vcmp.lt.s32.totalorder %v385, 15
      %vm402 = vcmp.lt.s32.totalorder %v386, 15
      %vm403 = vcmp.lt.s32.totalorder %v387, 15
      %vm404 = vcmp.lt.s32.totalorder %v388, 15
      %vm405 = vcmp.lt.s32.totalorder %v389, 15
      %vm406 = vcmp.lt.s32.totalorder %v390, 15
      %vm407 = vcmp.lt.s32.totalorder %v391, 15
      %v408 = vld [vmem:[%s1] sm:$0xf]
      %v409 = vld [vmem:[%s1 + $0x4] sm:$0xf]
      %v410 = vld [vmem:[%s1 + $0x8] sm:$0xf]
      %v411 = vld [vmem:[%s1 + $0xc] sm:$0xf]
      %v412 = vld [vmem:[%s1 + $0x10] sm:$0x3]
      %v413 = vld [vmem:[%s2] sm:$0x1]
      %v414 = vld [vmem:[%s3] sm:$0xf]
      %v415 = vld [vmem:[%s3 + $0x4] sm:$0xf]
      %v416 = vld [vmem:[%s3 + $0x8] sm:$0xf]
      %v417 = vld [vmem:[%s3 + $0xc] sm:$0xf]
      %v418 = vld [vmem:[%s3 + $0x10] sm:$0xf]
      %v419 = vld [vmem:[%s3 + $0x14] sm:$0xf]
      %v420 = vld [vmem:[%s3 + $0x18] sm:$0xf]
      %v421 = vld [vmem:[%s3 + $0x1c] sm:$0xf]
      %v422 = vld [vmem:[%s3 + $0x20] sm:$0xf]
      %v423 = vld [vmem:[%s4] sm:$0x1]
      %v424 = vld [vmem:[%s5] sm:$0xf]
      %v425 = vld [vmem:[%s5 + $0x4] sm:$0xf]
      %v426 = vld [vmem:[%s5 + $0x8] sm:$0xf]
      %v427 = vld [vmem:[%s5 + $0xc] sm:$0xf]
      %v428 = vld [vmem:[%s5 + $0x10] sm:$0x3]
      %v429 = vld [vmem:[%s6] sm:$0x1]
      %v430 = vld [vmem:[%s273] sm:$0xf]
      %v431 = vld [vmem:[%s273 + $0x4] sm:$0xf]
      %v432 = vld [vmem:[%s273 + $0x8] sm:$0xf]
      %v433 = vld [vmem:[%s273 + $0xc] sm:$0xf]
      %v434 = vld [vmem:[%s273 + $0x10] sm:$0xf]
      %v435 = vld [vmem:[%s273 + $0x14] sm:$0xf]
      %v436 = vld [vmem:[%s273 + $0x18] sm:$0xf]
      %v437 = vld [vmem:[%s273 + $0x1c] sm:$0xf]
      %v439 = vlaneseq
      %v440 = vshrl.u32 %v439, 7
      %v441 = vsub.s32 0, %v440
      %v442 = vrot.slane %v413, %v441
      %v452 = vunpack.c.l.b16 %v430
      %v453 = vunpack.c.l.b16 %v431
      %v454 = vunpack.c.l.b16 %v432
      %v455 = vunpack.c.l.b16 %v433
      %v456 = vunpack.c.l.b16 %v434
      %v457 = vunpack.c.l.b16 %v435
      %v458 = vunpack.c.l.b16 %v436
      %v459 = vunpack.c.l.b16 %v437
      %v460 = vpack.c.b16 %v453, %v452
      %v461 = vpack.c.b16 %v455, %v454
      %v462 = vpack.c.b16 %v457, %v456
      %v463 = vpack.c.b16 %v459, %v458
      %v469 = vunpack.c.l.b16 %v408
      %v470 = vunpack.c.l.b16 %v409
      %v471 = vunpack.c.l.b16 %v410
      %v472 = vunpack.c.l.b16 %v411
      %v473 = vunpack.c.l.b16 %v412
      %v474 = vpack.c.b16 %v470, %v469
      %v475 = vpack.c.b16 %v472, %v471
      %v476 = vpack.c.b16 %v473, %v473
      %vm479 = vcmask 293888
      %v481 = vsel %vm479, %v460, 0
      %v484 = vsel %vm479, %v461, 0
      %v487 = vsel %vm479, %v462, 0
      %v490 = vsel %vm479, %v463, 0
      %vm492 = vcmask 1041408
      %v494 = vsel %vm492, %v476, 0
      %496 = vmatprep.subr.bf16.mxu0 0
      %497 = vmatpush1.bf16.msra.mxu0 %v474
      %498 = vmatprep.subr.bf16.mxu0 0
      %499 = vmatpush1.bf16.msra.mxu0 %v475
      %500 = vmatprep.subr.bf16.mxu0 0
      %501 = vmatpush1.bf16.msra.mxu0 %v494
      %502 = vmatprep.subr.bf16.mxu0 0
      %503 = vmatpush1.bf16.msra.mxu0 0
      %504 = vmatprep.subr.bf16.mxu0 0
      %505 = vmatpush1.bf16.msra.mxu0 0
      %506 = vmatprep.subr.bf16.mxu0 0
      %507 = vmatpush1.bf16.msra.mxu0 0
      %508 = vmatprep.subr.bf16.mxu0 0
      %509 = vmatpush1.bf16.msra.mxu0 0
      %510 = vmatprep.subr.bf16.mxu0 0
      %511 = vmatpush1.bf16.msra.mxu0 0
      %512 = vmatprep.subr.bf16.mxu0 0
      %513 = vmatpush1.bf16.msra.mxu0 0
      %514 = vmatprep.subr.bf16.mxu0 0
      %515 = vmatpush1.bf16.msra.mxu0 0
      %516 = vmatprep.subr.bf16.mxu0 0
      %517 = vmatpush1.bf16.msra.mxu0 0
      %518 = vmatprep.subr.bf16.mxu0 0
      %519 = vmatpush1.bf16.msra.mxu0 0
      %520 = vmatprep.subr.bf16.mxu0 0
      %521 = vmatpush1.bf16.msra.mxu0 0
      %522 = vmatprep.subr.bf16.mxu0 0
      %523 = vmatpush1.bf16.msra.mxu0 0
      %524 = vmatprep.subr.bf16.mxu0 0
      %525 = vmatpush1.bf16.msra.mxu0 0
      %526 = vmatprep.subr.bf16.mxu0 0
      %527 = vmatpush1.bf16.msra.mxu0 0
      %528 = vmatprep.mubr.bf16.mxu0 0
      %529 = vmatmul.mubr.bf16.gmra.mrb[0].mxu0 %v481
      %v530 = vpop.f32.mrb[0].mxu0
      %v531 = vadd.f32 %v442, %v530
      %v532 = vpop.f32.mrb[0].mxu0
      %v533 = vpop.f32.mrb[0].mxu0
      %v534 = vadd.f32 %v442, %v533
      %v535 = vpop.f32.mrb[0].mxu0
      %536 = vmatprep.mubr.bf16.mxu0 0
      %537 = vmatmul.mubr.bf16.gmra.mrb[0].mxu0 %v484
      %v538 = vpop.f32.mrb[0].mxu0
      %v539 = vadd.f32 %v442, %v538
      %v540 = vpop.f32.mrb[0].mxu0
      %v541 = vpop.f32.mrb[0].mxu0
      %v542 = vadd.f32 %v442, %v541
      %v543 = vpop.f32.mrb[0].mxu0
      %544 = vmatprep.mubr.bf16.mxu0 0
      %545 = vmatmul.mubr.bf16.gmra.mrb[0].mxu0 %v487
      %v546 = vpop.f32.mrb[0].mxu0
      %v547 = vadd.f32 %v442, %v546
      %v548 = vpop.f32.mrb[0].mxu0
      %v549 = vpop.f32.mrb[0].mxu0
      %v550 = vadd.f32 %v442, %v549
      %v551 = vpop.f32.mrb[0].mxu0
      %552 = vmatprep.mubr.bf16.mxu0 0
      %553 = vmatmul.mubr.bf16.gmra.mrb[0].mxu0 %v490
      %v554 = vpop.f32.mrb[0].mxu0
      %v555 = vadd.f32 %v442, %v554
      %v556 = vpop.f32.mrb[0].mxu0
      %v557 = vpop.f32.mrb[0].mxu0
      %v558 = vadd.f32 %v442, %v557
      %v559 = vpop.f32.mrb[0].mxu0
      %560 = vdwg.mxu0
      %v561 = vmax.f32 %v531, 0.0
      %v562 = vmax.f32 %v534, 0.0
      %v563 = vmax.f32 %v539, 0.0
      %v564 = vmax.f32 %v542, 0.0
      %v565 = vmax.f32 %v547, 0.0
      %v566 = vmax.f32 %v550, 0.0
      %v567 = vmax.f32 %v555, 0.0
      %v568 = vmax.f32 %v558, 0.0
      %s569 = sadd.s32 0, 24
      %s570 = scalar_lea.vmem [#allocation2], %s569
      %571 = vst.msk [vmem:[%s570] sm:$0xff] %vm280, %v561
      %572 = vst.msk [vmem:[%s570 + $0x8] sm:$0xff] %vm280, %v562
      %573 = vst.msk [vmem:[%s570 + $0x10] sm:$0xff] %vm280, %v563
      %574 = vst.msk [vmem:[%s570 + $0x18] sm:$0xff] %vm280, %v564
      %575 = vst.msk [vmem:[%s570 + $0x20] sm:$0xff] %vm280, %v565
      %576 = vst.msk [vmem:[%s570 + $0x28] sm:$0xff] %vm280, %v566
      %577 = vst.msk [vmem:[%s570 + $0x30] sm:$0xff] %vm280, %v567
      %578 = vst.msk [vmem:[%s570 + $0x38] sm:$0xff] %vm280, %v568
      %s579 = scalar_lea.vmem %s273, 32
      %v580 = vld [vmem:[%s579] sm:$0xf]
      %v581 = vld [vmem:[%s579 + $0x4] sm:$0xf]
      %v582 = vld [vmem:[%s579 + $0x8] sm:$0xf]
      %v583 = vld [vmem:[%s579 + $0xc] sm:$0xf]
      %v584 = vld [vmem:[%s579 + $0x10] sm:$0xf]
      %v585 = vld [vmem:[%s579 + $0x14] sm:$0xf]
      %v586 = vld [vmem:[%s579 + $0x18] sm:$0xf]
      %v587 = vld [vmem:[%s579 + $0x1c] sm:$0xf]
      %v596 = vunpack.c.l.b16 %v580
      %v597 = vunpack.c.l.b16 %v581
      %v598 = vunpack.c.l.b16 %v582
      %v599 = vunpack.c.l.b16 %v583
      %v600 = vunpack.c.l.b16 %v584
      %v601 = vunpack.c.l.b16 %v585
      %v602 = vunpack.c.l.b16 %v586
      %v603 = vunpack.c.l.b16 %v587
      %v604 = vpack.c.b16 %v597, %v596
      %v605 = vpack.c.b16 %v599, %v598
      %v606 = vpack.c.b16 %v601, %v600
      %v607 = vpack.c.b16 %v603, %v602
      %v609 = vsel %vm479, %v604, 0
      %v612 = vsel %vm479, %v605, 0
      %v615 = vsel %vm479, %v606, 0
      %v618 = vsel %vm479, %v607, 0
      %620 = vmatprep.subr.bf16.mxu0 0
      %621 = vmatpush1.bf16.msra.mxu0 %v474
      %622 = vmatprep.subr.bf16.mxu0 0
      %623 = vmatpush1.bf16.msra.mxu0 %v475
      %624 = vmatprep.subr.bf16.mxu0 0
      %625 = vmatpush1.bf16.msra.mxu0 %v494
      %626 = vmatprep.subr.bf16.mxu0 0
      %627 = vmatpush1.bf16.msra.mxu0 0
      %628 = vmatprep.subr.bf16.mxu0 0
      %629 = vmatpush1.bf16.msra.mxu0 0
      %630 = vmatprep.subr.bf16.mxu0 0
      %631 = vmatpush1.bf16.msra.mxu0 0
      %632 = vmatprep.subr.bf16.mxu0 0
      %633 = vmatpush1.bf16.msra.mxu0 0
      %634 = vmatprep.subr.bf16.mxu0 0
      %635 = vmatpush1.bf16.msra.mxu0 0
      %636 = vmatprep.subr.bf16.mxu0 0
      %637 = vmatpush1.bf16.msra.mxu0 0
      %638 = vmatprep.subr.bf16.mxu0 0
      %639 = vmatpush1.bf16.msra.mxu0 0
      %640 = vmatprep.subr.bf16.mxu0 0
      %641 = vmatpush1.bf16.msra.mxu0 0
      %642 = vmatprep.subr.bf16.mxu0 0
      %643 = vmatpush1.bf16.msra.mxu0 0
      %644 = vmatprep.subr.bf16.mxu0 0
      %645 = vmatpush1.bf16.msra.mxu0 0
      %646 = vmatprep.subr.bf16.mxu0 0
      %647 = vmatpush1.bf16.msra.mxu0 0
      %648 = vmatprep.subr.bf16.mxu0 0
      %649 = vmatpush1.bf16.msra.mxu0 0
      %650 = vmatprep.subr.bf16.mxu0 0
      %651 = vmatpush1.bf16.msra.mxu0 0
      %652 = vmatprep.mubr.bf16.mxu0 0
      %653 = vmatmul.mubr.bf16.gmra.mrb[0].mxu0 %v609
      %v654 = vpop.f32.mrb[0].mxu0
      %v655 = vadd.f32 %v442, %v654
      %v656 = vpop.f32.mrb[0].mxu0
      %v657 = vpop.f32.mrb[0].mxu0
      %v658 = vadd.f32 %v442, %v657
      %v659 = vpop.f32.mrb[0].mxu0
      %660 = vmatprep.mubr.bf16.mxu0 0
      %661 = vmatmul.mubr.bf16.gmra.mrb[0].mxu0 %v612
      %v662 = vpop.f32.mrb[0].mxu0
      %v663 = vadd.f32 %v442, %v662
      %v664 = vpop.f32.mrb[0].mxu0
      %v665 = vpop.f32.mrb[0].mxu0
      %v666 = vadd.f32 %v442, %v665
      %v667 = vpop.f32.mrb[0].mxu0
      %668 = vmatprep.mubr.bf16.mxu0 0
      %669 = vmatmul.mubr.bf16.gmra.mrb[0].mxu0 %v615
      %v670 = vpop.f32.mrb[0].mxu0
      %v671 = vadd.f32 %v442, %v670
      %v672 = vpop.f32.mrb[0].mxu0
      %v673 = vpop.f32.mrb[0].mxu0
      %v674 = vadd.f32 %v442, %v673
      %v675 = vpop.f32.mrb[0].mxu0
      %676 = vmatprep.mubr.bf16.mxu0 0
      %677 = vmatmul.mubr.bf16.gmra.mrb[0].mxu0 %v618
      %v678 = vpop.f32.mrb[0].mxu0
      %v679 = vadd.f32 %v442, %v678
      %v680 = vpop.f32.mrb[0].mxu0
      %v681 = vpop.f32.mrb[0].mxu0
      %v682 = vadd.f32 %v442, %v681
      %v683 = vpop.f32.mrb[0].mxu0
      %684 = vdwg.mxu0
      %v685 = vmax.f32 %v655, 0.0
      %v686 = vmax.f32 %v658, 0.0
      %v687 = vmax.f32 %v663, 0.0
      %v688 = vmax.f32 %v666, 0.0
      %v689 = vmax.f32 %v671, 0.0
      %v690 = vmax.f32 %v674, 0.0
      %v691 = vmax.f32 %v679, 0.0
      %v692 = vmax.f32 %v682, 0.0
      %s693 = sadd.s32 64, 24
      %s694 = scalar_lea.vmem [#allocation2], %s693
      %695 = vst.msk [vmem:[%s694] sm:$0xff] %vm280, %v685
      %696 = vst.msk [vmem:[%s694 + $0x8] sm:$0xff] %vm280, %v686
      %697 = vst.msk [vmem:[%s694 + $0x10] sm:$0xff] %vm280, %v687
      %698 = vst.msk [vmem:[%s694 + $0x18] sm:$0xff] %vm280, %v688
      %699 = vst.msk [vmem:[%s694 + $0x20] sm:$0xff] %vm280, %v689
      %700 = vst.msk [vmem:[%s694 + $0x28] sm:$0xff] %vm280, %v690
      %701 = vst.msk [vmem:[%s694 + $0x30] sm:$0xff] %vm280, %v691
      %702 = vst.msk [vmem:[%s694 + $0x38] sm:$0xff] %vm280, %v692
      %s703 = scalar_lea.vmem %s273, 64
      %v704 = vld [vmem:[%s703] sm:$0xf]
      %v705 = vld [vmem:[%s703 + $0x4] sm:$0xf]
      %v706 = vld [vmem:[%s703 + $0x8] sm:$0xf]
      %v707 = vld [vmem:[%s703 + $0xc] sm:$0xf]
      %v708 = vld [vmem:[%s703 + $0x10] sm:$0xf]
      %v709 = vld [vmem:[%s703 + $0x14] sm:$0xf]
      %v710 = vld [vmem:[%s703 + $0x18] sm:$0xf]
      %v711 = vld [vmem:[%s703 + $0x1c] sm:$0xf]
      %v720 = vunpack.c.l.b16 %v704
      %v721 = vunpack.c.l.b16 %v705
      %v722 = vunpack.c.l.b16 %v706
      %v723 = vunpack.c.l.b16 %v707
      %v724 = vunpack.c.l.b16 %v708
      %v725 = vunpack.c.l.b16 %v709
      %v726 = vunpack.c.l.b16 %v710
      %v727 = vunpack.c.l.b16 %v711
      %v728 = vpack.c.b16 %v721, %v720
      %v729 = vpack.c.b16 %v723, %v722
      %v730 = vpack.c.b16 %v725, %v724
      %v731 = vpack.c.b16 %v727, %v726
      %v733 = vsel %vm479, %v728, 0
      %v736 = vsel %vm479, %v729, 0
      %v739 = vsel %vm479, %v730, 0
      %v742 = vsel %vm479, %v731, 0
      %744 = vmatprep.subr.bf16.mxu0 0
      %745 = vmatpush1.bf16.msra.mxu0 %v474
      %746 = vmatprep.subr.bf16.mxu0 0
      %747 = vmatpush1.bf16.msra.mxu0 %v475
      %748 = vmatprep.subr.bf16.mxu0 0
      %749 = vmatpush1.bf16.msra.mxu0 %v494
      %750 = vmatprep.subr.bf16.mxu0 0
      %751 = vmatpush1.bf16.msra.mxu0 0
      %752 = vmatprep.subr.bf16.mxu0 0
      %753 = vmatpush1.bf16.msra.mxu0 0
      %754 = vmatprep.subr.bf16.mxu0 0
      %755 = vmatpush1.bf16.msra.mxu0 0
      %756 = vmatprep.subr.bf16.mxu0 0
      %757 = vmatpush1.bf16.msra.mxu0 0
      %758 = vmatprep.subr.bf16.mxu0 0
      %759 = vmatpush1.bf16.msra.mxu0 0
      %760 = vmatprep.subr.bf16.mxu0 0
      %761 = vmatpush1.bf16.msra.mxu0 0
      %762 = vmatprep.subr.bf16.mxu0 0
      %763 = vmatpush1.bf16.msra.mxu0 0
      %764 = vmatprep.subr.bf16.mxu0 0
      %765 = vmatpush1.bf16.msra.mxu0 0
      %766 = vmatprep.subr.bf16.mxu0 0
      %767 = vmatpush1.bf16.msra.mxu0 0
      %768 = vmatprep.subr.bf16.mxu0 0
      %769 = vmatpush1.bf16.msra.mxu0 0
      %770 = vmatprep.subr.bf16.mxu0 0
      %771 = vmatpush1.bf16.msra.mxu0 0
      %772 = vmatprep.subr.bf16.mxu0 0
      %773 = vmatpush1.bf16.msra.mxu0 0
      %774 = vmatprep.subr.bf16.mxu0 0
      %775 = vmatpush1.bf16.msra.mxu0 0
      %776 = vmatprep.mubr.bf16.mxu0 0
      %777 = vmatmul.mubr.bf16.gmra.mrb[0].mxu0 %v733
      %v778 = vpop.f32.mrb[0].mxu0
      %v779 = vadd.f32 %v442, %v778
      %v780 = vpop.f32.mrb[0].mxu0
      %v781 = vpop.f32.mrb[0].mxu0
      %v782 = vadd.f32 %v442, %v781
      %v783 = vpop.f32.mrb[0].mxu0
      %784 = vmatprep.mubr.bf16.mxu0 0
      %785 = vmatmul.mubr.bf16.gmra.mrb[0].mxu0 %v736
      %v786 = vpop.f32.mrb[0].mxu0
      %v787 = vadd.f32 %v442, %v786
      %v788 = vpop.f32.mrb[0].mxu0
      %v789 = vpop.f32.mrb[0].mxu0
      %v790 = vadd.f32 %v442, %v789
      %v791 = vpop.f32.mrb[0].mxu0
      %792 = vmatprep.mubr.bf16.mxu0 0
      %793 = vmatmul.mubr.bf16.gmra.mrb[0].mxu0 %v739
      %v794 = vpop.f32.mrb[0].mxu0
      %v795 = vadd.f32 %v442, %v794
      %v796 = vpop.f32.mrb[0].mxu0
      %v797 = vpop.f32.mrb[0].mxu0
      %v798 = vadd.f32 %v442, %v797
      %v799 = vpop.f32.mrb[0].mxu0
      %800 = vmatprep.mubr.bf16.mxu0 0
      %801 = vmatmul.mubr.bf16.gmra.mrb[0].mxu0 %v742
      %v802 = vpop.f32.mrb[0].mxu0
      %v803 = vadd.f32 %v442, %v802
      %v804 = vpop.f32.mrb[0].mxu0
      %v805 = vpop.f32.mrb[0].mxu0
      %v806 = vadd.f32 %v442, %v805
      %v807 = vpop.f32.mrb[0].mxu0
      %808 = vdwg.mxu0
      %v809 = vmax.f32 %v779, 0.0
      %v810 = vmax.f32 %v782, 0.0
      %v811 = vmax.f32 %v787, 0.0
      %v812 = vmax.f32 %v790, 0.0
      %v813 = vmax.f32 %v795, 0.0
      %v814 = vmax.f32 %v798, 0.0
      %v815 = vmax.f32 %v803, 0.0
      %v816 = vmax.f32 %v806, 0.0
      %s817 = sadd.s32 128, 24
      %s818 = scalar_lea.vmem [#allocation2], %s817
      %819 = vst.msk [vmem:[%s818] sm:$0xff] %vm280, %v809
      %820 = vst.msk [vmem:[%s818 + $0x8] sm:$0xff] %vm280, %v810
      %821 = vst.msk [vmem:[%s818 + $0x10] sm:$0xff] %vm280, %v811
      %822 = vst.msk [vmem:[%s818 + $0x18] sm:$0xff] %vm280, %v812
      %823 = vst.msk [vmem:[%s818 + $0x20] sm:$0xff] %vm280, %v813
      %824 = vst.msk [vmem:[%s818 + $0x28] sm:$0xff] %vm280, %v814
      %825 = vst.msk [vmem:[%s818 + $0x30] sm:$0xff] %vm280, %v815
      %826 = vst.msk [vmem:[%s818 + $0x38] sm:$0xff] %vm280, %v816
      %s827 = scalar_lea.vmem %s273, 96
      %v828 = vld [vmem:[%s827] sm:$0xf]
      %v829 = vld [vmem:[%s827 + $0x4] sm:$0xf]
      %v830 = vld [vmem:[%s827 + $0x8] sm:$0xf]
      %v831 = vld [vmem:[%s827 + $0xc] sm:$0xf]
      %v832 = vld [vmem:[%s827 + $0x10] sm:$0xf]
      %v833 = vld [vmem:[%s827 + $0x14] sm:$0xf]
      %v834 = vld [vmem:[%s827 + $0x18] sm:$0xf]
      %v835 = vld [vmem:[%s827 + $0x1c] sm:$0xf]
      %v844 = vunpack.c.l.b16 %v828
      %v845 = vunpack.c.l.b16 %v829
      %v846 = vunpack.c.l.b16 %v830
      %v847 = vunpack.c.l.b16 %v831
      %v848 = vunpack.c.l.b16 %v832
      %v849 = vunpack.c.l.b16 %v833
      %v850 = vunpack.c.l.b16 %v834
      %v851 = vunpack.c.l.b16 %v835
      %v852 = vpack.c.b16 %v845, %v844
      %v853 = vpack.c.b16 %v847, %v846
      %v854 = vpack.c.b16 %v849, %v848
      %v855 = vpack.c.b16 %v851, %v850
      %v857 = vsel %vm479, %v852, 0
      %v860 = vsel %vm479, %v853, 0
      %v863 = vsel %vm479, %v854, 0
      %v866 = vsel %vm479, %v855, 0
      %868 = vmatprep.subr.bf16.mxu0 0
      %869 = vmatpush1.bf16.msra.mxu0 %v474
      %870 = vmatprep.subr.bf16.mxu0 0
      %871 = vmatpush1.bf16.msra.mxu0 %v475
      %872 = vmatprep.subr.bf16.mxu0 0
      %873 = vmatpush1.bf16.msra.mxu0 %v494
      %874 = vmatprep.subr.bf16.mxu0 0
      %875 = vmatpush1.bf16.msra.mxu0 0
      %876 = vmatprep.subr.bf16.mxu0 0
      %877 = vmatpush1.bf16.msra.mxu0 0
      %878 = vmatprep.subr.bf16.mxu0 0
      %879 = vmatpush1.bf16.msra.mxu0 0
      %880 = vmatprep.subr.bf16.mxu0 0
      %881 = vmatpush1.bf16.msra.mxu0 0
      %882 = vmatprep.subr.bf16.mxu0 0
      %883 = vmatpush1.bf16.msra.mxu0 0
      %884 = vmatprep.subr.bf16.mxu0 0
      %885 = vmatpush1.bf16.msra.mxu0 0
      %886 = vmatprep.subr.bf16.mxu0 0
      %887 = vmatpush1.bf16.msra.mxu0 0
      %888 = vmatprep.subr.bf16.mxu0 0
      %889 = vmatpush1.bf16.msra.mxu0 0
      %890 = vmatprep.subr.bf16.mxu0 0
      %891 = vmatpush1.bf16.msra.mxu0 0
      %892 = vmatprep.subr.bf16.mxu0 0
      %893 = vmatpush1.bf16.msra.mxu0 0
      %894 = vmatprep.subr.bf16.mxu0 0
      %895 = vmatpush1.bf16.msra.mxu0 0
      %896 = vmatprep.subr.bf16.mxu0 0
      %897 = vmatpush1.bf16.msra.mxu0 0
      %898 = vmatprep.subr.bf16.mxu0 0
      %899 = vmatpush1.bf16.msra.mxu0 0
      %900 = vmatprep.mubr.bf16.mxu0 0
      %901 = vmatmul.mubr.bf16.gmra.mrb[0].mxu0 %v857
      %v902 = vpop.f32.mrb[0].mxu0
      %v903 = vadd.f32 %v442, %v902
      %v904 = vpop.f32.mrb[0].mxu0
      %v905 = vpop.f32.mrb[0].mxu0
      %v906 = vadd.f32 %v442, %v905
      %v907 = vpop.f32.mrb[0].mxu0
      %908 = vmatprep.mubr.bf16.mxu0 0
      %909 = vmatmul.mubr.bf16.gmra.mrb[0].mxu0 %v860
      %v910 = vpop.f32.mrb[0].mxu0
      %v911 = vadd.f32 %v442, %v910
      %v912 = vpop.f32.mrb[0].mxu0
      %v913 = vpop.f32.mrb[0].mxu0
      %v914 = vadd.f32 %v442, %v913
      %v915 = vpop.f32.mrb[0].mxu0
      %916 = vmatprep.mubr.bf16.mxu0 0
      %917 = vmatmul.mubr.bf16.gmra.mrb[0].mxu0 %v863
      %v918 = vpop.f32.mrb[0].mxu0
      %v919 = vadd.f32 %v442, %v918
      %v920 = vpop.f32.mrb[0].mxu0
      %v921 = vpop.f32.mrb[0].mxu0
      %v922 = vadd.f32 %v442, %v921
      %v923 = vpop.f32.mrb[0].mxu0
      %924 = vmatprep.mubr.bf16.mxu0 0
      %925 = vmatmul.mubr.bf16.gmra.mrb[0].mxu0 %v866
      %v926 = vpop.f32.mrb[0].mxu0
      %v927 = vadd.f32 %v442, %v926
      %v928 = vpop.f32.mrb[0].mxu0
      %v929 = vpop.f32.mrb[0].mxu0
      %v930 = vadd.f32 %v442, %v929
      %v931 = vpop.f32.mrb[0].mxu0
      %932 = vdwg.mxu0
      %v933 = vmax.f32 %v903, 0.0
      %v934 = vmax.f32 %v906, 0.0
      %v935 = vmax.f32 %v911, 0.0
      %v936 = vmax.f32 %v914, 0.0
      %v937 = vmax.f32 %v919, 0.0
      %v938 = vmax.f32 %v922, 0.0
      %v939 = vmax.f32 %v927, 0.0
      %v940 = vmax.f32 %v930, 0.0
      %s941 = sadd.s32 192, 24
      %s942 = scalar_lea.vmem [#allocation2], %s941
      %943 = vst.msk [vmem:[%s942] sm:$0xff] %vm280, %v933
      %944 = vst.msk [vmem:[%s942 + $0x8] sm:$0xff] %vm280, %v934
      %945 = vst.msk [vmem:[%s942 + $0x10] sm:$0xff] %vm280, %v935
      %946 = vst.msk [vmem:[%s942 + $0x18] sm:$0xff] %vm280, %v936
      %947 = vst.msk [vmem:[%s942 + $0x20] sm:$0xff] %vm280, %v937
      %948 = vst.msk [vmem:[%s942 + $0x28] sm:$0xff] %vm280, %v938
      %949 = vst.msk [vmem:[%s942 + $0x30] sm:$0xff] %vm280, %v939
      %950 = vst.msk [vmem:[%s942 + $0x38] sm:$0xff] %vm280, %v940
      %v951 = vld [vmem:[#allocation2] sm:$0xff]
      %v952 = vld [vmem:[#allocation2 + $0x8] sm:$0xff]
      %v953 = vld [vmem:[#allocation2 + $0x10] sm:$0xff]
      %v954 = vld [vmem:[#allocation2 + $0x18] sm:$0xff]
      %v955 = vld [vmem:[#allocation2 + $0x20] sm:$0xff]
      %v956 = vld [vmem:[#allocation2 + $0x28] sm:$0xff]
      %v957 = vld [vmem:[#allocation2 + $0x30] sm:$0xff]
      %v958 = vld [vmem:[#allocation2 + $0x38] sm:$0xff]
      %v959 = vld [vmem:[#allocation2 + $0x40] sm:$0xff]
      %v960 = vld [vmem:[#allocation2 + $0x48] sm:$0xff]
      %v961 = vld [vmem:[#allocation2 + $0x50] sm:$0xff]
      %v962 = vld [vmem:[#allocation2 + $0x58] sm:$0xff]
      %v963 = vld [vmem:[#allocation2 + $0x60] sm:$0xff]
      %v964 = vld [vmem:[#allocation2 + $0x68] sm:$0xff]
      %v965 = vsel %vm392, 1, 0
      %v966 = vsel %vm393, 1, 0
      %v967 = vsel %vm394, 1, 0
      %v968 = vsel %vm395, 1, 0
      %v969 = vsel %vm396, 1, 0
      %v970 = vsel %vm397, 1, 0
      %v971 = vsel %vm398, 1, 0
      %v972 = vsel %vm399, 1, 0
      %vm973 = vcmp.eq.s32.totalorder %v965, 1
      %vm974 = vcmp.eq.s32.totalorder %v966, 1
      %vm975 = vcmp.eq.s32.totalorder %v967, 1
      %vm976 = vcmp.eq.s32.totalorder %v968, 1
      %vm977 = vcmp.eq.s32.totalorder %v969, 1
      %vm978 = vcmp.eq.s32.totalorder %v970, 1
      %vm979 = vcmp.eq.s32.totalorder %v971, 1
      %vm980 = vcmp.eq.s32.totalorder %v972, 1
      %vm990 = vcmask 1040384
      %v991 = vrot.slane %v951, 7
      %v992 = vrot.slane %v952, 7
      %v993 = vsel %vm990, %v991, %v992
      %v994 = vrot.slane %v953, 7
      %v995 = vsel %vm990, %v992, %v994
      %v996 = vrot.slane %v954, 7
      %v997 = vsel %vm990, %v994, %v996
      %v998 = vrot.slane %v955, 7
      %v999 = vsel %vm990, %v996, %v998
      %v1000 = vrot.slane %v956, 7
      %v1001 = vsel %vm990, %v998, %v1000
      %v1002 = vrot.slane %v957, 7
      %v1003 = vsel %vm990, %v1000, %v1002
      %v1004 = vrot.slane %v958, 7
      %v1005 = vsel %vm990, %v1002, %v1004
      %v1006 = vrot.slane %v959, 7
      %v1007 = vsel %vm990, %v1004, %v1006
      %v1016 = vsel %vm973, %v993, 0.0
      %v1017 = vsel %vm974, %v995, 0.0
      %v1018 = vsel %vm975, %v997, 0.0
      %v1019 = vsel %vm976, %v999, 0.0
      %v1020 = vsel %vm977, %v1001, 0.0
      %v1021 = vsel %vm978, %v1003, 0.0
      %v1022 = vsel %vm979, %v1005, 0.0
      %v1023 = vsel %vm980, %v1007, 0.0
      %v1024 = vsel %vm400, 1, 0
      %v1025 = vsel %vm401, 1, 0
      %v1026 = vsel %vm402, 1, 0
      %v1027 = vsel %vm403, 1, 0
      %v1028 = vsel %vm404, 1, 0
      %v1029 = vsel %vm405, 1, 0
      %v1030 = vsel %vm406, 1, 0
      %v1031 = vsel %vm407, 1, 0
      %vm1032 = vcmp.eq.s32.totalorder %v1024, 1
      %vm1033 = vcmp.eq.s32.totalorder %v1025, 1
      %vm1034 = vcmp.eq.s32.totalorder %v1026, 1
      %vm1035 = vcmp.eq.s32.totalorder %v1027, 1
      %vm1036 = vcmp.eq.s32.totalorder %v1028, 1
      %vm1037 = vcmp.eq.s32.totalorder %v1029, 1
      %vm1038 = vcmp.eq.s32.totalorder %v1030, 1
      %vm1039 = vcmp.eq.s32.totalorder %v1031, 1
      %vm1041 = vcmask 1046528
      %v1042 = vrot.slane %v952, 1
      %v1043 = vrot.slane %v953, 1
      %v1044 = vsel %vm1041, %v1042, %v1043
      %v1045 = vrot.slane %v954, 1
      %v1046 = vsel %vm1041, %v1043, %v1045
      %v1047 = vrot.slane %v955, 1
      %v1048 = vsel %vm1041, %v1045, %v1047
      %v1049 = vrot.slane %v956, 1
      %v1050 = vsel %vm1041, %v1047, %v1049
      %v1051 = vrot.slane %v957, 1
      %v1052 = vsel %vm1041, %v1049, %v1051
      %v1053 = vrot.slane %v958, 1
      %v1054 = vsel %vm1041, %v1051, %v1053
      %v1055 = vrot.slane %v959, 1
      %v1056 = vsel %vm1041, %v1053, %v1055
      %v1057 = vrot.slane %v960, 1
      %v1058 = vsel %vm1041, %v1055, %v1057
      %v1067 = vsel %vm1032, %v1044, 0.0
      %v1068 = vsel %vm1033, %v1046, 0.0
      %v1069 = vsel %vm1034, %v1048, 0.0
      %v1070 = vsel %vm1035, %v1050, 0.0
      %v1071 = vsel %vm1036, %v1052, 0.0
      %v1072 = vsel %vm1037, %v1054, 0.0
      %v1073 = vsel %vm1038, %v1056, 0.0
      %v1074 = vsel %vm1039, %v1058, 0.0
      %v1076 = vrot.slane %v960, 7
      %v1077 = vsel %vm990, %v1006, %v1076
      %v1078 = vrot.slane %v961, 7
      %v1079 = vsel %vm990, %v1076, %v1078
      %v1082 = vsel %vm973, %v997, 0.0
      %v1083 = vsel %vm974, %v999, 0.0
      %v1084 = vsel %vm975, %v1001, 0.0
      %v1085 = vsel %vm976, %v1003, 0.0
      %v1086 = vsel %vm977, %v1005, 0.0
      %v1087 = vsel %vm978, %v1007, 0.0
      %v1088 = vsel %vm979, %v1077, 0.0
      %v1089 = vsel %vm980, %v1079, 0.0
      %v1091 = vrot.slane %v961, 1
      %v1092 = vsel %vm1041, %v1057, %v1091
      %v1093 = vrot.slane %v962, 1
      %v1094 = vsel %vm1041, %v1091, %v1093
      %v1097 = vsel %vm1032, %v1048, 0.0
      %v1098 = vsel %vm1033, %v1050, 0.0
      %v1099 = vsel %vm1034, %v1052, 0.0
      %v1100 = vsel %vm1035, %v1054, 0.0
      %v1101 = vsel %vm1036, %v1056, 0.0
      %v1102 = vsel %vm1037, %v1058, 0.0
      %v1103 = vsel %vm1038, %v1092, 0.0
      %v1104 = vsel %vm1039, %v1094, 0.0
      %v1106 = vrot.slane %v962, 7
      %v1107 = vsel %vm990, %v1078, %v1106
      %v1108 = vrot.slane %v963, 7
      %v1109 = vsel %vm990, %v1106, %v1108
      %v1112 = vsel %vm973, %v1001, 0.0
      %v1113 = vsel %vm974, %v1003, 0.0
      %v1114 = vsel %vm975, %v1005, 0.0
      %v1115 = vsel %vm976, %v1007, 0.0
      %v1116 = vsel %vm977, %v1077, 0.0
      %v1117 = vsel %vm978, %v1079, 0.0
      %v1118 = vsel %vm979, %v1107, 0.0
      %v1119 = vsel %vm980, %v1109, 0.0
      %v1121 = vrot.slane %v963, 1
      %v1122 = vsel %vm1041, %v1093, %v1121
      %v1123 = vrot.slane %v964, 1
      %v1124 = vsel %vm1041, %v1121, %v1123
      %v1127 = vsel %vm1032, %v1052, 0.0
      %v1128 = vsel %vm1033, %v1054, 0.0
      %v1129 = vsel %vm1034, %v1056, 0.0
      %v1130 = vsel %vm1035, %v1058, 0.0
      %v1131 = vsel %vm1036, %v1092, 0.0
      %v1132 = vsel %vm1037, %v1094, 0.0
      %v1133 = vsel %vm1038, %v1122, 0.0
      %v1134 = vsel %vm1039, %v1124, 0.0
      %1135 = vrot.lane.b32.xlu0 %v952, 8
      %v1136 = vpop.permute.xlu0 %1135
      %1137 = vrot.lane.b32.xlu0 %v953, 8
      %v1138 = vpop.permute.xlu0 %1137
      %1139 = vrot.lane.b32.xlu0 %v954, 8
      %v1140 = vpop.permute.xlu0 %1139
      %1141 = vrot.lane.b32.xlu0 %v955, 8
      %v1142 = vpop.permute.xlu0 %1141
      %1143 = vrot.lane.b32.xlu0 %v956, 8
      %v1144 = vpop.permute.xlu0 %1143
      %1145 = vrot.lane.b32.xlu0 %v957, 8
      %v1146 = vpop.permute.xlu0 %1145
      %1147 = vrot.lane.b32.xlu0 %v958, 8
      %v1148 = vpop.permute.xlu0 %1147
      %1149 = vrot.lane.b32.xlu0 %v959, 8
      %v1150 = vpop.permute.xlu0 %1149
      %1167 = vrot.lane.b32.xlu0 %v1067, 16
      %v1168 = vpop.permute.xlu0 %1167
      %1169 = vrot.lane.b32.xlu0 %v1068, 16
      %v1170 = vpop.permute.xlu0 %1169
      %1171 = vrot.lane.b32.xlu0 %v1069, 16
      %v1172 = vpop.permute.xlu0 %1171
      %1173 = vrot.lane.b32.xlu0 %v1070, 16
      %v1174 = vpop.permute.xlu0 %1173
      %1175 = vrot.lane.b32.xlu0 %v1071, 16
      %v1176 = vpop.permute.xlu0 %1175
      %1177 = vrot.lane.b32.xlu0 %v1072, 16
      %v1178 = vpop.permute.xlu0 %1177
      %1179 = vrot.lane.b32.xlu0 %v1073, 16
      %v1180 = vpop.permute.xlu0 %1179
      %1181 = vrot.lane.b32.xlu0 %v1074, 16
      %v1182 = vpop.permute.xlu0 %1181
      %1199 = vrot.lane.b32.xlu0 %v1082, 24
      %v1200 = vpop.permute.xlu0 %1199
      %1201 = vrot.lane.b32.xlu0 %v1083, 24
      %v1202 = vpop.permute.xlu0 %1201
      %1203 = vrot.lane.b32.xlu0 %v1084, 24
      %v1204 = vpop.permute.xlu0 %1203
      %1205 = vrot.lane.b32.xlu0 %v1085, 24
      %v1206 = vpop.permute.xlu0 %1205
      %1207 = vrot.lane.b32.xlu0 %v1086, 24
      %v1208 = vpop.permute.xlu0 %1207
      %1209 = vrot.lane.b32.xlu0 %v1087, 24
      %v1210 = vpop.permute.xlu0 %1209
      %1211 = vrot.lane.b32.xlu0 %v1088, 24
      %v1212 = vpop.permute.xlu0 %1211
      %1213 = vrot.lane.b32.xlu0 %v1089, 24
      %v1214 = vpop.permute.xlu0 %1213
      %1223 = vrot.lane.b32.xlu0 %v954, 32
      %v1224 = vpop.permute.xlu0 %1223
      %1225 = vrot.lane.b32.xlu0 %v955, 32
      %v1226 = vpop.permute.xlu0 %1225
      %1227 = vrot.lane.b32.xlu0 %v956, 32
      %v1228 = vpop.permute.xlu0 %1227
      %1229 = vrot.lane.b32.xlu0 %v957, 32
      %v1230 = vpop.permute.xlu0 %1229
      %1231 = vrot.lane.b32.xlu0 %v958, 32
      %v1232 = vpop.permute.xlu0 %1231
      %1233 = vrot.lane.b32.xlu0 %v959, 32
      %v1234 = vpop.permute.xlu0 %1233
      %1235 = vrot.lane.b32.xlu0 %v960, 32
      %v1236 = vpop.permute.xlu0 %1235
      %1237 = vrot.lane.b32.xlu0 %v961, 32
      %v1238 = vpop.permute.xlu0 %1237
      %1255 = vrot.lane.b32.xlu0 %v1097, 40
      %v1256 = vpop.permute.xlu0 %1255
      %1257 = vrot.lane.b32.xlu0 %v1098, 40
      %v1258 = vpop.permute.xlu0 %1257
      %1259 = vrot.lane.b32.xlu0 %v1099, 40
      %v1260 = vpop.permute.xlu0 %1259
      %1261 = vrot.lane.b32.xlu0 %v1100, 40
      %v1262 = vpop.permute.xlu0 %1261
      %1263 = vrot.lane.b32.xlu0 %v1101, 40
      %v1264 = vpop.permute.xlu0 %1263
      %1265 = vrot.lane.b32.xlu0 %v1102, 40
      %v1266 = vpop.permute.xlu0 %1265
      %1267 = vrot.lane.b32.xlu0 %v1103, 40
      %v1268 = vpop.permute.xlu0 %1267
      %1269 = vrot.lane.b32.xlu0 %v1104, 40
      %v1270 = vpop.permute.xlu0 %1269
      %1287 = vrot.lane.b32.xlu0 %v1112, 48
      %v1288 = vpop.permute.xlu0 %1287
      %1289 = vrot.lane.b32.xlu0 %v1113, 48
      %v1290 = vpop.permute.xlu0 %1289
      %1291 = vrot.lane.b32.xlu0 %v1114, 48
      %v1292 = vpop.permute.xlu0 %1291
      %1293 = vrot.lane.b32.xlu0 %v1115, 48
      %v1294 = vpop.permute.xlu0 %1293
      %1295 = vrot.lane.b32.xlu0 %v1116, 48
      %v1296 = vpop.permute.xlu0 %1295
      %1297 = vrot.lane.b32.xlu0 %v1117, 48
      %v1298 = vpop.permute.xlu0 %1297
      %1299 = vrot.lane.b32.xlu0 %v1118, 48
      %v1300 = vpop.permute.xlu0 %1299
      %1301 = vrot.lane.b32.xlu0 %v1119, 48
      %v1302 = vpop.permute.xlu0 %1301
      %1311 = vrot.lane.b32.xlu0 %v956, 56
      %v1312 = vpop.permute.xlu0 %1311
      %1313 = vrot.lane.b32.xlu0 %v957, 56
      %v1314 = vpop.permute.xlu0 %1313
      %1315 = vrot.lane.b32.xlu0 %v958, 56
      %v1316 = vpop.permute.xlu0 %1315
      %1317 = vrot.lane.b32.xlu0 %v959, 56
      %v1318 = vpop.permute.xlu0 %1317
      %1319 = vrot.lane.b32.xlu0 %v960, 56
      %v1320 = vpop.permute.xlu0 %1319
      %1321 = vrot.lane.b32.xlu0 %v961, 56
      %v1322 = vpop.permute.xlu0 %1321
      %1323 = vrot.lane.b32.xlu0 %v962, 56
      %v1324 = vpop.permute.xlu0 %1323
      %1325 = vrot.lane.b32.xlu0 %v963, 56
      %v1326 = vpop.permute.xlu0 %1325
      %1343 = vrot.lane.b32.xlu0 %v1127, 64
      %v1344 = vpop.permute.xlu0 %1343
      %1345 = vrot.lane.b32.xlu0 %v1128, 64
      %v1346 = vpop.permute.xlu0 %1345
      %1347 = vrot.lane.b32.xlu0 %v1129, 64
      %v1348 = vpop.permute.xlu0 %1347
      %1349 = vrot.lane.b32.xlu0 %v1130, 64
      %v1350 = vpop.permute.xlu0 %1349
      %1351 = vrot.lane.b32.xlu0 %v1131, 64
      %v1352 = vpop.permute.xlu0 %1351
      %1353 = vrot.lane.b32.xlu0 %v1132, 64
      %v1354 = vpop.permute.xlu0 %1353
      %1355 = vrot.lane.b32.xlu0 %v1133, 64
      %v1356 = vpop.permute.xlu0 %1355
      %1357 = vrot.lane.b32.xlu0 %v1134, 64
      %v1358 = vpop.permute.xlu0 %1357
      %v1367 = vsel %vm280, %v1016, %v1136
      %v1368 = vsel %vm280, %v1017, %v1138
      %v1369 = vsel %vm280, %v1018, %v1140
      %v1370 = vsel %vm280, %v1019, %v1142
      %v1371 = vsel %vm280, %v1020, %v1144
      %v1372 = vsel %vm280, %v1021, %v1146
      %v1373 = vsel %vm280, %v1022, %v1148
      %v1374 = vsel %vm280, %v1023, %v1150
      %vm1375 = vcmask 130048
      %v1376 = vsel %vm1375, %v1367, %v1168
      %v1377 = vsel %vm1375, %v1368, %v1170
      %v1378 = vsel %vm1375, %v1369, %v1172
      %v1379 = vsel %vm1375, %v1370, %v1174
      %v1380 = vsel %vm1375, %v1371, %v1176
      %v1381 = vsel %vm1375, %v1372, %v1178
      %v1382 = vsel %vm1375, %v1373, %v1180
      %v1383 = vsel %vm1375, %v1374, %v1182
      %vm1384 = vcmask 195584
      %v1385 = vsel %vm1384, %v1376, %v1200
      %v1386 = vsel %vm1384, %v1377, %v1202
      %v1387 = vsel %vm1384, %v1378, %v1204
      %v1388 = vsel %vm1384, %v1379, %v1206
      %v1389 = vsel %vm1384, %v1380, %v1208
      %v1390 = vsel %vm1384, %v1381, %v1210
      %v1391 = vsel %vm1384, %v1382, %v1212
      %v1392 = vsel %vm1384, %v1383, %v1214
      %vm1393 = vcmask 261120
      %v1394 = vsel %vm1393, %v1385, %v1224
      %v1395 = vsel %vm1393, %v1386, %v1226
      %v1396 = vsel %vm1393, %v1387, %v1228
      %v1397 = vsel %vm1393, %v1388, %v1230
      %v1398 = vsel %vm1393, %v1389, %v1232
      %v1399 = vsel %vm1393, %v1390, %v1234
      %v1400 = vsel %vm1393, %v1391, %v1236
      %v1401 = vsel %vm1393, %v1392, %v1238
      %vm1402 = vcmask 326656
      %v1403 = vsel %vm1402, %v1394, %v1256
      %v1404 = vsel %vm1402, %v1395, %v1258
      %v1405 = vsel %vm1402, %v1396, %v1260
      %v1406 = vsel %vm1402, %v1397, %v1262
      %v1407 = vsel %vm1402, %v1398, %v1264
      %v1408 = vsel %vm1402, %v1399, %v1266
      %v1409 = vsel %vm1402, %v1400, %v1268
      %v1410 = vsel %vm1402, %v1401, %v1270
      %vm1411 = vcmask 392192
      %v1412 = vsel %vm1411, %v1403, %v1288
      %v1413 = vsel %vm1411, %v1404, %v1290
      %v1414 = vsel %vm1411, %v1405, %v1292
      %v1415 = vsel %vm1411, %v1406, %v1294
      %v1416 = vsel %vm1411, %v1407, %v1296
      %v1417 = vsel %vm1411, %v1408, %v1298
      %v1418 = vsel %vm1411, %v1409, %v1300
      %v1419 = vsel %vm1411, %v1410, %v1302
      %vm1420 = vcmask 457728
      %v1421 = vsel %vm1420, %v1412, %v1312
      %v1422 = vsel %vm1420, %v1413, %v1314
      %v1423 = vsel %vm1420, %v1414, %v1316
      %v1424 = vsel %vm1420, %v1415, %v1318
      %v1425 = vsel %vm1420, %v1416, %v1320
      %v1426 = vsel %vm1420, %v1417, %v1322
      %v1427 = vsel %vm1420, %v1418, %v1324
      %v1428 = vsel %vm1420, %v1419, %v1326
      %vm1429 = vcmask 523264
      %v1430 = vsel %vm1429, %v1421, %v1344
      %v1431 = vsel %vm1429, %v1422, %v1346
      %v1432 = vsel %vm1429, %v1423, %v1348
      %v1433 = vsel %vm1429, %v1424, %v1350
      %v1434 = vsel %vm1429, %v1425, %v1352
      %v1435 = vsel %vm1429, %v1426, %v1354
      %v1436 = vsel %vm1429, %v1427, %v1356
      %v1437 = vsel %vm1429, %v1428, %v1358
      %v1438 = vpack.c.bf16 %v1431, %v1430
      %v1439 = vpack.c.bf16 %v1433, %v1432
      %v1440 = vpack.c.bf16 %v1435, %v1434
      %v1441 = vpack.c.bf16 %v1437, %v1436
      %v1443 = vlaneseq
      %v1444 = vshrl.u32 %v1443, 7
      %v1445 = vsub.s32 0, %v1444
      %v1446 = vrot.slane %v423, %v1445
      %v1457 = vunpack.c.l.b16 %v414
      %v1458 = vunpack.c.l.b16 %v415
      %v1459 = vunpack.c.l.b16 %v416
      %v1460 = vunpack.c.l.b16 %v417
      %v1461 = vunpack.c.l.b16 %v418
      %v1462 = vunpack.c.l.b16 %v419
      %v1463 = vunpack.c.l.b16 %v420
      %v1464 = vunpack.c.l.b16 %v421
      %v1465 = vunpack.c.l.b16 %v422
      %v1466 = vpack.c.b16 %v1458, %v1457
      %v1467 = vpack.c.b16 %v1460, %v1459
      %v1468 = vpack.c.b16 %v1462, %v1461
      %v1469 = vpack.c.b16 %v1464, %v1463
      %v1470 = vpack.c.b16 %v1465, %v1465
      %vm1475 = vcmask 588800
      %v1477 = vsel %vm1475, %v1438, 0
      %v1480 = vsel %vm1475, %v1439, 0
      %v1483 = vsel %vm1475, %v1440, 0
      %v1486 = vsel %vm1475, %v1441, 0
      %vm1488 = vcmask 1043456
      %v1490 = vsel %vm1488, %v1470, 0
      %1492 = vmatprep.subr.bf16.mxu0 0
      %1493 = vmatpush1.bf16.msra.mxu0 %v1466
      %1494 = vmatprep.subr.bf16.mxu0 0
      %1495 = vmatpush1.bf16.msra.mxu0 %v1467
      %1496 = vmatprep.subr.bf16.mxu0 0
      %1497 = vmatpush1.bf16.msra.mxu0 %v1468
      %1498 = vmatprep.subr.bf16.mxu0 0
      %1499 = vmatpush1.bf16.msra.mxu0 %v1469
      %1500 = vmatprep.subr.bf16.mxu0 0
      %1501 = vmatpush1.bf16.msra.mxu0 %v1490
      %1502 = vmatprep.subr.bf16.mxu0 0
      %1503 = vmatpush1.bf16.msra.mxu0 0
      %1504 = vmatprep.subr.bf16.mxu0 0
      %1505 = vmatpush1.bf16.msra.mxu0 0
      %1506 = vmatprep.subr.bf16.mxu0 0
      %1507 = vmatpush1.bf16.msra.mxu0 0
      %1508 = vmatprep.subr.bf16.mxu0 0
      %1509 = vmatpush1.bf16.msra.mxu0 0
      %1510 = vmatprep.subr.bf16.mxu0 0
      %1511 = vmatpush1.bf16.msra.mxu0 0
      %1512 = vmatprep.subr.bf16.mxu0 0
      %1513 = vmatpush1.bf16.msra.mxu0 0
      %1514 = vmatprep.subr.bf16.mxu0 0
      %1515 = vmatpush1.bf16.msra.mxu0 0
      %1516 = vmatprep.subr.bf16.mxu0 0
      %1517 = vmatpush1.bf16.msra.mxu0 0
      %1518 = vmatprep.subr.bf16.mxu0 0
      %1519 = vmatpush1.bf16.msra.mxu0 0
      %1520 = vmatprep.subr.bf16.mxu0 0
      %1521 = vmatpush1.bf16.msra.mxu0 0
      %1522 = vmatprep.subr.bf16.mxu0 0
      %1523 = vmatpush1.bf16.msra.mxu0 0
      %1524 = vmatprep.mubr.bf16.mxu0 0
      %1525 = vmatmul.mubr.bf16.gmra.mrb[0].mxu0 %v1477
      %v1526 = vpop.f32.mrb[0].mxu0
      %v1527 = vadd.f32 %v1446, %v1526
      %v1528 = vpop.f32.mrb[0].mxu0
      %v1529 = vpop.f32.mrb[0].mxu0
      %v1530 = vadd.f32 %v1446, %v1529
      %v1531 = vpop.f32.mrb[0].mxu0
      %1532 = vmatprep.mubr.bf16.mxu0 0
      %1533 = vmatmul.mubr.bf16.gmra.mrb[0].mxu0 %v1480
      %v1534 = vpop.f32.mrb[0].mxu0
      %v1535 = vadd.f32 %v1446, %v1534
      %v1536 = vpop.f32.mrb[0].mxu0
      %v1537 = vpop.f32.mrb[0].mxu0
      %v1538 = vadd.f32 %v1446, %v1537
      %v1539 = vpop.f32.mrb[0].mxu0
      %1540 = vmatprep.mubr.bf16.mxu0 0
      %1541 = vmatmul.mubr.bf16.gmra.mrb[0].mxu0 %v1483
      %v1542 = vpop.f32.mrb[0].mxu0
      %v1543 = vadd.f32 %v1446, %v1542
      %v1544 = vpop.f32.mrb[0].mxu0
      %v1545 = vpop.f32.mrb[0].mxu0
      %v1546 = vadd.f32 %v1446, %v1545
      %v1547 = vpop.f32.mrb[0].mxu0
      %1548 = vmatprep.mubr.bf16.mxu0 0
      %1549 = vmatmul.mubr.bf16.gmra.mrb[0].mxu0 %v1486
      %v1550 = vpop.f32.mrb[0].mxu0
      %v1551 = vadd.f32 %v1446, %v1550
      %v1552 = vpop.f32.mrb[0].mxu0
      %v1553 = vpop.f32.mrb[0].mxu0
      %v1554 = vadd.f32 %v1446, %v1553
      %v1555 = vpop.f32.mrb[0].mxu0
      %1556 = vdwg.mxu0
      %v1557 = vmax.f32 %v1527, 0.0
      %v1558 = vmax.f32 %v1530, 0.0
      %v1559 = vmax.f32 %v1535, 0.0
      %v1560 = vmax.f32 %v1538, 0.0
      %v1561 = vmax.f32 %v1543, 0.0
      %v1562 = vmax.f32 %v1546, 0.0
      %v1563 = vmax.f32 %v1551, 0.0
      %v1564 = vmax.f32 %v1554, 0.0
      %v1565 = vld [vmem:[%s273] sm:$0xf]
      %v1566 = vld [vmem:[%s273 + $0x4] sm:$0xf]
      %v1567 = vld [vmem:[%s273 + $0x8] sm:$0xf]
      %v1568 = vld [vmem:[%s273 + $0xc] sm:$0xf]
      %v1569 = vld [vmem:[%s273 + $0x10] sm:$0xf]
      %v1570 = vld [vmem:[%s273 + $0x14] sm:$0xf]
      %v1571 = vld [vmem:[%s273 + $0x18] sm:$0xf]
      %v1572 = vld [vmem:[%s273 + $0x1c] sm:$0xf]
      %v1574 = vlaneseq
      %v1575 = vshrl.u32 %v1574, 7
      %v1576 = vsub.s32 0, %v1575
      %v1577 = vrot.slane %v429, %v1576
      %v1587 = vunpack.c.l.b16 %v1565
      %v1588 = vunpack.c.l.b16 %v1566
      %v1589 = vunpack.c.l.b16 %v1567
      %v1590 = vunpack.c.l.b16 %v1568
      %v1591 = vunpack.c.l.b16 %v1569
      %v1592 = vunpack.c.l.b16 %v1570
      %v1593 = vunpack.c.l.b16 %v1571
      %v1594 = vunpack.c.l.b16 %v1572
      %v1595 = vpack.c.b16 %v1588, %v1587
      %v1596 = vpack.c.b16 %v1590, %v1589
      %v1597 = vpack.c.b16 %v1592, %v1591
      %v1598 = vpack.c.b16 %v1594, %v1593
      %v1604 = vunpack.c.l.b16 %v424
      %v1605 = vunpack.c.l.b16 %v425
      %v1606 = vunpack.c.l.b16 %v426
      %v1607 = vunpack.c.l.b16 %v427
      %v1608 = vunpack.c.l.b16 %v428
      %v1609 = vpack.c.b16 %v1605, %v1604
      %v1610 = vpack.c.b16 %v1607, %v1606
      %v1611 = vpack.c.b16 %v1608, %v1608
      %v1615 = vsel %vm479, %v1595, 0
      %v1618 = vsel %vm479, %v1596, 0
      %v1621 = vsel %vm479, %v1597, 0
      %v1624 = vsel %vm479, %v1598, 0
      %v1627 = vsel %vm492, %v1611, 0
      %1629 = vmatprep.subr.bf16.mxu0 0
      %1630 = vmatpush1.bf16.msra.mxu0 %v1609
      %1631 = vmatprep.subr.bf16.mxu0 0
      %1632 = vmatpush1.bf16.msra.mxu0 %v1610
      %1633 = vmatprep.subr.bf16.mxu0 0
      %1634 = vmatpush1.bf16.msra.mxu0 %v1627
      %1635 = vmatprep.subr.bf16.mxu0 0
      %1636 = vmatpush1.bf16.msra.mxu0 0
      %1637 = vmatprep.subr.bf16.mxu0 0
      %1638 = vmatpush1.bf16.msra.mxu0 0
      %1639 = vmatprep.subr.bf16.mxu0 0
      %1640 = vmatpush1.bf16.msra.mxu0 0
      %1641 = vmatprep.subr.bf16.mxu0 0
      %1642 = vmatpush1.bf16.msra.mxu0 0
      %1643 = vmatprep.subr.bf16.mxu0 0
      %1644 = vmatpush1.bf16.msra.mxu0 0
      %1645 = vmatprep.subr.bf16.mxu0 0
      %1646 = vmatpush1.bf16.msra.mxu0 0
      %1647 = vmatprep.subr.bf16.mxu0 0
      %1648 = vmatpush1.bf16.msra.mxu0 0
      %1649 = vmatprep.subr.bf16.mxu0 0
      %1650 = vmatpush1.bf16.msra.mxu0 0
      %1651 = vmatprep.subr.bf16.mxu0 0
      %1652 = vmatpush1.bf16.msra.mxu0 0
      %1653 = vmatprep.subr.bf16.mxu0 0
      %1654 = vmatpush1.bf16.msra.mxu0 0
      %1655 = vmatprep.subr.bf16.mxu0 0
      %1656 = vmatpush1.bf16.msra.mxu0 0
      %1657 = vmatprep.subr.bf16.mxu0 0
      %1658 = vmatpush1.bf16.msra.mxu0 0
      %1659 = vmatprep.subr.bf16.mxu0 0
      %1660 = vmatpush1.bf16.msra.mxu0 0
      %1661 = vmatprep.mubr.bf16.mxu0 0
      %1662 = vmatmul.mubr.bf16.gmra.mrb[0].mxu0 %v1615
      %v1663 = vpop.f32.mrb[0].mxu0
      %v1664 = vadd.f32 %v1577, %v1663
      %v1665 = vpop.f32.mrb[0].mxu0
      %v1666 = vpop.f32.mrb[0].mxu0
      %v1667 = vadd.f32 %v1577, %v1666
      %v1668 = vpop.f32.mrb[0].mxu0
      %1669 = vmatprep.mubr.bf16.mxu0 0
      %1670 = vmatmul.mubr.bf16.gmra.mrb[0].mxu0 %v1618
      %v1671 = vpop.f32.mrb[0].mxu0
      %v1672 = vadd.f32 %v1577, %v1671
      %v1673 = vpop.f32.mrb[0].mxu0
      %v1674 = vpop.f32.mrb[0].mxu0
      %v1675 = vadd.f32 %v1577, %v1674
      %v1676 = vpop.f32.mrb[0].mxu0
      %1677 = vmatprep.mubr.bf16.mxu0 0
      %1678 = vmatmul.mubr.bf16.gmra.mrb[0].mxu0 %v1621
      %v1679 = vpop.f32.mrb[0].mxu0
      %v1680 = vadd.f32 %v1577, %v1679
      %v1681 = vpop.f32.mrb[0].mxu0
      %v1682 = vpop.f32.mrb[0].mxu0
      %v1683 = vadd.f32 %v1577, %v1682
      %v1684 = vpop.f32.mrb[0].mxu0
      %1685 = vmatprep.mubr.bf16.mxu0 0
      %1686 = vmatmul.mubr.bf16.gmra.mrb[0].mxu0 %v1624
      %v1687 = vpop.f32.mrb[0].mxu0
      %v1688 = vadd.f32 %v1577, %v1687
      %v1689 = vpop.f32.mrb[0].mxu0
      %v1690 = vpop.f32.mrb[0].mxu0
      %v1691 = vadd.f32 %v1577, %v1690
      %v1692 = vpop.f32.mrb[0].mxu0
      %1693 = vdwg.mxu0
      %v1694 = vadd.f32 %v1557, %v1664
      %v1695 = vadd.f32 %v1558, %v1667
      %v1696 = vadd.f32 %v1559, %v1672
      %v1697 = vadd.f32 %v1560, %v1675
      %v1698 = vadd.f32 %v1561, %v1680
      %v1699 = vadd.f32 %v1562, %v1683
      %v1700 = vadd.f32 %v1563, %v1688
      %v1701 = vadd.f32 %v1564, %v1691
      %v1702 = vmax.f32 %v1694, 0.0
      %v1703 = vmax.f32 %v1695, 0.0
      %v1704 = vmax.f32 %v1696, 0.0
      %v1705 = vmax.f32 %v1697, 0.0
      %v1706 = vmax.f32 %v1698, 0.0
      %v1707 = vmax.f32 %v1699, 0.0
      %v1708 = vmax.f32 %v1700, 0.0
      %v1709 = vmax.f32 %v1701, 0.0
      %1710 = vst.msk [vmem:[%s278] sm:$0xff] %vm280, %v1702
      %1711 = vst.msk [vmem:[%s278 + $0x8] sm:$0xff] %vm280, %v1703
      %1712 = vst.msk [vmem:[%s278 + $0x10] sm:$0xff] %vm280, %v1704
      %1713 = vst.msk [vmem:[%s278 + $0x18] sm:$0xff] %vm280, %v1705
      %1714 = vst.msk [vmem:[%s278 + $0x20] sm:$0xff] %vm280, %v1706
      %1715 = vst.msk [vmem:[%s278 + $0x28] sm:$0xff] %vm280, %v1707
      %1716 = vst.msk [vmem:[%s278 + $0x30] sm:$0xff] %vm280, %v1708
      %1717 = vst.msk [vmem:[%s278 + $0x38] sm:$0xff] %vm280, %v1709
      %s1718 = scalar_lea.vmem [#allocation2], 64
      %v1719 = vld [vmem:[%s1718] sm:$0xff]
      %v1720 = vld [vmem:[%s1718 + $0x8] sm:$0xff]
      %v1721 = vld [vmem:[%s1718 + $0x10] sm:$0xff]
      %v1722 = vld [vmem:[%s1718 + $0x18] sm:$0xff]
      %v1723 = vld [vmem:[%s1718 + $0x20] sm:$0xff]
      %v1724 = vld [vmem:[%s1718 + $0x28] sm:$0xff]
      %v1725 = vld [vmem:[%s1718 + $0x30] sm:$0xff]
      %v1726 = vld [vmem:[%s1718 + $0x38] sm:$0xff]
      %v1727 = vld [vmem:[%s1718 + $0x40] sm:$0xff]
      %v1728 = vld [vmem:[%s1718 + $0x48] sm:$0xff]
      %v1729 = vld [vmem:[%s1718 + $0x50] sm:$0xff]
      %v1730 = vld [vmem:[%s1718 + $0x58] sm:$0xff]
      %v1731 = vld [vmem:[%s1718 + $0x60] sm:$0xff]
      %v1732 = vld [vmem:[%s1718 + $0x68] sm:$0xff]
      %v1742 = vrot.slane %v1719, 7
      %v1743 = vrot.slane %v1720, 7
      %v1744 = vsel %vm990, %v1742, %v1743
      %v1745 = vrot.slane %v1721, 7
      %v1746 = vsel %vm990, %v1743, %v1745
      %v1747 = vrot.slane %v1722, 7
      %v1748 = vsel %vm990, %v1745, %v1747
      %v1749 = vrot.slane %v1723, 7
      %v1750 = vsel %vm990, %v1747, %v1749
      %v1751 = vrot.slane %v1724, 7
      %v1752 = vsel %vm990, %v1749, %v1751
      %v1753 = vrot.slane %v1725, 7
      %v1754 = vsel %vm990, %v1751, %v1753
      %v1755 = vrot.slane %v1726, 7
      %v1756 = vsel %vm990, %v1753, %v1755
      %v1757 = vrot.slane %v1727, 7
      %v1758 = vsel %vm990, %v1755, %v1757
      %v1767 = vsel %vm973, %v1744, 0.0
      %v1768 = vsel %vm974, %v1746, 0.0
      %v1769 = vsel %vm975, %v1748, 0.0
      %v1770 = vsel %vm976, %v1750, 0.0
      %v1771 = vsel %vm977, %v1752, 0.0
      %v1772 = vsel %vm978, %v1754, 0.0
      %v1773 = vsel %vm979, %v1756, 0.0
      %v1774 = vsel %vm980, %v1758, 0.0
      %v1776 = vrot.slane %v1720, 1
      %v1777 = vrot.slane %v1721, 1
      %v1778 = vsel %vm1041, %v1776, %v1777
      %v1779 = vrot.slane %v1722, 1
      %v1780 = vsel %vm1041, %v1777, %v1779
      %v1781 = vrot.slane %v1723, 1
      %v1782 = vsel %vm1041, %v1779, %v1781
      %v1783 = vrot.slane %v1724, 1
      %v1784 = vsel %vm1041, %v1781, %v1783
      %v1785 = vrot.slane %v1725, 1
      %v1786 = vsel %vm1041, %v1783, %v1785
      %v1787 = vrot.slane %v1726, 1
      %v1788 = vsel %vm1041, %v1785, %v1787
      %v1789 = vrot.slane %v1727, 1
      %v1790 = vsel %vm1041, %v1787, %v1789
      %v1791 = vrot.slane %v1728, 1
      %v1792 = vsel %vm1041, %v1789, %v1791
      %v1801 = vsel %vm1032, %v1778, 0.0
      %v1802 = vsel %vm1033, %v1780, 0.0
      %v1803 = vsel %vm1034, %v1782, 0.0
      %v1804 = vsel %vm1035, %v1784, 0.0
      %v1805 = vsel %vm1036, %v1786, 0.0
      %v1806 = vsel %vm1037, %v1788, 0.0
      %v1807 = vsel %vm1038, %v1790, 0.0
      %v1808 = vsel %vm1039, %v1792, 0.0
      %v1810 = vrot.slane %v1728, 7
      %v1811 = vsel %vm990, %v1757, %v1810
      %v1812 = vrot.slane %v1729, 7
      %v1813 = vsel %vm990, %v1810, %v1812
      %v1816 = vsel %vm973, %v1748, 0.0
      %v1817 = vsel %vm974, %v1750, 0.0
      %v1818 = vsel %vm975, %v1752, 0.0
      %v1819 = vsel %vm976, %v1754, 0.0
      %v1820 = vsel %vm977, %v1756, 0.0
      %v1821 = vsel %vm978, %v1758, 0.0
      %v1822 = vsel %vm979, %v1811, 0.0
      %v1823 = vsel %vm980, %v1813, 0.0
      %v1825 = vrot.slane %v1729, 1
      %v1826 = vsel %vm1041, %v1791, %v1825
      %v1827 = vrot.slane %v1730, 1
      %v1828 = vsel %vm1041, %v1825, %v1827
      %v1831 = vsel %vm1032, %v1782, 0.0
      %v1832 = vsel %vm1033, %v1784, 0.0
      %v1833 = vsel %vm1034, %v1786, 0.0
      %v1834 = vsel %vm1035, %v1788, 0.0
      %v1835 = vsel %vm1036, %v1790, 0.0
      %v1836 = vsel %vm1037, %v1792, 0.0
      %v1837 = vsel %vm1038, %v1826, 0.0
      %v1838 = vsel %vm1039, %v1828, 0.0
      %v1840 = vrot.slane %v1730, 7
      %v1841 = vsel %vm990, %v1812, %v1840
      %v1842 = vrot.slane %v1731, 7
      %v1843 = vsel %vm990, %v1840, %v1842
      %v1846 = vsel %vm973, %v1752, 0.0
      %v1847 = vsel %vm974, %v1754, 0.0
      %v1848 = vsel %vm975, %v1756, 0.0
      %v1849 = vsel %vm976, %v1758, 0.0
      %v1850 = vsel %vm977, %v1811, 0.0
      %v1851 = vsel %vm978, %v1813, 0.0
      %v1852 = vsel %vm979, %v1841, 0.0
      %v1853 = vsel %vm980, %v1843, 0.0
      %v1855 = vrot.slane %v1731, 1
      %v1856 = vsel %vm1041, %v1827, %v1855
      %v1857 = vrot.slane %v1732, 1
      %v1858 = vsel %vm1041, %v1855, %v1857
      %v1861 = vsel %vm1032, %v1786, 0.0
      %v1862 = vsel %vm1033, %v1788, 0.0
      %v1863 = vsel %vm1034, %v1790, 0.0
      %v1864 = vsel %vm1035, %v1792, 0.0
      %v1865 = vsel %vm1036, %v1826, 0.0
      %v1866 = vsel %vm1037, %v1828, 0.0
      %v1867 = vsel %vm1038, %v1856, 0.0
      %v1868 = vsel %vm1039, %v1858, 0.0
      %1869 = vrot.lane.b32.xlu0 %v1720, 8
      %v1870 = vpop.permute.xlu0 %1869
      %1871 = vrot.lane.b32.xlu0 %v1721, 8
      %v1872 = vpop.permute.xlu0 %1871
      %1873 = vrot.lane.b32.xlu0 %v1722, 8
      %v1874 = vpop.permute.xlu0 %1873
      %1875 = vrot.lane.b32.xlu0 %v1723, 8
      %v1876 = vpop.permute.xlu0 %1875
      %1877 = vrot.lane.b32.xlu0 %v1724, 8
      %v1878 = vpop.permute.xlu0 %1877
      %1879 = vrot.lane.b32.xlu0 %v1725, 8
      %v1880 = vpop.permute.xlu0 %1879
      %1881 = vrot.lane.b32.xlu0 %v1726, 8
      %v1882 = vpop.permute.xlu0 %1881
      %1883 = vrot.lane.b32.xlu0 %v1727, 8
      %v1884 = vpop.permute.xlu0 %1883
      %1901 = vrot.lane.b32.xlu0 %v1801, 16
      %v1902 = vpop.permute.xlu0 %1901
      %1903 = vrot.lane.b32.xlu0 %v1802, 16
      %v1904 = vpop.permute.xlu0 %1903
      %1905 = vrot.lane.b32.xlu0 %v1803, 16
      %v1906 = vpop.permute.xlu0 %1905
      %1907 = vrot.lane.b32.xlu0 %v1804, 16
      %v1908 = vpop.permute.xlu0 %1907
      %1909 = vrot.lane.b32.xlu0 %v1805, 16
      %v1910 = vpop.permute.xlu0 %1909
      %1911 = vrot.lane.b32.xlu0 %v1806, 16
      %v1912 = vpop.permute.xlu0 %1911
      %1913 = vrot.lane.b32.xlu0 %v1807, 16
      %v1914 = vpop.permute.xlu0 %1913
      %1915 = vrot.lane.b32.xlu0 %v1808, 16
      %v1916 = vpop.permute.xlu0 %1915
      %1933 = vrot.lane.b32.xlu0 %v1816, 24
      %v1934 = vpop.permute.xlu0 %1933
      %1935 = vrot.lane.b32.xlu0 %v1817, 24
      %v1936 = vpop.permute.xlu0 %1935
      %1937 = vrot.lane.b32.xlu0 %v1818, 24
      %v1938 = vpop.permute.xlu0 %1937
      %1939 = vrot.lane.b32.xlu0 %v1819, 24
      %v1940 = vpop.permute.xlu0 %1939
      %1941 = vrot.lane.b32.xlu0 %v1820, 24
      %v1942 = vpop.permute.xlu0 %1941
      %1943 = vrot.lane.b32.xlu0 %v1821, 24
      %v1944 = vpop.permute.xlu0 %1943
      %1945 = vrot.lane.b32.xlu0 %v1822, 24
      %v1946 = vpop.permute.xlu0 %1945
      %1947 = vrot.lane.b32.xlu0 %v1823, 24
      %v1948 = vpop.permute.xlu0 %1947
      %1957 = vrot.lane.b32.xlu0 %v1722, 32
      %v1958 = vpop.permute.xlu0 %1957
      %1959 = vrot.lane.b32.xlu0 %v1723, 32
      %v1960 = vpop.permute.xlu0 %1959
      %1961 = vrot.lane.b32.xlu0 %v1724, 32
      %v1962 = vpop.permute.xlu0 %1961
      %1963 = vrot.lane.b32.xlu0 %v1725, 32
      %v1964 = vpop.permute.xlu0 %1963
      %1965 = vrot.lane.b32.xlu0 %v1726, 32
      %v1966 = vpop.permute.xlu0 %1965
      %1967 = vrot.lane.b32.xlu0 %v1727, 32
      %v1968 = vpop.permute.xlu0 %1967
      %1969 = vrot.lane.b32.xlu0 %v1728, 32
      %v1970 = vpop.permute.xlu0 %1969
      %1971 = vrot.lane.b32.xlu0 %v1729, 32
      %v1972 = vpop.permute.xlu0 %1971
      %1989 = vrot.lane.b32.xlu0 %v1831, 40
      %v1990 = vpop.permute.xlu0 %1989
      %1991 = vrot.lane.b32.xlu0 %v1832, 40
      %v1992 = vpop.permute.xlu0 %1991
      %1993 = vrot.lane.b32.xlu0 %v1833, 40
      %v1994 = vpop.permute.xlu0 %1993
      %1995 = vrot.lane.b32.xlu0 %v1834, 40
      %v1996 = vpop.permute.xlu0 %1995
      %1997 = vrot.lane.b32.xlu0 %v1835, 40
      %v1998 = vpop.permute.xlu0 %1997
      %1999 = vrot.lane.b32.xlu0 %v1836, 40
      %v2000 = vpop.permute.xlu0 %1999
      %2001 = vrot.lane.b32.xlu0 %v1837, 40
      %v2002 = vpop.permute.xlu0 %2001
      %2003 = vrot.lane.b32.xlu0 %v1838, 40
      %v2004 = vpop.permute.xlu0 %2003
      %2021 = vrot.lane.b32.xlu0 %v1846, 48
      %v2022 = vpop.permute.xlu0 %2021
      %2023 = vrot.lane.b32.xlu0 %v1847, 48
      %v2024 = vpop.permute.xlu0 %2023
      %2025 = vrot.lane.b32.xlu0 %v1848, 48
      %v2026 = vpop.permute.xlu0 %2025
      %2027 = vrot.lane.b32.xlu0 %v1849, 48
      %v2028 = vpop.permute.xlu0 %2027
      %2029 = vrot.lane.b32.xlu0 %v1850, 48
      %v2030 = vpop.permute.xlu0 %2029
      %2031 = vrot.lane.b32.xlu0 %v1851, 48
      %v2032 = vpop.permute.xlu0 %2031
      %2033 = vrot.lane.b32.xlu0 %v1852, 48
      %v2034 = vpop.permute.xlu0 %2033
      %2035 = vrot.lane.b32.xlu0 %v1853, 48
      %v2036 = vpop.permute.xlu0 %2035
      %2045 = vrot.lane.b32.xlu0 %v1724, 56
      %v2046 = vpop.permute.xlu0 %2045
      %2047 = vrot.lane.b32.xlu0 %v1725, 56
      %v2048 = vpop.permute.xlu0 %2047
      %2049 = vrot.lane.b32.xlu0 %v1726, 56
      %v2050 = vpop.permute.xlu0 %2049
      %2051 = vrot.lane.b32.xlu0 %v1727, 56
      %v2052 = vpop.permute.xlu0 %2051
      %2053 = vrot.lane.b32.xlu0 %v1728, 56
      %v2054 = vpop.permute.xlu0 %2053
      %2055 = vrot.lane.b32.xlu0 %v1729, 56
      %v2056 = vpop.permute.xlu0 %2055
      %2057 = vrot.lane.b32.xlu0 %v1730, 56
      %v2058 = vpop.permute.xlu0 %2057
      %2059 = vrot.lane.b32.xlu0 %v1731, 56
      %v2060 = vpop.permute.xlu0 %2059
      %2077 = vrot.lane.b32.xlu0 %v1861, 64
      %v2078 = vpop.permute.xlu0 %2077
      %2079 = vrot.lane.b32.xlu0 %v1862, 64
      %v2080 = vpop.permute.xlu0 %2079
      %2081 = vrot.lane.b32.xlu0 %v1863, 64
      %v2082 = vpop.permute.xlu0 %2081
      %2083 = vrot.lane.b32.xlu0 %v1864, 64
      %v2084 = vpop.permute.xlu0 %2083
      %2085 = vrot.lane.b32.xlu0 %v1865, 64
      %v2086 = vpop.permute.xlu0 %2085
      %2087 = vrot.lane.b32.xlu0 %v1866, 64
      %v2088 = vpop.permute.xlu0 %2087
      %2089 = vrot.lane.b32.xlu0 %v1867, 64
      %v2090 = vpop.permute.xlu0 %2089
      %2091 = vrot.lane.b32.xlu0 %v1868, 64
      %v2092 = vpop.permute.xlu0 %2091
      %v2101 = vsel %vm280, %v1767, %v1870
      %v2102 = vsel %vm280, %v1768, %v1872
      %v2103 = vsel %vm280, %v1769, %v1874
      %v2104 = vsel %vm280, %v1770, %v1876
      %v2105 = vsel %vm280, %v1771, %v1878
      %v2106 = vsel %vm280, %v1772, %v1880
      %v2107 = vsel %vm280, %v1773, %v1882
      %v2108 = vsel %vm280, %v1774, %v1884
      %v2109 = vsel %vm1375, %v2101, %v1902
      %v2110 = vsel %vm1375, %v2102, %v1904
      %v2111 = vsel %vm1375, %v2103, %v1906
      %v2112 = vsel %vm1375, %v2104, %v1908
      %v2113 = vsel %vm1375, %v2105, %v1910
      %v2114 = vsel %vm1375, %v2106, %v1912
      %v2115 = vsel %vm1375, %v2107, %v1914
      %v2116 = vsel %vm1375, %v2108, %v1916
      %v2117 = vsel %vm1384, %v2109, %v1934
      %v2118 = vsel %vm1384, %v2110, %v1936
      %v2119 = vsel %vm1384, %v2111, %v1938
      %v2120 = vsel %vm1384, %v2112, %v1940
      %v2121 = vsel %vm1384, %v2113, %v1942
      %v2122 = vsel %vm1384, %v2114, %v1944
      %v2123 = vsel %vm1384, %v2115, %v1946
      %v2124 = vsel %vm1384, %v2116, %v1948
      %v2125 = vsel %vm1393, %v2117, %v1958
      %v2126 = vsel %vm1393, %v2118, %v1960
      %v2127 = vsel %vm1393, %v2119, %v1962
      %v2128 = vsel %vm1393, %v2120, %v1964
      %v2129 = vsel %vm1393, %v2121, %v1966
      %v2130 = vsel %vm1393, %v2122, %v1968
      %v2131 = vsel %vm1393, %v2123, %v1970
      %v2132 = vsel %vm1393, %v2124, %v1972
      %v2133 = vsel %vm1402, %v2125, %v1990
      %v2134 = vsel %vm1402, %v2126, %v1992
      %v2135 = vsel %vm1402, %v2127, %v1994
      %v2136 = vsel %vm1402, %v2128, %v1996
      %v2137 = vsel %vm1402, %v2129, %v1998
      %v2138 = vsel %vm1402, %v2130, %v2000
      %v2139 = vsel %vm1402, %v2131, %v2002
      %v2140 = vsel %vm1402, %v2132, %v2004
      %v2141 = vsel %vm1411, %v2133, %v2022
      %v2142 = vsel %vm1411, %v2134, %v2024
      %v2143 = vsel %vm1411, %v2135, %v2026
      %v2144 = vsel %vm1411, %v2136, %v2028
      %v2145 = vsel %vm1411, %v2137, %v2030
      %v2146 = vsel %vm1411, %v2138, %v2032
      %v2147 = vsel %vm1411, %v2139, %v2034
      %v2148 = vsel %vm1411, %v2140, %v2036
      %v2149 = vsel %vm1420, %v2141, %v2046
      %v2150 = vsel %vm1420, %v2142, %v2048
      %v2151 = vsel %vm1420, %v2143, %v2050
      %v2152 = vsel %vm1420, %v2144, %v2052
      %v2153 = vsel %vm1420, %v2145, %v2054
      %v2154 = vsel %vm1420, %v2146, %v2056
      %v2155 = vsel %vm1420, %v2147, %v2058
      %v2156 = vsel %vm1420, %v2148, %v2060
      %v2157 = vsel %vm1429, %v2149, %v2078
      %v2158 = vsel %vm1429, %v2150, %v2080
      %v2159 = vsel %vm1429, %v2151, %v2082
      %v2160 = vsel %vm1429, %v2152, %v2084
      %v2161 = vsel %vm1429, %v2153, %v2086
      %v2162 = vsel %vm1429, %v2154, %v2088
      %v2163 = vsel %vm1429, %v2155, %v2090
      %v2164 = vsel %vm1429, %v2156, %v2092
      %v2165 = vpack.c.bf16 %v2158, %v2157
      %v2166 = vpack.c.bf16 %v2160, %v2159
      %v2167 = vpack.c.bf16 %v2162, %v2161
      %v2168 = vpack.c.bf16 %v2164, %v2163
      %v2170 = vsel %vm1475, %v2165, 0
      %v2173 = vsel %vm1475, %v2166, 0
      %v2176 = vsel %vm1475, %v2167, 0
      %v2179 = vsel %vm1475, %v2168, 0
      %2181 = vmatprep.subr.bf16.mxu0 0
      %2182 = vmatpush1.bf16.msra.mxu0 %v1466
      %2183 = vmatprep.subr.bf16.mxu0 0
      %2184 = vmatpush1.bf16.msra.mxu0 %v1467
      %2185 = vmatprep.subr.bf16.mxu0 0
      %2186 = vmatpush1.bf16.msra.mxu0 %v1468
      %2187 = vmatprep.subr.bf16.mxu0 0
      %2188 = vmatpush1.bf16.msra.mxu0 %v1469
      %2189 = vmatprep.subr.bf16.mxu0 0
      %2190 = vmatpush1.bf16.msra.mxu0 %v1490
      %2191 = vmatprep.subr.bf16.mxu0 0
      %2192 = vmatpush1.bf16.msra.mxu0 0
      %2193 = vmatprep.subr.bf16.mxu0 0
      %2194 = vmatpush1.bf16.msra.mxu0 0
      %2195 = vmatprep.subr.bf16.mxu0 0
      %2196 = vmatpush1.bf16.msra.mxu0 0
      %2197 = vmatprep.subr.bf16.mxu0 0
      %2198 = vmatpush1.bf16.msra.mxu0 0
      %2199 = vmatprep.subr.bf16.mxu0 0
      %2200 = vmatpush1.bf16.msra.mxu0 0
      %2201 = vmatprep.subr.bf16.mxu0 0
      %2202 = vmatpush1.bf16.msra.mxu0 0
      %2203 = vmatprep.subr.bf16.mxu0 0
      %2204 = vmatpush1.bf16.msra.mxu0 0
      %2205 = vmatprep.subr.bf16.mxu0 0
      %2206 = vmatpush1.bf16.msra.mxu0 0
      %2207 = vmatprep.subr.bf16.mxu0 0
      %2208 = vmatpush1.bf16.msra.mxu0 0
      %2209 = vmatprep.subr.bf16.mxu0 0
      %2210 = vmatpush1.bf16.msra.mxu0 0
      %2211 = vmatprep.subr.bf16.mxu0 0
      %2212 = vmatpush1.bf16.msra.mxu0 0
      %2213 = vmatprep.mubr.bf16.mxu0 0
      %2214 = vmatmul.mubr.bf16.gmra.mrb[0].mxu0 %v2170
      %v2215 = vpop.f32.mrb[0].mxu0
      %v2216 = vadd.f32 %v1446, %v2215
      %v2217 = vpop.f32.mrb[0].mxu0
      %v2218 = vpop.f32.mrb[0].mxu0
      %v2219 = vadd.f32 %v1446, %v2218
      %v2220 = vpop.f32.mrb[0].mxu0
      %2221 = vmatprep.mubr.bf16.mxu0 0
      %2222 = vmatmul.mubr.bf16.gmra.mrb[0].mxu0 %v2173
      %v2223 = vpop.f32.mrb[0].mxu0
      %v2224 = vadd.f32 %v1446, %v2223
      %v2225 = vpop.f32.mrb[0].mxu0
      %v2226 = vpop.f32.mrb[0].mxu0
      %v2227 = vadd.f32 %v1446, %v2226
      %v2228 = vpop.f32.mrb[0].mxu0
      %2229 = vmatprep.mubr.bf16.mxu0 0
      %2230 = vmatmul.mubr.bf16.gmra.mrb[0].mxu0 %v2176
      %v2231 = vpop.f32.mrb[0].mxu0
      %v2232 = vadd.f32 %v1446, %v2231
      %v2233 = vpop.f32.mrb[0].mxu0
      %v2234 = vpop.f32.mrb[0].mxu0
      %v2235 = vadd.f32 %v1446, %v2234
      %v2236 = vpop.f32.mrb[0].mxu0
      %2237 = vmatprep.mubr.bf16.mxu0 0
      %2238 = vmatmul.mubr.bf16.gmra.mrb[0].mxu0 %v2179
      %v2239 = vpop.f32.mrb[0].mxu0
      %v2240 = vadd.f32 %v1446, %v2239
      %v2241 = vpop.f32.mrb[0].mxu0
      %v2242 = vpop.f32.mrb[0].mxu0
      %v2243 = vadd.f32 %v1446, %v2242
      %v2244 = vpop.f32.mrb[0].mxu0
      %2245 = vdwg.mxu0
      %v2246 = vmax.f32 %v2216, 0.0
      %v2247 = vmax.f32 %v2219, 0.0
      %v2248 = vmax.f32 %v2224, 0.0
      %v2249 = vmax.f32 %v2227, 0.0
      %v2250 = vmax.f32 %v2232, 0.0
      %v2251 = vmax.f32 %v2235, 0.0
      %v2252 = vmax.f32 %v2240, 0.0
      %v2253 = vmax.f32 %v2243, 0.0
      %v2254 = vld [vmem:[%s579] sm:$0xf]
      %v2255 = vld [vmem:[%s579 + $0x4] sm:$0xf]
      %v2256 = vld [vmem:[%s579 + $0x8] sm:$0xf]
      %v2257 = vld [vmem:[%s579 + $0xc] sm:$0xf]
      %v2258 = vld [vmem:[%s579 + $0x10] sm:$0xf]
      %v2259 = vld [vmem:[%s579 + $0x14] sm:$0xf]
      %v2260 = vld [vmem:[%s579 + $0x18] sm:$0xf]
      %v2261 = vld [vmem:[%s579 + $0x1c] sm:$0xf]
      %v2270 = vunpack.c.l.b16 %v2254
      %v2271 = vunpack.c.l.b16 %v2255
      %v2272 = vunpack.c.l.b16 %v2256
      %v2273 = vunpack.c.l.b16 %v2257
      %v2274 = vunpack.c.l.b16 %v2258
      %v2275 = vunpack.c.l.b16 %v2259
      %v2276 = vunpack.c.l.b16 %v2260
      %v2277 = vunpack.c.l.b16 %v2261
      %v2278 = vpack.c.b16 %v2271, %v2270
      %v2279 = vpack.c.b16 %v2273, %v2272
      %v2280 = vpack.c.b16 %v2275, %v2274
      %v2281 = vpack.c.b16 %v2277, %v2276
      %v2283 = vsel %vm479, %v2278, 0
      %v2286 = vsel %vm479, %v2279, 0
      %v2289 = vsel %vm479, %v2280, 0
      %v2292 = vsel %vm479, %v2281, 0
      %2294 = vmatprep.subr.bf16.mxu0 0
      %2295 = vmatpush1.bf16.msra.mxu0 %v1609
      %2296 = vmatprep.subr.bf16.mxu0 0
      %2297 = vmatpush1.bf16.msra.mxu0 %v1610
      %2298 = vmatprep.subr.bf16.mxu0 0
      %2299 = vmatpush1.bf16.msra.mxu0 %v1627
      %2300 = vmatprep.subr.bf16.mxu0 0
      %2301 = vmatpush1.bf16.msra.mxu0 0
      %2302 = vmatprep.subr.bf16.mxu0 0
      %2303 = vmatpush1.bf16.msra.mxu0 0
      %2304 = vmatprep.subr.bf16.mxu0 0
      %2305 = vmatpush1.bf16.msra.mxu0 0
      %2306 = vmatprep.subr.bf16.mxu0 0
      %2307 = vmatpush1.bf16.msra.mxu0 0
      %2308 = vmatprep.subr.bf16.mxu0 0
      %2309 = vmatpush1.bf16.msra.mxu0 0
      %2310 = vmatprep.subr.bf16.mxu0 0
      %2311 = vmatpush1.bf16.msra.mxu0 0
      %2312 = vmatprep.subr.bf16.mxu0 0
      %2313 = vmatpush1.bf16.msra.mxu0 0
      %2314 = vmatprep.subr.bf16.mxu0 0
      %2315 = vmatpush1.bf16.msra.mxu0 0
      %2316 = vmatprep.subr.bf16.mxu0 0
      %2317 = vmatpush1.bf16.msra.mxu0 0
      %2318 = vmatprep.subr.bf16.mxu0 0
      %2319 = vmatpush1.bf16.msra.mxu0 0
      %2320 = vmatprep.subr.bf16.mxu0 0
      %2321 = vmatpush1.bf16.msra.mxu0 0
      %2322 = vmatprep.subr.bf16.mxu0 0
      %2323 = vmatpush1.bf16.msra.mxu0 0
      %2324 = vmatprep.subr.bf16.mxu0 0
      %2325 = vmatpush1.bf16.msra.mxu0 0
      %2326 = vmatprep.mubr.bf16.mxu0 0
      %2327 = vmatmul.mubr.bf16.gmra.mrb[0].mxu0 %v2283
      %v2328 = vpop.f32.mrb[0].mxu0
      %v2329 = vadd.f32 %v1577, %v2328
      %v2330 = vpop.f32.mrb[0].mxu0
      %v2331 = vpop.f32.mrb[0].mxu0
      %v2332 = vadd.f32 %v1577, %v2331
      %v2333 = vpop.f32.mrb[0].mxu0
      %2334 = vmatprep.mubr.bf16.mxu0 0
      %2335 = vmatmul.mubr.bf16.gmra.mrb[0].mxu0 %v2286
      %v2336 = vpop.f32.mrb[0].mxu0
      %v2337 = vadd.f32 %v1577, %v2336
      %v2338 = vpop.f32.mrb[0].mxu0
      %v2339 = vpop.f32.mrb[0].mxu0
      %v2340 = vadd.f32 %v1577, %v2339
      %v2341 = vpop.f32.mrb[0].mxu0
      %2342 = vmatprep.mubr.bf16.mxu0 0
      %2343 = vmatmul.mubr.bf16.gmra.mrb[0].mxu0 %v2289
      %v2344 = vpop.f32.mrb[0].mxu0
      %v2345 = vadd.f32 %v1577, %v2344
      %v2346 = vpop.f32.mrb[0].mxu0
      %v2347 = vpop.f32.mrb[0].mxu0
      %v2348 = vadd.f32 %v1577, %v2347
      %v2349 = vpop.f32.mrb[0].mxu0
      %2350 = vmatprep.mubr.bf16.mxu0 0
      %2351 = vmatmul.mubr.bf16.gmra.mrb[0].mxu0 %v2292
      %v2352 = vpop.f32.mrb[0].mxu0
      %v2353 = vadd.f32 %v1577, %v2352
      %v2354 = vpop.f32.mrb[0].mxu0
      %v2355 = vpop.f32.mrb[0].mxu0
      %v2356 = vadd.f32 %v1577, %v2355
      %v2357 = vpop.f32.mrb[0].mxu0
      %2358 = vdwg.mxu0
      %v2359 = vadd.f32 %v2246, %v2329
      %v2360 = vadd.f32 %v2247, %v2332
      %v2361 = vadd.f32 %v2248, %v2337
      %v2362 = vadd.f32 %v2249, %v2340
      %v2363 = vadd.f32 %v2250, %v2345
      %v2364 = vadd.f32 %v2251, %v2348
      %v2365 = vadd.f32 %v2252, %v2353
      %v2366 = vadd.f32 %v2253, %v2356
      %v2367 = vmax.f32 %v2359, 0.0
      %v2368 = vmax.f32 %v2360, 0.0
      %v2369 = vmax.f32 %v2361, 0.0
      %v2370 = vmax.f32 %v2362, 0.0
      %v2371 = vmax.f32 %v2363, 0.0
      %v2372 = vmax.f32 %v2364, 0.0
      %v2373 = vmax.f32 %v2365, 0.0
      %v2374 = vmax.f32 %v2366, 0.0
      %s2375 = scalar_lea.vmem %s278, 64
      %2376 = vst.msk [vmem:[%s2375] sm:$0xff] %vm280, %v2367
      %2377 = vst.msk [vmem:[%s2375 + $0x8] sm:$0xff] %vm280, %v2368
      %2378 = vst.msk [vmem:[%s2375 + $0x10] sm:$0xff] %vm280, %v2369
      %2379 = vst.msk [vmem:[%s2375 + $0x18] sm:$0xff] %vm280, %v2370
      %2380 = vst.msk [vmem:[%s2375 + $0x20] sm:$0xff] %vm280, %v2371
      %2381 = vst.msk [vmem:[%s2375 + $0x28] sm:$0xff] %vm280, %v2372
      %2382 = vst.msk [vmem:[%s2375 + $0x30] sm:$0xff] %vm280, %v2373
      %2383 = vst.msk [vmem:[%s2375 + $0x38] sm:$0xff] %vm280, %v2374
      %s2384 = scalar_lea.vmem [#allocation2], 128
      %v2385 = vld [vmem:[%s2384] sm:$0xff]
      %v2386 = vld [vmem:[%s2384 + $0x8] sm:$0xff]
      %v2387 = vld [vmem:[%s2384 + $0x10] sm:$0xff]
      %v2388 = vld [vmem:[%s2384 + $0x18] sm:$0xff]
      %v2389 = vld [vmem:[%s2384 + $0x20] sm:$0xff]
      %v2390 = vld [vmem:[%s2384 + $0x28] sm:$0xff]
      %v2391 = vld [vmem:[%s2384 + $0x30] sm:$0xff]
      %v2392 = vld [vmem:[%s2384 + $0x38] sm:$0xff]
      %v2393 = vld [vmem:[%s2384 + $0x40] sm:$0xff]
      %v2394 = vld [vmem:[%s2384 + $0x48] sm:$0xff]
      %v2395 = vld [vmem:[%s2384 + $0x50] sm:$0xff]
      %v2396 = vld [vmem:[%s2384 + $0x58] sm:$0xff]
      %v2397 = vld [vmem:[%s2384 + $0x60] sm:$0xff]
      %v2398 = vld [vmem:[%s2384 + $0x68] sm:$0xff]
      %v2408 = vrot.slane %v2385, 7
      %v2409 = vrot.slane %v2386, 7
      %v2410 = vsel %vm990, %v2408, %v2409
      %v2411 = vrot.slane %v2387, 7
      %v2412 = vsel %vm990, %v2409, %v2411
      %v2413 = vrot.slane %v2388, 7
      %v2414 = vsel %vm990, %v2411, %v2413
      %v2415 = vrot.slane %v2389, 7
      %v2416 = vsel %vm990, %v2413, %v2415
      %v2417 = vrot.slane %v2390, 7
      %v2418 = vsel %vm990, %v2415, %v2417
      %v2419 = vrot.slane %v2391, 7
      %v2420 = vsel %vm990, %v2417, %v2419
      %v2421 = vrot.slane %v2392, 7
      %v2422 = vsel %vm990, %v2419, %v2421
      %v2423 = vrot.slane %v2393, 7
      %v2424 = vsel %vm990, %v2421, %v2423
      %v2433 = vsel %vm973, %v2410, 0.0
      %v2434 = vsel %vm974, %v2412, 0.0
      %v2435 = vsel %vm975, %v2414, 0.0
      %v2436 = vsel %vm976, %v2416, 0.0
      %v2437 = vsel %vm977, %v2418, 0.0
      %v2438 = vsel %vm978, %v2420, 0.0
      %v2439 = vsel %vm979, %v2422, 0.0
      %v2440 = vsel %vm980, %v2424, 0.0
      %v2442 = vrot.slane %v2386, 1
      %v2443 = vrot.slane %v2387, 1
      %v2444 = vsel %vm1041, %v2442, %v2443
      %v2445 = vrot.slane %v2388, 1
      %v2446 = vsel %vm1041, %v2443, %v2445
      %v2447 = vrot.slane %v2389, 1
      %v2448 = vsel %vm1041, %v2445, %v2447
      %v2449 = vrot.slane %v2390, 1
      %v2450 = vsel %vm1041, %v2447, %v2449
      %v2451 = vrot.slane %v2391, 1
      %v2452 = vsel %vm1041, %v2449, %v2451
      %v2453 = vrot.slane %v2392, 1
      %v2454 = vsel %vm1041, %v2451, %v2453
      %v2455 = vrot.slane %v2393, 1
      %v2456 = vsel %vm1041, %v2453, %v2455
      %v2457 = vrot.slane %v2394, 1
      %v2458 = vsel %vm1041, %v2455, %v2457
      %v2467 = vsel %vm1032, %v2444, 0.0
      %v2468 = vsel %vm1033, %v2446, 0.0
      %v2469 = vsel %vm1034, %v2448, 0.0
      %v2470 = vsel %vm1035, %v2450, 0.0
      %v2471 = vsel %vm1036, %v2452, 0.0
      %v2472 = vsel %vm1037, %v2454, 0.0
      %v2473 = vsel %vm1038, %v2456, 0.0
      %v2474 = vsel %vm1039, %v2458, 0.0
      %v2476 = vrot.slane %v2394, 7
      %v2477 = vsel %vm990, %v2423, %v2476
      %v2478 = vrot.slane %v2395, 7
      %v2479 = vsel %vm990, %v2476, %v2478
      %v2482 = vsel %vm973, %v2414, 0.0
      %v2483 = vsel %vm974, %v2416, 0.0
      %v2484 = vsel %vm975, %v2418, 0.0
      %v2485 = vsel %vm976, %v2420, 0.0
      %v2486 = vsel %vm977, %v2422, 0.0
      %v2487 = vsel %vm978, %v2424, 0.0
      %v2488 = vsel %vm979, %v2477, 0.0
      %v2489 = vsel %vm980, %v2479, 0.0
      %v2491 = vrot.slane %v2395, 1
      %v2492 = vsel %vm1041, %v2457, %v2491
      %v2493 = vrot.slane %v2396, 1
      %v2494 = vsel %vm1041, %v2491, %v2493
      %v2497 = vsel %vm1032, %v2448, 0.0
      %v2498 = vsel %vm1033, %v2450, 0.0
      %v2499 = vsel %vm1034, %v2452, 0.0
      %v2500 = vsel %vm1035, %v2454, 0.0
      %v2501 = vsel %vm1036, %v2456, 0.0
      %v2502 = vsel %vm1037, %v2458, 0.0
      %v2503 = vsel %vm1038, %v2492, 0.0
      %v2504 = vsel %vm1039, %v2494, 0.0
      %v2506 = vrot.slane %v2396, 7
      %v2507 = vsel %vm990, %v2478, %v2506
      %v2508 = vrot.slane %v2397, 7
      %v2509 = vsel %vm990, %v2506, %v2508
      %v2512 = vsel %vm973, %v2418, 0.0
      %v2513 = vsel %vm974, %v2420, 0.0
      %v2514 = vsel %vm975, %v2422, 0.0
      %v2515 = vsel %vm976, %v2424, 0.0
      %v2516 = vsel %vm977, %v2477, 0.0
      %v2517 = vsel %vm978, %v2479, 0.0
      %v2518 = vsel %vm979, %v2507, 0.0
      %v2519 = vsel %vm980, %v2509, 0.0
      %v2521 = vrot.slane %v2397, 1
      %v2522 = vsel %vm1041, %v2493, %v2521
      %v2523 = vrot.slane %v2398, 1
      %v2524 = vsel %vm1041, %v2521, %v2523
      %v2527 = vsel %vm1032, %v2452, 0.0
      %v2528 = vsel %vm1033, %v2454, 0.0
      %v2529 = vsel %vm1034, %v2456, 0.0
      %v2530 = vsel %vm1035, %v2458, 0.0
      %v2531 = vsel %vm1036, %v2492, 0.0
      %v2532 = vsel %vm1037, %v2494, 0.0
      %v2533 = vsel %vm1038, %v2522, 0.0
      %v2534 = vsel %vm1039, %v2524, 0.0
      %2535 = vrot.lane.b32.xlu0 %v2386, 8
      %v2536 = vpop.permute.xlu0 %2535
      %2537 = vrot.lane.b32.xlu0 %v2387, 8
      %v2538 = vpop.permute.xlu0 %2537
      %2539 = vrot.lane.b32.xlu0 %v2388, 8
      %v2540 = vpop.permute.xlu0 %2539
      %2541 = vrot.lane.b32.xlu0 %v2389, 8
      %v2542 = vpop.permute.xlu0 %2541
      %2543 = vrot.lane.b32.xlu0 %v2390, 8
      %v2544 = vpop.permute.xlu0 %2543
      %2545 = vrot.lane.b32.xlu0 %v2391, 8
      %v2546 = vpop.permute.xlu0 %2545
      %2547 = vrot.lane.b32.xlu0 %v2392, 8
      %v2548 = vpop.permute.xlu0 %2547
      %2549 = vrot.lane.b32.xlu0 %v2393, 8
      %v2550 = vpop.permute.xlu0 %2549
      %2567 = vrot.lane.b32.xlu0 %v2467, 16
      %v2568 = vpop.permute.xlu0 %2567
      %2569 = vrot.lane.b32.xlu0 %v2468, 16
      %v2570 = vpop.permute.xlu0 %2569
      %2571 = vrot.lane.b32.xlu0 %v2469, 16
      %v2572 = vpop.permute.xlu0 %2571
      %2573 = vrot.lane.b32.xlu0 %v2470, 16
      %v2574 = vpop.permute.xlu0 %2573
      %2575 = vrot.lane.b32.xlu0 %v2471, 16
      %v2576 = vpop.permute.xlu0 %2575
      %2577 = vrot.lane.b32.xlu0 %v2472, 16
      %v2578 = vpop.permute.xlu0 %2577
      %2579 = vrot.lane.b32.xlu0 %v2473, 16
      %v2580 = vpop.permute.xlu0 %2579
      %2581 = vrot.lane.b32.xlu0 %v2474, 16
      %v2582 = vpop.permute.xlu0 %2581
      %2599 = vrot.lane.b32.xlu0 %v2482, 24
      %v2600 = vpop.permute.xlu0 %2599
      %2601 = vrot.lane.b32.xlu0 %v2483, 24
      %v2602 = vpop.permute.xlu0 %2601
      %2603 = vrot.lane.b32.xlu0 %v2484, 24
      %v2604 = vpop.permute.xlu0 %2603
      %2605 = vrot.lane.b32.xlu0 %v2485, 24
      %v2606 = vpop.permute.xlu0 %2605
      %2607 = vrot.lane.b32.xlu0 %v2486, 24
      %v2608 = vpop.permute.xlu0 %2607
      %2609 = vrot.lane.b32.xlu0 %v2487, 24
      %v2610 = vpop.permute.xlu0 %2609
      %2611 = vrot.lane.b32.xlu0 %v2488, 24
      %v2612 = vpop.permute.xlu0 %2611
      %2613 = vrot.lane.b32.xlu0 %v2489, 24
      %v2614 = vpop.permute.xlu0 %2613
      %2623 = vrot.lane.b32.xlu0 %v2388, 32
      %v2624 = vpop.permute.xlu0 %2623
      %2625 = vrot.lane.b32.xlu0 %v2389, 32
      %v2626 = vpop.permute.xlu0 %2625
      %2627 = vrot.lane.b32.xlu0 %v2390, 32
      %v2628 = vpop.permute.xlu0 %2627
      %2629 = vrot.lane.b32.xlu0 %v2391, 32
      %v2630 = vpop.permute.xlu0 %2629
      %2631 = vrot.lane.b32.xlu0 %v2392, 32
      %v2632 = vpop.permute.xlu0 %2631
      %2633 = vrot.lane.b32.xlu0 %v2393, 32
      %v2634 = vpop.permute.xlu0 %2633
      %2635 = vrot.lane.b32.xlu0 %v2394, 32
      %v2636 = vpop.permute.xlu0 %2635
      %2637 = vrot.lane.b32.xlu0 %v2395, 32
      %v2638 = vpop.permute.xlu0 %2637
      %2655 = vrot.lane.b32.xlu0 %v2497, 40
      %v2656 = vpop.permute.xlu0 %2655
      %2657 = vrot.lane.b32.xlu0 %v2498, 40
      %v2658 = vpop.permute.xlu0 %2657
      %2659 = vrot.lane.b32.xlu0 %v2499, 40
      %v2660 = vpop.permute.xlu0 %2659
      %2661 = vrot.lane.b32.xlu0 %v2500, 40
      %v2662 = vpop.permute.xlu0 %2661
      %2663 = vrot.lane.b32.xlu0 %v2501, 40
      %v2664 = vpop.permute.xlu0 %2663
      %2665 = vrot.lane.b32.xlu0 %v2502, 40
      %v2666 = vpop.permute.xlu0 %2665
      %2667 = vrot.lane.b32.xlu0 %v2503, 40
      %v2668 = vpop.permute.xlu0 %2667
      %2669 = vrot.lane.b32.xlu0 %v2504, 40
      %v2670 = vpop.permute.xlu0 %2669
      %2687 = vrot.lane.b32.xlu0 %v2512, 48
      %v2688 = vpop.permute.xlu0 %2687
      %2689 = vrot.lane.b32.xlu0 %v2513, 48
      %v2690 = vpop.permute.xlu0 %2689
      %2691 = vrot.lane.b32.xlu0 %v2514, 48
      %v2692 = vpop.permute.xlu0 %2691
      %2693 = vrot.lane.b32.xlu0 %v2515, 48
      %v2694 = vpop.permute.xlu0 %2693
      %2695 = vrot.lane.b32.xlu0 %v2516, 48
      %v2696 = vpop.permute.xlu0 %2695
      %2697 = vrot.lane.b32.xlu0 %v2517, 48
      %v2698 = vpop.permute.xlu0 %2697
      %2699 = vrot.lane.b32.xlu0 %v2518, 48
      %v2700 = vpop.permute.xlu0 %2699
      %2701 = vrot.lane.b32.xlu0 %v2519, 48
      %v2702 = vpop.permute.xlu0 %2701
      %2711 = vrot.lane.b32.xlu0 %v2390, 56
      %v2712 = vpop.permute.xlu0 %2711
      %2713 = vrot.lane.b32.xlu0 %v2391, 56
      %v2714 = vpop.permute.xlu0 %2713
      %2715 = vrot.lane.b32.xlu0 %v2392, 56
      %v2716 = vpop.permute.xlu0 %2715
      %2717 = vrot.lane.b32.xlu0 %v2393, 56
      %v2718 = vpop.permute.xlu0 %2717
      %2719 = vrot.lane.b32.xlu0 %v2394, 56
      %v2720 = vpop.permute.xlu0 %2719
      %2721 = vrot.lane.b32.xlu0 %v2395, 56
      %v2722 = vpop.permute.xlu0 %2721
      %2723 = vrot.lane.b32.xlu0 %v2396, 56
      %v2724 = vpop.permute.xlu0 %2723
      %2725 = vrot.lane.b32.xlu0 %v2397, 56
      %v2726 = vpop.permute.xlu0 %2725
      %2743 = vrot.lane.b32.xlu0 %v2527, 64
      %v2744 = vpop.permute.xlu0 %2743
      %2745 = vrot.lane.b32.xlu0 %v2528, 64
      %v2746 = vpop.permute.xlu0 %2745
      %2747 = vrot.lane.b32.xlu0 %v2529, 64
      %v2748 = vpop.permute.xlu0 %2747
      %2749 = vrot.lane.b32.xlu0 %v2530, 64
      %v2750 = vpop.permute.xlu0 %2749
      %2751 = vrot.lane.b32.xlu0 %v2531, 64
      %v2752 = vpop.permute.xlu0 %2751
      %2753 = vrot.lane.b32.xlu0 %v2532, 64
      %v2754 = vpop.permute.xlu0 %2753
      %2755 = vrot.lane.b32.xlu0 %v2533, 64
      %v2756 = vpop.permute.xlu0 %2755
      %2757 = vrot.lane.b32.xlu0 %v2534, 64
      %v2758 = vpop.permute.xlu0 %2757
      %v2767 = vsel %vm280, %v2433, %v2536
      %v2768 = vsel %vm280, %v2434, %v2538
      %v2769 = vsel %vm280, %v2435, %v2540
      %v2770 = vsel %vm280, %v2436, %v2542
      %v2771 = vsel %vm280, %v2437, %v2544
      %v2772 = vsel %vm280, %v2438, %v2546
      %v2773 = vsel %vm280, %v2439, %v2548
      %v2774 = vsel %vm280, %v2440, %v2550
      %v2775 = vsel %vm1375, %v2767, %v2568
      %v2776 = vsel %vm1375, %v2768, %v2570
      %v2777 = vsel %vm1375, %v2769, %v2572
      %v2778 = vsel %vm1375, %v2770, %v2574
      %v2779 = vsel %vm1375, %v2771, %v2576
      %v2780 = vsel %vm1375, %v2772, %v2578
      %v2781 = vsel %vm1375, %v2773, %v2580
      %v2782 = vsel %vm1375, %v2774, %v2582
      %v2783 = vsel %vm1384, %v2775, %v2600
      %v2784 = vsel %vm1384, %v2776, %v2602
      %v2785 = vsel %vm1384, %v2777, %v2604
      %v2786 = vsel %vm1384, %v2778, %v2606
      %v2787 = vsel %vm1384, %v2779, %v2608
      %v2788 = vsel %vm1384, %v2780, %v2610
      %v2789 = vsel %vm1384, %v2781, %v2612
      %v2790 = vsel %vm1384, %v2782, %v2614
      %v2791 = vsel %vm1393, %v2783, %v2624
      %v2792 = vsel %vm1393, %v2784, %v2626
      %v2793 = vsel %vm1393, %v2785, %v2628
      %v2794 = vsel %vm1393, %v2786, %v2630
      %v2795 = vsel %vm1393, %v2787, %v2632
      %v2796 = vsel %vm1393, %v2788, %v2634
      %v2797 = vsel %vm1393, %v2789, %v2636
      %v2798 = vsel %vm1393, %v2790, %v2638
      %v2799 = vsel %vm1402, %v2791, %v2656
      %v2800 = vsel %vm1402, %v2792, %v2658
      %v2801 = vsel %vm1402, %v2793, %v2660
      %v2802 = vsel %vm1402, %v2794, %v2662
      %v2803 = vsel %vm1402, %v2795, %v2664
      %v2804 = vsel %vm1402, %v2796, %v2666
      %v2805 = vsel %vm1402, %v2797, %v2668
      %v2806 = vsel %vm1402, %v2798, %v2670
      %v2807 = vsel %vm1411, %v2799, %v2688
      %v2808 = vsel %vm1411, %v2800, %v2690
      %v2809 = vsel %vm1411, %v2801, %v2692
      %v2810 = vsel %vm1411, %v2802, %v2694
      %v2811 = vsel %vm1411, %v2803, %v2696
      %v2812 = vsel %vm1411, %v2804, %v2698
      %v2813 = vsel %vm1411, %v2805, %v2700
      %v2814 = vsel %vm1411, %v2806, %v2702
      %v2815 = vsel %vm1420, %v2807, %v2712
      %v2816 = vsel %vm1420, %v2808, %v2714
      %v2817 = vsel %vm1420, %v2809, %v2716
      %v2818 = vsel %vm1420, %v2810, %v2718
      %v2819 = vsel %vm1420, %v2811, %v2720
      %v2820 = vsel %vm1420, %v2812, %v2722
      %v2821 = vsel %vm1420, %v2813, %v2724
      %v2822 = vsel %vm1420, %v2814, %v2726
      %v2823 = vsel %vm1429, %v2815, %v2744
      %v2824 = vsel %vm1429, %v2816, %v2746
      %v2825 = vsel %vm1429, %v2817, %v2748
      %v2826 = vsel %vm1429, %v2818, %v2750
      %v2827 = vsel %vm1429, %v2819, %v2752
      %v2828 = vsel %vm1429, %v2820, %v2754
      %v2829 = vsel %vm1429, %v2821, %v2756
      %v2830 = vsel %vm1429, %v2822, %v2758
      %v2831 = vpack.c.bf16 %v2824, %v2823
      %v2832 = vpack.c.bf16 %v2826, %v2825
      %v2833 = vpack.c.bf16 %v2828, %v2827
      %v2834 = vpack.c.bf16 %v2830, %v2829
      %v2836 = vsel %vm1475, %v2831, 0
      %v2839 = vsel %vm1475, %v2832, 0
      %v2842 = vsel %vm1475, %v2833, 0
      %v2845 = vsel %vm1475, %v2834, 0
      %2847 = vmatprep.subr.bf16.mxu0 0
      %2848 = vmatpush1.bf16.msra.mxu0 %v1466
      %2849 = vmatprep.subr.bf16.mxu0 0
      %2850 = vmatpush1.bf16.msra.mxu0 %v1467
      %2851 = vmatprep.subr.bf16.mxu0 0
      %2852 = vmatpush1.bf16.msra.mxu0 %v1468
      %2853 = vmatprep.subr.bf16.mxu0 0
      %2854 = vmatpush1.bf16.msra.mxu0 %v1469
      %2855 = vmatprep.subr.bf16.mxu0 0
      %2856 = vmatpush1.bf16.msra.mxu0 %v1490
      %2857 = vmatprep.subr.bf16.mxu0 0
      %2858 = vmatpush1.bf16.msra.mxu0 0
      %2859 = vmatprep.subr.bf16.mxu0 0
      %2860 = vmatpush1.bf16.msra.mxu0 0
      %2861 = vmatprep.subr.bf16.mxu0 0
      %2862 = vmatpush1.bf16.msra.mxu0 0
      %2863 = vmatprep.subr.bf16.mxu0 0
      %2864 = vmatpush1.bf16.msra.mxu0 0
      %2865 = vmatprep.subr.bf16.mxu0 0
      %2866 = vmatpush1.bf16.msra.mxu0 0
      %2867 = vmatprep.subr.bf16.mxu0 0
      %2868 = vmatpush1.bf16.msra.mxu0 0
      %2869 = vmatprep.subr.bf16.mxu0 0
      %2870 = vmatpush1.bf16.msra.mxu0 0
      %2871 = vmatprep.subr.bf16.mxu0 0
      %2872 = vmatpush1.bf16.msra.mxu0 0
      %2873 = vmatprep.subr.bf16.mxu0 0
      %2874 = vmatpush1.bf16.msra.mxu0 0
      %2875 = vmatprep.subr.bf16.mxu0 0
      %2876 = vmatpush1.bf16.msra.mxu0 0
      %2877 = vmatprep.subr.bf16.mxu0 0
      %2878 = vmatpush1.bf16.msra.mxu0 0
      %2879 = vmatprep.mubr.bf16.mxu0 0
      %2880 = vmatmul.mubr.bf16.gmra.mrb[0].mxu0 %v2836
      %v2881 = vpop.f32.mrb[0].mxu0
      %v2882 = vadd.f32 %v1446, %v2881
      %v2883 = vpop.f32.mrb[0].mxu0
      %v2884 = vpop.f32.mrb[0].mxu0
      %v2885 = vadd.f32 %v1446, %v2884
      %v2886 = vpop.f32.mrb[0].mxu0
      %2887 = vmatprep.mubr.bf16.mxu0 0
      %2888 = vmatmul.mubr.bf16.gmra.mrb[0].mxu0 %v2839
      %v2889 = vpop.f32.mrb[0].mxu0
      %v2890 = vadd.f32 %v1446, %v2889
      %v2891 = vpop.f32.mrb[0].mxu0
      %v2892 = vpop.f32.mrb[0].mxu0
      %v2893 = vadd.f32 %v1446, %v2892
      %v2894 = vpop.f32.mrb[0].mxu0
      %2895 = vmatprep.mubr.bf16.mxu0 0
      %2896 = vmatmul.mubr.bf16.gmra.mrb[0].mxu0 %v2842
      %v2897 = vpop.f32.mrb[0].mxu0
      %v2898 = vadd.f32 %v1446, %v2897
      %v2899 = vpop.f32.mrb[0].mxu0
      %v2900 = vpop.f32.mrb[0].mxu0
      %v2901 = vadd.f32 %v1446, %v2900
      %v2902 = vpop.f32.mrb[0].mxu0
      %2903 = vmatprep.mubr.bf16.mxu0 0
      %2904 = vmatmul.mubr.bf16.gmra.mrb[0].mxu0 %v2845
      %v2905 = vpop.f32.mrb[0].mxu0
      %v2906 = vadd.f32 %v1446, %v2905
      %v2907 = vpop.f32.mrb[0].mxu0
      %v2908 = vpop.f32.mrb[0].mxu0
      %v2909 = vadd.f32 %v1446, %v2908
      %v2910 = vpop.f32.mrb[0].mxu0
      %2911 = vdwg.mxu0
      %v2912 = vmax.f32 %v2882, 0.0
      %v2913 = vmax.f32 %v2885, 0.0
      %v2914 = vmax.f32 %v2890, 0.0
      %v2915 = vmax.f32 %v2893, 0.0
      %v2916 = vmax.f32 %v2898, 0.0
      %v2917 = vmax.f32 %v2901, 0.0
      %v2918 = vmax.f32 %v2906, 0.0
      %v2919 = vmax.f32 %v2909, 0.0
      %v2920 = vld [vmem:[%s703] sm:$0xf]
      %v2921 = vld [vmem:[%s703 + $0x4] sm:$0xf]
      %v2922 = vld [vmem:[%s703 + $0x8] sm:$0xf]
      %v2923 = vld [vmem:[%s703 + $0xc] sm:$0xf]
      %v2924 = vld [vmem:[%s703 + $0x10] sm:$0xf]
      %v2925 = vld [vmem:[%s703 + $0x14] sm:$0xf]
      %v2926 = vld [vmem:[%s703 + $0x18] sm:$0xf]
      %v2927 = vld [vmem:[%s703 + $0x1c] sm:$0xf]
      %v2936 = vunpack.c.l.b16 %v2920
      %v2937 = vunpack.c.l.b16 %v2921
      %v2938 = vunpack.c.l.b16 %v2922
      %v2939 = vunpack.c.l.b16 %v2923
      %v2940 = vunpack.c.l.b16 %v2924
      %v2941 = vunpack.c.l.b16 %v2925
      %v2942 = vunpack.c.l.b16 %v2926
      %v2943 = vunpack.c.l.b16 %v2927
      %v2944 = vpack.c.b16 %v2937, %v2936
      %v2945 = vpack.c.b16 %v2939, %v2938
      %v2946 = vpack.c.b16 %v2941, %v2940
      %v2947 = vpack.c.b16 %v2943, %v2942
      %v2949 = vsel %vm479, %v2944, 0
      %v2952 = vsel %vm479, %v2945, 0
      %v2955 = vsel %vm479, %v2946, 0
      %v2958 = vsel %vm479, %v2947, 0
      %2960 = vmatprep.subr.bf16.mxu0 0
      %2961 = vmatpush1.bf16.msra.mxu0 %v1609
      %2962 = vmatprep.subr.bf16.mxu0 0
      %2963 = vmatpush1.bf16.msra.mxu0 %v1610
      %2964 = vmatprep.subr.bf16.mxu0 0
      %2965 = vmatpush1.bf16.msra.mxu0 %v1627
      %2966 = vmatprep.subr.bf16.mxu0 0
      %2967 = vmatpush1.bf16.msra.mxu0 0
      %2968 = vmatprep.subr.bf16.mxu0 0
      %2969 = vmatpush1.bf16.msra.mxu0 0
      %2970 = vmatprep.subr.bf16.mxu0 0
      %2971 = vmatpush1.bf16.msra.mxu0 0
      %2972 = vmatprep.subr.bf16.mxu0 0
      %2973 = vmatpush1.bf16.msra.mxu0 0
      %2974 = vmatprep.subr.bf16.mxu0 0
      %2975 = vmatpush1.bf16.msra.mxu0 0
      %2976 = vmatprep.subr.bf16.mxu0 0
      %2977 = vmatpush1.bf16.msra.mxu0 0
      %2978 = vmatprep.subr.bf16.mxu0 0
      %2979 = vmatpush1.bf16.msra.mxu0 0
      %2980 = vmatprep.subr.bf16.mxu0 0
      %2981 = vmatpush1.bf16.msra.mxu0 0
      %2982 = vmatprep.subr.bf16.mxu0 0
      %2983 = vmatpush1.bf16.msra.mxu0 0
      %2984 = vmatprep.subr.bf16.mxu0 0
      %2985 = vmatpush1.bf16.msra.mxu0 0
      %2986 = vmatprep.subr.bf16.mxu0 0
      %2987 = vmatpush1.bf16.msra.mxu0 0
      %2988 = vmatprep.subr.bf16.mxu0 0
      %2989 = vmatpush1.bf16.msra.mxu0 0
      %2990 = vmatprep.subr.bf16.mxu0 0
      %2991 = vmatpush1.bf16.msra.mxu0 0
      %2992 = vmatprep.mubr.bf16.mxu0 0
      %2993 = vmatmul.mubr.bf16.gmra.mrb[0].mxu0 %v2949
      %v2994 = vpop.f32.mrb[0].mxu0
      %v2995 = vadd.f32 %v1577, %v2994
      %v2996 = vpop.f32.mrb[0].mxu0
      %v2997 = vpop.f32.mrb[0].mxu0
      %v2998 = vadd.f32 %v1577, %v2997
      %v2999 = vpop.f32.mrb[0].mxu0
      %3000 = vmatprep.mubr.bf16.mxu0 0
      %3001 = vmatmul.mubr.bf16.gmra.mrb[0].mxu0 %v2952
      %v3002 = vpop.f32.mrb[0].mxu0
      %v3003 = vadd.f32 %v1577, %v3002
      %v3004 = vpop.f32.mrb[0].mxu0
      %v3005 = vpop.f32.mrb[0].mxu0
      %v3006 = vadd.f32 %v1577, %v3005
      %v3007 = vpop.f32.mrb[0].mxu0
      %3008 = vmatprep.mubr.bf16.mxu0 0
      %3009 = vmatmul.mubr.bf16.gmra.mrb[0].mxu0 %v2955
      %v3010 = vpop.f32.mrb[0].mxu0
      %v3011 = vadd.f32 %v1577, %v3010
      %v3012 = vpop.f32.mrb[0].mxu0
      %v3013 = vpop.f32.mrb[0].mxu0
      %v3014 = vadd.f32 %v1577, %v3013
      %v3015 = vpop.f32.mrb[0].mxu0
      %3016 = vmatprep.mubr.bf16.mxu0 0
      %3017 = vmatmul.mubr.bf16.gmra.mrb[0].mxu0 %v2958
      %v3018 = vpop.f32.mrb[0].mxu0
      %v3019 = vadd.f32 %v1577, %v3018
      %v3020 = vpop.f32.mrb[0].mxu0
      %v3021 = vpop.f32.mrb[0].mxu0
      %v3022 = vadd.f32 %v1577, %v3021
      %v3023 = vpop.f32.mrb[0].mxu0
      %3024 = vdwg.mxu0
      %v3025 = vadd.f32 %v2912, %v2995
      %v3026 = vadd.f32 %v2913, %v2998
      %v3027 = vadd.f32 %v2914, %v3003
      %v3028 = vadd.f32 %v2915, %v3006
      %v3029 = vadd.f32 %v2916, %v3011
      %v3030 = vadd.f32 %v2917, %v3014
      %v3031 = vadd.f32 %v2918, %v3019
      %v3032 = vadd.f32 %v2919, %v3022
      %v3033 = vmax.f32 %v3025, 0.0
      %v3034 = vmax.f32 %v3026, 0.0
      %v3035 = vmax.f32 %v3027, 0.0
      %v3036 = vmax.f32 %v3028, 0.0
      %v3037 = vmax.f32 %v3029, 0.0
      %v3038 = vmax.f32 %v3030, 0.0
      %v3039 = vmax.f32 %v3031, 0.0
      %v3040 = vmax.f32 %v3032, 0.0
      %s3041 = scalar_lea.vmem %s278, 128
      %3042 = vst.msk [vmem:[%s3041] sm:$0xff] %vm280, %v3033
      %3043 = vst.msk [vmem:[%s3041 + $0x8] sm:$0xff] %vm280, %v3034
      %3044 = vst.msk [vmem:[%s3041 + $0x10] sm:$0xff] %vm280, %v3035
      %3045 = vst.msk [vmem:[%s3041 + $0x18] sm:$0xff] %vm280, %v3036
      %3046 = vst.msk [vmem:[%s3041 + $0x20] sm:$0xff] %vm280, %v3037
      %3047 = vst.msk [vmem:[%s3041 + $0x28] sm:$0xff] %vm280, %v3038
      %3048 = vst.msk [vmem:[%s3041 + $0x30] sm:$0xff] %vm280, %v3039
      %3049 = vst.msk [vmem:[%s3041 + $0x38] sm:$0xff] %vm280, %v3040
      %s3050 = scalar_lea.vmem [#allocation2], 192
      %v3051 = vld [vmem:[%s3050] sm:$0xff]
      %v3052 = vld [vmem:[%s3050 + $0x8] sm:$0xff]
      %v3053 = vld [vmem:[%s3050 + $0x10] sm:$0xff]
      %v3054 = vld [vmem:[%s3050 + $0x18] sm:$0xff]
      %v3055 = vld [vmem:[%s3050 + $0x20] sm:$0xff]
      %v3056 = vld [vmem:[%s3050 + $0x28] sm:$0xff]
      %v3057 = vld [vmem:[%s3050 + $0x30] sm:$0xff]
      %v3058 = vld [vmem:[%s3050 + $0x38] sm:$0xff]
      %v3059 = vld [vmem:[%s3050 + $0x40] sm:$0xff]
      %v3060 = vld [vmem:[%s3050 + $0x48] sm:$0xff]
      %v3061 = vld [vmem:[%s3050 + $0x50] sm:$0xff]
      %v3062 = vld [vmem:[%s3050 + $0x58] sm:$0xff]
      %v3063 = vld [vmem:[%s3050 + $0x60] sm:$0xff]
      %v3064 = vld [vmem:[%s3050 + $0x68] sm:$0xff]
      %v3074 = vrot.slane %v3051, 7
      %v3075 = vrot.slane %v3052, 7
      %v3076 = vsel %vm990, %v3074, %v3075
      %v3077 = vrot.slane %v3053, 7
      %v3078 = vsel %vm990, %v3075, %v3077
      %v3079 = vrot.slane %v3054, 7
      %v3080 = vsel %vm990, %v3077, %v3079
      %v3081 = vrot.slane %v3055, 7
      %v3082 = vsel %vm990, %v3079, %v3081
      %v3083 = vrot.slane %v3056, 7
      %v3084 = vsel %vm990, %v3081, %v3083
      %v3085 = vrot.slane %v3057, 7
      %v3086 = vsel %vm990, %v3083, %v3085
      %v3087 = vrot.slane %v3058, 7
      %v3088 = vsel %vm990, %v3085, %v3087
      %v3089 = vrot.slane %v3059, 7
      %v3090 = vsel %vm990, %v3087, %v3089
      %v3099 = vsel %vm973, %v3076, 0.0
      %v3100 = vsel %vm974, %v3078, 0.0
      %v3101 = vsel %vm975, %v3080, 0.0
      %v3102 = vsel %vm976, %v3082, 0.0
      %v3103 = vsel %vm977, %v3084, 0.0
      %v3104 = vsel %vm978, %v3086, 0.0
      %v3105 = vsel %vm979, %v3088, 0.0
      %v3106 = vsel %vm980, %v3090, 0.0
      %v3108 = vrot.slane %v3052, 1
      %v3109 = vrot.slane %v3053, 1
      %v3110 = vsel %vm1041, %v3108, %v3109
      %v3111 = vrot.slane %v3054, 1
      %v3112 = vsel %vm1041, %v3109, %v3111
      %v3113 = vrot.slane %v3055, 1
      %v3114 = vsel %vm1041, %v3111, %v3113
      %v3115 = vrot.slane %v3056, 1
      %v3116 = vsel %vm1041, %v3113, %v3115
      %v3117 = vrot.slane %v3057, 1
      %v3118 = vsel %vm1041, %v3115, %v3117
      %v3119 = vrot.slane %v3058, 1
      %v3120 = vsel %vm1041, %v3117, %v3119
      %v3121 = vrot.slane %v3059, 1
      %v3122 = vsel %vm1041, %v3119, %v3121
      %v3123 = vrot.slane %v3060, 1
      %v3124 = vsel %vm1041, %v3121, %v3123
      %v3133 = vsel %vm1032, %v3110, 0.0
      %v3134 = vsel %vm1033, %v3112, 0.0
      %v3135 = vsel %vm1034, %v3114, 0.0
      %v3136 = vsel %vm1035, %v3116, 0.0
      %v3137 = vsel %vm1036, %v3118, 0.0
      %v3138 = vsel %vm1037, %v3120, 0.0
      %v3139 = vsel %vm1038, %v3122, 0.0
      %v3140 = vsel %vm1039, %v3124, 0.0
      %v3142 = vrot.slane %v3060, 7
      %v3143 = vsel %vm990, %v3089, %v3142
      %v3144 = vrot.slane %v3061, 7
      %v3145 = vsel %vm990, %v3142, %v3144
      %v3148 = vsel %vm973, %v3080, 0.0
      %v3149 = vsel %vm974, %v3082, 0.0
      %v3150 = vsel %vm975, %v3084, 0.0
      %v3151 = vsel %vm976, %v3086, 0.0
      %v3152 = vsel %vm977, %v3088, 0.0
      %v3153 = vsel %vm978, %v3090, 0.0
      %v3154 = vsel %vm979, %v3143, 0.0
      %v3155 = vsel %vm980, %v3145, 0.0
      %v3157 = vrot.slane %v3061, 1
      %v3158 = vsel %vm1041, %v3123, %v3157
      %v3159 = vrot.slane %v3062, 1
      %v3160 = vsel %vm1041, %v3157, %v3159
      %v3163 = vsel %vm1032, %v3114, 0.0
      %v3164 = vsel %vm1033, %v3116, 0.0
      %v3165 = vsel %vm1034, %v3118, 0.0
      %v3166 = vsel %vm1035, %v3120, 0.0
      %v3167 = vsel %vm1036, %v3122, 0.0
      %v3168 = vsel %vm1037, %v3124, 0.0
      %v3169 = vsel %vm1038, %v3158, 0.0
      %v3170 = vsel %vm1039, %v3160, 0.0
      %v3172 = vrot.slane %v3062, 7
      %v3173 = vsel %vm990, %v3144, %v3172
      %v3174 = vrot.slane %v3063, 7
      %v3175 = vsel %vm990, %v3172, %v3174
      %v3178 = vsel %vm973, %v3084, 0.0
      %v3179 = vsel %vm974, %v3086, 0.0
      %v3180 = vsel %vm975, %v3088, 0.0
      %v3181 = vsel %vm976, %v3090, 0.0
      %v3182 = vsel %vm977, %v3143, 0.0
      %v3183 = vsel %vm978, %v3145, 0.0
      %v3184 = vsel %vm979, %v3173, 0.0
      %v3185 = vsel %vm980, %v3175, 0.0
      %v3187 = vrot.slane %v3063, 1
      %v3188 = vsel %vm1041, %v3159, %v3187
      %v3189 = vrot.slane %v3064, 1
      %v3190 = vsel %vm1041, %v3187, %v3189
      %v3193 = vsel %vm1032, %v3118, 0.0
      %v3194 = vsel %vm1033, %v3120, 0.0
      %v3195 = vsel %vm1034, %v3122, 0.0
      %v3196 = vsel %vm1035, %v3124, 0.0
      %v3197 = vsel %vm1036, %v3158, 0.0
      %v3198 = vsel %vm1037, %v3160, 0.0
      %v3199 = vsel %vm1038, %v3188, 0.0
      %v3200 = vsel %vm1039, %v3190, 0.0
      %3201 = vrot.lane.b32.xlu0 %v3052, 8
      %v3202 = vpop.permute.xlu0 %3201
      %3203 = vrot.lane.b32.xlu0 %v3053, 8
      %v3204 = vpop.permute.xlu0 %3203
      %3205 = vrot.lane.b32.xlu0 %v3054, 8
      %v3206 = vpop.permute.xlu0 %3205
      %3207 = vrot.lane.b32.xlu0 %v3055, 8
      %v3208 = vpop.permute.xlu0 %3207
      %3209 = vrot.lane.b32.xlu0 %v3056, 8
      %v3210 = vpop.permute.xlu0 %3209
      %3211 = vrot.lane.b32.xlu0 %v3057, 8
      %v3212 = vpop.permute.xlu0 %3211
      %3213 = vrot.lane.b32.xlu0 %v3058, 8
      %v3214 = vpop.permute.xlu0 %3213
      %3215 = vrot.lane.b32.xlu0 %v3059, 8
      %v3216 = vpop.permute.xlu0 %3215
      %3233 = vrot.lane.b32.xlu0 %v3133, 16
      %v3234 = vpop.permute.xlu0 %3233
      %3235 = vrot.lane.b32.xlu0 %v3134, 16
      %v3236 = vpop.permute.xlu0 %3235
      %3237 = vrot.lane.b32.xlu0 %v3135, 16
      %v3238 = vpop.permute.xlu0 %3237
      %3239 = vrot.lane.b32.xlu0 %v3136, 16
      %v3240 = vpop.permute.xlu0 %3239
      %3241 = vrot.lane.b32.xlu0 %v3137, 16
      %v3242 = vpop.permute.xlu0 %3241
      %3243 = vrot.lane.b32.xlu0 %v3138, 16
      %v3244 = vpop.permute.xlu0 %3243
      %3245 = vrot.lane.b32.xlu0 %v3139, 16
      %v3246 = vpop.permute.xlu0 %3245
      %3247 = vrot.lane.b32.xlu0 %v3140, 16
      %v3248 = vpop.permute.xlu0 %3247
      %3265 = vrot.lane.b32.xlu0 %v3148, 24
      %v3266 = vpop.permute.xlu0 %3265
      %3267 = vrot.lane.b32.xlu0 %v3149, 24
      %v3268 = vpop.permute.xlu0 %3267
      %3269 = vrot.lane.b32.xlu0 %v3150, 24
      %v3270 = vpop.permute.xlu0 %3269
      %3271 = vrot.lane.b32.xlu0 %v3151, 24
      %v3272 = vpop.permute.xlu0 %3271
      %3273 = vrot.lane.b32.xlu0 %v3152, 24
      %v3274 = vpop.permute.xlu0 %3273
      %3275 = vrot.lane.b32.xlu0 %v3153, 24
      %v3276 = vpop.permute.xlu0 %3275
      %3277 = vrot.lane.b32.xlu0 %v3154, 24
      %v3278 = vpop.permute.xlu0 %3277
      %3279 = vrot.lane.b32.xlu0 %v3155, 24
      %v3280 = vpop.permute.xlu0 %3279
      %3289 = vrot.lane.b32.xlu0 %v3054, 32
      %v3290 = vpop.permute.xlu0 %3289
      %3291 = vrot.lane.b32.xlu0 %v3055, 32
      %v3292 = vpop.permute.xlu0 %3291
      %3293 = vrot.lane.b32.xlu0 %v3056, 32
      %v3294 = vpop.permute.xlu0 %3293
      %3295 = vrot.lane.b32.xlu0 %v3057, 32
      %v3296 = vpop.permute.xlu0 %3295
      %3297 = vrot.lane.b32.xlu0 %v3058, 32
      %v3298 = vpop.permute.xlu0 %3297
      %3299 = vrot.lane.b32.xlu0 %v3059, 32
      %v3300 = vpop.permute.xlu0 %3299
      %3301 = vrot.lane.b32.xlu0 %v3060, 32
      %v3302 = vpop.permute.xlu0 %3301
      %3303 = vrot.lane.b32.xlu0 %v3061, 32
      %v3304 = vpop.permute.xlu0 %3303
      %3321 = vrot.lane.b32.xlu0 %v3163, 40
      %v3322 = vpop.permute.xlu0 %3321
      %3323 = vrot.lane.b32.xlu0 %v3164, 40
      %v3324 = vpop.permute.xlu0 %3323
      %3325 = vrot.lane.b32.xlu0 %v3165, 40
      %v3326 = vpop.permute.xlu0 %3325
      %3327 = vrot.lane.b32.xlu0 %v3166, 40
      %v3328 = vpop.permute.xlu0 %3327
      %3329 = vrot.lane.b32.xlu0 %v3167, 40
      %v3330 = vpop.permute.xlu0 %3329
      %3331 = vrot.lane.b32.xlu0 %v3168, 40
      %v3332 = vpop.permute.xlu0 %3331
      %3333 = vrot.lane.b32.xlu0 %v3169, 40
      %v3334 = vpop.permute.xlu0 %3333
      %3335 = vrot.lane.b32.xlu0 %v3170, 40
      %v3336 = vpop.permute.xlu0 %3335
      %3353 = vrot.lane.b32.xlu0 %v3178, 48
      %v3354 = vpop.permute.xlu0 %3353
      %3355 = vrot.lane.b32.xlu0 %v3179, 48
      %v3356 = vpop.permute.xlu0 %3355
      %3357 = vrot.lane.b32.xlu0 %v3180, 48
      %v3358 = vpop.permute.xlu0 %3357
      %3359 = vrot.lane.b32.xlu0 %v3181, 48
      %v3360 = vpop.permute.xlu0 %3359
      %3361 = vrot.lane.b32.xlu0 %v3182, 48
      %v3362 = vpop.permute.xlu0 %3361
      %3363 = vrot.lane.b32.xlu0 %v3183, 48
      %v3364 = vpop.permute.xlu0 %3363
      %3365 = vrot.lane.b32.xlu0 %v3184, 48
      %v3366 = vpop.permute.xlu0 %3365
      %3367 = vrot.lane.b32.xlu0 %v3185, 48
      %v3368 = vpop.permute.xlu0 %3367
      %3377 = vrot.lane.b32.xlu0 %v3056, 56
      %v3378 = vpop.permute.xlu0 %3377
      %3379 = vrot.lane.b32.xlu0 %v3057, 56
      %v3380 = vpop.permute.xlu0 %3379
      %3381 = vrot.lane.b32.xlu0 %v3058, 56
      %v3382 = vpop.permute.xlu0 %3381
      %3383 = vrot.lane.b32.xlu0 %v3059, 56
      %v3384 = vpop.permute.xlu0 %3383
      %3385 = vrot.lane.b32.xlu0 %v3060, 56
      %v3386 = vpop.permute.xlu0 %3385
      %3387 = vrot.lane.b32.xlu0 %v3061, 56
      %v3388 = vpop.permute.xlu0 %3387
      %3389 = vrot.lane.b32.xlu0 %v3062, 56
      %v3390 = vpop.permute.xlu0 %3389
      %3391 = vrot.lane.b32.xlu0 %v3063, 56
      %v3392 = vpop.permute.xlu0 %3391
      %3409 = vrot.lane.b32.xlu0 %v3193, 64
      %v3410 = vpop.permute.xlu0 %3409
      %3411 = vrot.lane.b32.xlu0 %v3194, 64
      %v3412 = vpop.permute.xlu0 %3411
      %3413 = vrot.lane.b32.xlu0 %v3195, 64
      %v3414 = vpop.permute.xlu0 %3413
      %3415 = vrot.lane.b32.xlu0 %v3196, 64
      %v3416 = vpop.permute.xlu0 %3415
      %3417 = vrot.lane.b32.xlu0 %v3197, 64
      %v3418 = vpop.permute.xlu0 %3417
      %3419 = vrot.lane.b32.xlu0 %v3198, 64
      %v3420 = vpop.permute.xlu0 %3419
      %3421 = vrot.lane.b32.xlu0 %v3199, 64
      %v3422 = vpop.permute.xlu0 %3421
      %3423 = vrot.lane.b32.xlu0 %v3200, 64
      %v3424 = vpop.permute.xlu0 %3423
      %v3433 = vsel %vm280, %v3099, %v3202
      %v3434 = vsel %vm280, %v3100, %v3204
      %v3435 = vsel %vm280, %v3101, %v3206
      %v3436 = vsel %vm280, %v3102, %v3208
      %v3437 = vsel %vm280, %v3103, %v3210
      %v3438 = vsel %vm280, %v3104, %v3212
      %v3439 = vsel %vm280, %v3105, %v3214
      %v3440 = vsel %vm280, %v3106, %v3216
      %v3441 = vsel %vm1375, %v3433, %v3234
      %v3442 = vsel %vm1375, %v3434, %v3236
      %v3443 = vsel %vm1375, %v3435, %v3238
      %v3444 = vsel %vm1375, %v3436, %v3240
      %v3445 = vsel %vm1375, %v3437, %v3242
      %v3446 = vsel %vm1375, %v3438, %v3244
      %v3447 = vsel %vm1375, %v3439, %v3246
      %v3448 = vsel %vm1375, %v3440, %v3248
      %v3449 = vsel %vm1384, %v3441, %v3266
      %v3450 = vsel %vm1384, %v3442, %v3268
      %v3451 = vsel %vm1384, %v3443, %v3270
      %v3452 = vsel %vm1384, %v3444, %v3272
      %v3453 = vsel %vm1384, %v3445, %v3274
      %v3454 = vsel %vm1384, %v3446, %v3276
      %v3455 = vsel %vm1384, %v3447, %v3278
      %v3456 = vsel %vm1384, %v3448, %v3280
      %v3457 = vsel %vm1393, %v3449, %v3290
      %v3458 = vsel %vm1393, %v3450, %v3292
      %v3459 = vsel %vm1393, %v3451, %v3294
      %v3460 = vsel %vm1393, %v3452, %v3296
      %v3461 = vsel %vm1393, %v3453, %v3298
      %v3462 = vsel %vm1393, %v3454, %v3300
      %v3463 = vsel %vm1393, %v3455, %v3302
      %v3464 = vsel %vm1393, %v3456, %v3304
      %v3465 = vsel %vm1402, %v3457, %v3322
      %v3466 = vsel %vm1402, %v3458, %v3324
      %v3467 = vsel %vm1402, %v3459, %v3326
      %v3468 = vsel %vm1402, %v3460, %v3328
      %v3469 = vsel %vm1402, %v3461, %v3330
      %v3470 = vsel %vm1402, %v3462, %v3332
      %v3471 = vsel %vm1402, %v3463, %v3334
      %v3472 = vsel %vm1402, %v3464, %v3336
      %v3473 = vsel %vm1411, %v3465, %v3354
      %v3474 = vsel %vm1411, %v3466, %v3356
      %v3475 = vsel %vm1411, %v3467, %v3358
      %v3476 = vsel %vm1411, %v3468, %v3360
      %v3477 = vsel %vm1411, %v3469, %v3362
      %v3478 = vsel %vm1411, %v3470, %v3364
      %v3479 = vsel %vm1411, %v3471, %v3366
      %v3480 = vsel %vm1411, %v3472, %v3368
      %v3481 = vsel %vm1420, %v3473, %v3378
      %v3482 = vsel %vm1420, %v3474, %v3380
      %v3483 = vsel %vm1420, %v3475, %v3382
      %v3484 = vsel %vm1420, %v3476, %v3384
      %v3485 = vsel %vm1420, %v3477, %v3386
      %v3486 = vsel %vm1420, %v3478, %v3388
      %v3487 = vsel %vm1420, %v3479, %v3390
      %v3488 = vsel %vm1420, %v3480, %v3392
      %v3489 = vsel %vm1429, %v3481, %v3410
      %v3490 = vsel %vm1429, %v3482, %v3412
      %v3491 = vsel %vm1429, %v3483, %v3414
      %v3492 = vsel %vm1429, %v3484, %v3416
      %v3493 = vsel %vm1429, %v3485, %v3418
      %v3494 = vsel %vm1429, %v3486, %v3420
      %v3495 = vsel %vm1429, %v3487, %v3422
      %v3496 = vsel %vm1429, %v3488, %v3424
      %v3497 = vpack.c.bf16 %v3490, %v3489
      %v3498 = vpack.c.bf16 %v3492, %v3491
      %v3499 = vpack.c.bf16 %v3494, %v3493
      %v3500 = vpack.c.bf16 %v3496, %v3495
      %v3502 = vsel %vm1475, %v3497, 0
      %v3505 = vsel %vm1475, %v3498, 0
      %v3508 = vsel %vm1475, %v3499, 0
      %v3511 = vsel %vm1475, %v3500, 0
      %3513 = vmatprep.subr.bf16.mxu0 0
      %3514 = vmatpush1.bf16.msra.mxu0 %v1466
      %3515 = vmatprep.subr.bf16.mxu0 0
      %3516 = vmatpush1.bf16.msra.mxu0 %v1467
      %3517 = vmatprep.subr.bf16.mxu0 0
      %3518 = vmatpush1.bf16.msra.mxu0 %v1468
      %3519 = vmatprep.subr.bf16.mxu0 0
      %3520 = vmatpush1.bf16.msra.mxu0 %v1469
      %3521 = vmatprep.subr.bf16.mxu0 0
      %3522 = vmatpush1.bf16.msra.mxu0 %v1490
      %3523 = vmatprep.subr.bf16.mxu0 0
      %3524 = vmatpush1.bf16.msra.mxu0 0
      %3525 = vmatprep.subr.bf16.mxu0 0
      %3526 = vmatpush1.bf16.msra.mxu0 0
      %3527 = vmatprep.subr.bf16.mxu0 0
      %3528 = vmatpush1.bf16.msra.mxu0 0
      %3529 = vmatprep.subr.bf16.mxu0 0
      %3530 = vmatpush1.bf16.msra.mxu0 0
      %3531 = vmatprep.subr.bf16.mxu0 0
      %3532 = vmatpush1.bf16.msra.mxu0 0
      %3533 = vmatprep.subr.bf16.mxu0 0
      %3534 = vmatpush1.bf16.msra.mxu0 0
      %3535 = vmatprep.subr.bf16.mxu0 0
      %3536 = vmatpush1.bf16.msra.mxu0 0
      %3537 = vmatprep.subr.bf16.mxu0 0
      %3538 = vmatpush1.bf16.msra.mxu0 0
      %3539 = vmatprep.subr.bf16.mxu0 0
      %3540 = vmatpush1.bf16.msra.mxu0 0
      %3541 = vmatprep.subr.bf16.mxu0 0
      %3542 = vmatpush1.bf16.msra.mxu0 0
      %3543 = vmatprep.subr.bf16.mxu0 0
      %3544 = vmatpush1.bf16.msra.mxu0 0
      %3545 = vmatprep.mubr.bf16.mxu0 0
      %3546 = vmatmul.mubr.bf16.gmra.mrb[0].mxu0 %v3502
      %v3547 = vpop.f32.mrb[0].mxu0
      %v3548 = vadd.f32 %v1446, %v3547
      %v3549 = vpop.f32.mrb[0].mxu0
      %v3550 = vpop.f32.mrb[0].mxu0
      %v3551 = vadd.f32 %v1446, %v3550
      %v3552 = vpop.f32.mrb[0].mxu0
      %3553 = vmatprep.mubr.bf16.mxu0 0
      %3554 = vmatmul.mubr.bf16.gmra.mrb[0].mxu0 %v3505
      %v3555 = vpop.f32.mrb[0].mxu0
      %v3556 = vadd.f32 %v1446, %v3555
      %v3557 = vpop.f32.mrb[0].mxu0
      %v3558 = vpop.f32.mrb[0].mxu0
      %v3559 = vadd.f32 %v1446, %v3558
      %v3560 = vpop.f32.mrb[0].mxu0
      %3561 = vmatprep.mubr.bf16.mxu0 0
      %3562 = vmatmul.mubr.bf16.gmra.mrb[0].mxu0 %v3508
      %v3563 = vpop.f32.mrb[0].mxu0
      %v3564 = vadd.f32 %v1446, %v3563
      %v3565 = vpop.f32.mrb[0].mxu0
      %v3566 = vpop.f32.mrb[0].mxu0
      %v3567 = vadd.f32 %v1446, %v3566
      %v3568 = vpop.f32.mrb[0].mxu0
      %3569 = vmatprep.mubr.bf16.mxu0 0
      %3570 = vmatmul.mubr.bf16.gmra.mrb[0].mxu0 %v3511
      %v3571 = vpop.f32.mrb[0].mxu0
      %v3572 = vadd.f32 %v1446, %v3571
      %v3573 = vpop.f32.mrb[0].mxu0
      %v3574 = vpop.f32.mrb[0].mxu0
      %v3575 = vadd.f32 %v1446, %v3574
      %v3576 = vpop.f32.mrb[0].mxu0
      %3577 = vdwg.mxu0
      %v3578 = vmax.f32 %v3548, 0.0
      %v3579 = vmax.f32 %v3551, 0.0
      %v3580 = vmax.f32 %v3556, 0.0
      %v3581 = vmax.f32 %v3559, 0.0
      %v3582 = vmax.f32 %v3564, 0.0
      %v3583 = vmax.f32 %v3567, 0.0
      %v3584 = vmax.f32 %v3572, 0.0
      %v3585 = vmax.f32 %v3575, 0.0
      %v3586 = vld [vmem:[%s827] sm:$0xf]
      %v3587 = vld [vmem:[%s827 + $0x4] sm:$0xf]
      %v3588 = vld [vmem:[%s827 + $0x8] sm:$0xf]
      %v3589 = vld [vmem:[%s827 + $0xc] sm:$0xf]
      %v3590 = vld [vmem:[%s827 + $0x10] sm:$0xf]
      %v3591 = vld [vmem:[%s827 + $0x14] sm:$0xf]
      %v3592 = vld [vmem:[%s827 + $0x18] sm:$0xf]
      %v3593 = vld [vmem:[%s827 + $0x1c] sm:$0xf]
      %v3602 = vunpack.c.l.b16 %v3586
      %v3603 = vunpack.c.l.b16 %v3587
      %v3604 = vunpack.c.l.b16 %v3588
      %v3605 = vunpack.c.l.b16 %v3589
      %v3606 = vunpack.c.l.b16 %v3590
      %v3607 = vunpack.c.l.b16 %v3591
      %v3608 = vunpack.c.l.b16 %v3592
      %v3609 = vunpack.c.l.b16 %v3593
      %v3610 = vpack.c.b16 %v3603, %v3602
      %v3611 = vpack.c.b16 %v3605, %v3604
      %v3612 = vpack.c.b16 %v3607, %v3606
      %v3613 = vpack.c.b16 %v3609, %v3608
      %v3615 = vsel %vm479, %v3610, 0
      %v3618 = vsel %vm479, %v3611, 0
      %v3621 = vsel %vm479, %v3612, 0
      %v3624 = vsel %vm479, %v3613, 0
      %3626 = vmatprep.subr.bf16.mxu0 0
      %3627 = vmatpush1.bf16.msra.mxu0 %v1609
      %3628 = vmatprep.subr.bf16.mxu0 0
      %3629 = vmatpush1.bf16.msra.mxu0 %v1610
      %3630 = vmatprep.subr.bf16.mxu0 0
      %3631 = vmatpush1.bf16.msra.mxu0 %v1627
      %3632 = vmatprep.subr.bf16.mxu0 0
      %3633 = vmatpush1.bf16.msra.mxu0 0
      %3634 = vmatprep.subr.bf16.mxu0 0
      %3635 = vmatpush1.bf16.msra.mxu0 0
      %3636 = vmatprep.subr.bf16.mxu0 0
      %3637 = vmatpush1.bf16.msra.mxu0 0
      %3638 = vmatprep.subr.bf16.mxu0 0
      %3639 = vmatpush1.bf16.msra.mxu0 0
      %3640 = vmatprep.subr.bf16.mxu0 0
      %3641 = vmatpush1.bf16.msra.mxu0 0
      %3642 = vmatprep.subr.bf16.mxu0 0
      %3643 = vmatpush1.bf16.msra.mxu0 0
      %3644 = vmatprep.subr.bf16.mxu0 0
      %3645 = vmatpush1.bf16.msra.mxu0 0
      %3646 = vmatprep.subr.bf16.mxu0 0
      %3647 = vmatpush1.bf16.msra.mxu0 0
      %3648 = vmatprep.subr.bf16.mxu0 0
      %3649 = vmatpush1.bf16.msra.mxu0 0
      %3650 = vmatprep.subr.bf16.mxu0 0
      %3651 = vmatpush1.bf16.msra.mxu0 0
      %3652 = vmatprep.subr.bf16.mxu0 0
      %3653 = vmatpush1.bf16.msra.mxu0 0
      %3654 = vmatprep.subr.bf16.mxu0 0
      %3655 = vmatpush1.bf16.msra.mxu0 0
      %3656 = vmatprep.subr.bf16.mxu0 0
      %3657 = vmatpush1.bf16.msra.mxu0 0
      %3658 = vmatprep.mubr.bf16.mxu0 0
      %3659 = vmatmul.mubr.bf16.gmra.mrb[0].mxu0 %v3615
      %v3660 = vpop.f32.mrb[0].mxu0
      %v3661 = vadd.f32 %v1577, %v3660
      %v3662 = vpop.f32.mrb[0].mxu0
      %v3663 = vpop.f32.mrb[0].mxu0
      %v3664 = vadd.f32 %v1577, %v3663
      %v3665 = vpop.f32.mrb[0].mxu0
      %3666 = vmatprep.mubr.bf16.mxu0 0
      %3667 = vmatmul.mubr.bf16.gmra.mrb[0].mxu0 %v3618
      %v3668 = vpop.f32.mrb[0].mxu0
      %v3669 = vadd.f32 %v1577, %v3668
      %v3670 = vpop.f32.mrb[0].mxu0
      %v3671 = vpop.f32.mrb[0].mxu0
      %v3672 = vadd.f32 %v1577, %v3671
      %v3673 = vpop.f32.mrb[0].mxu0
      %3674 = vmatprep.mubr.bf16.mxu0 0
      %3675 = vmatmul.mubr.bf16.gmra.mrb[0].mxu0 %v3621
      %v3676 = vpop.f32.mrb[0].mxu0
      %v3677 = vadd.f32 %v1577, %v3676
      %v3678 = vpop.f32.mrb[0].mxu0
      %v3679 = vpop.f32.mrb[0].mxu0
      %v3680 = vadd.f32 %v1577, %v3679
      %v3681 = vpop.f32.mrb[0].mxu0
      %3682 = vmatprep.mubr.bf16.mxu0 0
      %3683 = vmatmul.mubr.bf16.gmra.mrb[0].mxu0 %v3624
      %v3684 = vpop.f32.mrb[0].mxu0
      %v3685 = vadd.f32 %v1577, %v3684
      %v3686 = vpop.f32.mrb[0].mxu0
      %v3687 = vpop.f32.mrb[0].mxu0
      %v3688 = vadd.f32 %v1577, %v3687
      %v3689 = vpop.f32.mrb[0].mxu0
      %3690 = vdwg.mxu0
      %v3691 = vadd.f32 %v3578, %v3661
      %v3692 = vadd.f32 %v3579, %v3664
      %v3693 = vadd.f32 %v3580, %v3669
      %v3694 = vadd.f32 %v3581, %v3672
      %v3695 = vadd.f32 %v3582, %v3677
      %v3696 = vadd.f32 %v3583, %v3680
      %v3697 = vadd.f32 %v3584, %v3685
      %v3698 = vadd.f32 %v3585, %v3688
      %v3699 = vmax.f32 %v3691, 0.0
      %v3700 = vmax.f32 %v3692, 0.0
      %v3701 = vmax.f32 %v3693, 0.0
      %v3702 = vmax.f32 %v3694, 0.0
      %v3703 = vmax.f32 %v3695, 0.0
      %v3704 = vmax.f32 %v3696, 0.0
      %v3705 = vmax.f32 %v3697, 0.0
      %v3706 = vmax.f32 %v3698, 0.0
      %s3707 = scalar_lea.vmem %s278, 192
      %3708 = vst.msk [vmem:[%s3707] sm:$0xff] %vm280, %v3699
      %3709 = vst.msk [vmem:[%s3707 + $0x8] sm:$0xff] %vm280, %v3700
      %3710 = vst.msk [vmem:[%s3707 + $0x10] sm:$0xff] %vm280, %v3701
      %3711 = vst.msk [vmem:[%s3707 + $0x18] sm:$0xff] %vm280, %v3702
      %3712 = vst.msk [vmem:[%s3707 + $0x20] sm:$0xff] %vm280, %v3703
      %3713 = vst.msk [vmem:[%s3707 + $0x28] sm:$0xff] %vm280, %v3704
      %3714 = vst.msk [vmem:[%s3707 + $0x30] sm:$0xff] %vm280, %v3705
      %3715 = vst.msk [vmem:[%s3707 + $0x38] sm:$0xff] %vm280, %v3706
      %p3716 = scmp.lt.s32.totalorder %s18, 1
      %s3717 = scalar_select %p3716, %s18, 1
      %s3718 = smul.addr %s3717, 32
      %s3719 = smul.addr %s3718, 8
      %s3720 = scalar_lea.vmem %s7, %s3719
      // Predicated region
      $region49: #{tpu_custom_call.1} parent=47 // pred_check
        %p3721 = pneg %p188
      $region50: #{tpu_custom_call.1} parent=47 // pred_check_branch
        %3723 = sbr.rel (%p3721) target = $region52
      $region51: #{tpu_custom_call.1} parent=47 // pred_region
        _
      $region52: #{tpu_custom_call.1} parent=47 // pred_fallthru
        _
    $region48: #{tpu_custom_call.1} parent=5 // pred_fallthru
      _
    %p3724 = scmp.le.s32.totalorder 2, %s13
    // Predicated region
    $region53: #{tpu_custom_call.1} parent=5 // pred_check
      %p3725 = pneg %p3724
    $region54: #{tpu_custom_call.1} parent=5 // pred_check_branch
      %3727 = sbr.rel (%p3725) target = $region56
    $region55: #{tpu_custom_call.1} parent=5 // pred_region
      %s3728 = ssub.s32 %s13, 2
      // Predicated region
      $region57: #{tpu_custom_call.1} parent=55 // pred_check
        %p3729 = pneg %p194
      $region58: #{tpu_custom_call.1} parent=55 // pred_check_branch
        %3731 = sbr.rel (%p3729) target = $region60
      $region59: #{tpu_custom_call.1} parent=55 // pred_region
        %p3732 = scmp.lt.s32.totalorder %s19, 1
        %s3733 = scalar_select %p3732, %s19, 1
        %s3734 = smul.addr %s3733, 32
        %s3735 = smul.addr %s3734, 8
        %s3736 = scalar_lea.vmem %s7, %s3735
      $region60: #{tpu_custom_call.1} parent=55 // pred_fallthru
        _
    $region56: #{tpu_custom_call.1} parent=5 // pred_fallthru
      _
  $region6: #{tpu_custom_call.1} parent=0 // loop_footer
    %s17 = sadd.s32 1, %s13
  $region7: #{tpu_custom_call.1} parent=0 // loop_footer_branch
    %12 = sbr.rel target = $region3
  $region8: #{tpu_custom_call.1} parent=0 // loop_exit
    _

</llo_original>
